<compile_context>
chip_gen: v7x
topology: tpu7x:2x2x1
jax: 0.10.0
libtpu: 0.0.40
codegen_flags: <defaults>
</compile_context>

<pallas_src>
import jax
import jax.numpy as jnp
from jax import lax
from jax.experimental import pallas as pl
from jax.experimental.pallas import tpu as pltpu


LANES = 128  # TPU lane width; also the softmax query-chunk size.


def make_mhsa_kernel(num_heads: int, head_dim: int, embed_dim: int,
                     seq_len: int, batches_per_step: int):
    inv_scale = 1.0 / (head_dim ** 0.5)   # folded into q (S*hd muls, not S*S)

    # Query-axis chunking keeps the live (Sk, Sq_chunk) f32 scores/exp block at
    # <= 32 vregs so the softmax never spills to VMEM.
    if seq_len % LANES == 0 and seq_len > LANES:
        n_q_chunks = seq_len // LANES
    else:
        n_q_chunks = 1
    q_chunk = seq_len // n_q_chunks

    def kernel(x_ref, wqkv_ref, bqkv_ref, wprojT_ref, bproj_ref, o_ref, qkv_scr):
        # Weights / biases are tiny; load & cast once per grid step (hoisted
        # out of the batch/head loops — JAX does not CSE broadcast_in_dim).
        wqkv_b = wqkv_ref[...].astype(jnp.bfloat16)                  # (3E, E)
        bqkv = bqkv_ref[...]                                         # (3E, 1)
        bproj_bcast = jnp.broadcast_to(bproj_ref[...],
                                       (embed_dim, seq_len))         # (E, S) f32

        for bi in range(batches_per_step):                           # static
            x_t = x_ref[bi]                                          # (E, S) f32

            # Fused QKV projection in transposed space:
            # (3E, E) @ (E, S) -> (3E, S); bf16 MXU operands, f32 accumulation.
            # Parked in VMEM so per-head q/k/v are aligned 8-row sublane slices.
            qkv_scr[...] = jnp.dot(wqkv_b, x_t.astype(jnp.bfloat16),
                                   preferred_element_type=jnp.float32) + bqkv

            # Register-resident projection accumulator (E x S f32 = 8 vregs),
            # initialized with the projection bias.
            acc = bproj_bcast

            for h in range(num_heads):                                # static unroll
                q_row = h * head_dim
                k_row = embed_dim + h * head_dim
                v_row = 2 * embed_dim + h * head_dim

                q_b = (qkv_scr[pl.ds(q_row, head_dim), :]
                       * inv_scale).astype(jnp.bfloat16)              # (hd, S)
                k_b = qkv_scr[pl.ds(k_row, head_dim), :].astype(jnp.bfloat16)
                v_b = qkv_scr[pl.ds(v_row, head_dim), :].astype(jnp.bfloat16)

                o_chunks = []
                for cc in range(n_q_chunks):                          # static
                    c0 = cc * q_chunk
                    q_c = q_b[:, c0:c0 + q_chunk]                     # (hd, cq) bf16

                    # scores^T chunk: contract hd (axis 0 of BOTH operands) so
                    # the MXU ingests the K-major (hd, S) tile directly — no
                    # materialized lane-sparse (S, hd) transpose.
                    s_c = lax.dot_general(
                        k_b, q_c,
                        dimension_numbers=(((0,), (0,)), ((), ())),
                        preferred_element_type=jnp.float32)           # (Sk, cq) f32

                    # Softmax over k (axis 0 / sublanes); reductions land in a
                    # (1, cq) lane row.  exp kept in f32 (v5e has no bf16 EUP);
                    # with the chunking this stays register-resident.
                    m_c = jnp.max(s_c, axis=0, keepdims=True)         # (1, cq)
                    e_c = jnp.exp(s_c - m_c)                          # (Sk, cq) f32
                    d_c = jnp.sum(e_c, axis=0, keepdims=True)         # (1, cq) f32

                    # Unnormalised PV (NN matmul): (hd, cq) = V (hd, Sk) @ e (Sk, cq).
                    pv_c = jnp.dot(v_b, e_c.astype(jnp.bfloat16),
                                   preferred_element_type=jnp.float32)

                    # Deferred softmax normalisation on the small (hd, cq)
                    # block via the EUP approximate reciprocal (denom >= 1).
                    o_chunks.append(pv_c * pl.reciprocal(d_c, approx=True))

                o_h = (o_chunks[0] if n_q_chunks == 1
                       else jnp.concatenate(o_chunks, axis=1))        # (hd, S) f32

                # Fused output projection:
                # acc (E, S) += W_proj[:, h*hd:(h+1)*hd] @ o_h, expressed as a
                # dot_general (contract axis 0 of both) over an aligned 8-row
                # sublane slice of W_proj^T — dense load, MXU-friendly.
                w_h = wprojT_ref[pl.ds(h * head_dim, head_dim), :].astype(jnp.bfloat16)
                acc = acc + lax.dot_general(
                    w_h, o_h.astype(jnp.bfloat16),
                    dimension_numbers=(((0,), (0,)), ((), ())),
                    preferred_element_type=jnp.float32)               # (E, S)

            # Lane-dense store: last dim is S (a multiple of 128 lanes).
            o_ref[bi] = acc.astype(o_ref.dtype)

    return kernel


def _single_tensorcore_chip() -> bool:
    """True for TPU generations with one TensorCore per chip (v5e / v6e)."""
    try:
        kind = jax.devices()[0].device_kind.lower().replace(" ", "").replace("-", "")
    except Exception:
        return False
    return any(tag in kind for tag in ("v5lite", "v5e", "v6lite", "v6e"))


def multi_head_self_attention(x_nchw, params, num_heads: int):
    """x_nchw: (B, C, H, W) f32.  params hold PyTorch-layout (out, in) weights."""
    b, c, h, w = x_nchw.shape
    embed_dim = c
    head_dim = embed_dim // num_heads
    s = h * w

    # Native NCHW layout: (B, C, H, W) -> (B, E, S) is a free reshape; loads and
    # stores inside the kernel are lane-dense (S on lanes), no transposes.
    x_bes = x_nchw.reshape(b, embed_dim, s)

    wqkv = params["wqkv"]                                   # (3E, E)
    bqkv = params["bqkv"].reshape(3 * embed_dim, 1)         # (3E, 1)
    # W_proj^T: per-head operand is an aligned 8-row sublane slice (dense load)
    # instead of a (num_heads, E, 8) tensor with a lane-sparse 8-wide last dim.
    wprojT = params["wproj"].T                              # (E_in, E_out)
    bproj = params["bproj"].reshape(embed_dim, 1)           # (E, 1)

    # Generation-aware grid:
    #  * single-TC chips (v5e/v6e): fold the whole batch into one grid step —
    #    grid=(B,) there is just a serial loop paying per-step + pipeline overhead.
    #  * multi-TC chips (v7x): one batch per grid step with "parallel" semantics
    #    so the two batches can land on the two TensorCores.
    # TODO(synk): verify in an xprof trace that on v7x the B grid steps really
    # split across both TensorCores; if not, switch the batch axis to
    # pltpu.CORE_PARALLEL (or pl.core_map over create_tensorcore_mesh).
    batches_per_step = b if _single_tensorcore_chip() else 1
    grid = (b // batches_per_step,)

    kernel = make_mhsa_kernel(num_heads, head_dim, embed_dim, s, batches_per_step)

    out_bes = pl.pallas_call(
        kernel,
        out_shape=jax.ShapeDtypeStruct((b, embed_dim, s), x_bes.dtype),
        grid_spec=pltpu.PrefetchScalarGridSpec(
            num_scalar_prefetch=0,
            grid=grid,
            in_specs=[
                pl.BlockSpec((batches_per_step, embed_dim, s), lambda i: (i, 0, 0)),
                pl.BlockSpec((3 * embed_dim, embed_dim), lambda i: (0, 0)),
                pl.BlockSpec((3 * embed_dim, 1), lambda i: (0, 0)),
                pl.BlockSpec((embed_dim, embed_dim), lambda i: (0, 0)),
                pl.BlockSpec((embed_dim, 1), lambda i: (0, 0)),
            ],
            out_specs=pl.BlockSpec((batches_per_step, embed_dim, s),
                                   lambda i: (i, 0, 0)),
            scratch_shapes=[
                pltpu.VMEM((3 * embed_dim, s), jnp.float32),   # fused QKV (transposed)
            ],
        ),
        compiler_params=pltpu.CompilerParams(
            dimension_semantics=("parallel",)),
    )(x_bes, wqkv, bqkv, wprojT, bproj)

    # (B, E, S) == (B, C, H*W): free reshape back to NCHW, no transpose needed.
    return out_bes.reshape(b, c, h, w)


def reference_mhsa(x_nchw, params, num_heads: int):
    """Pure-JAX f32 reference mirroring the PyTorch forward exactly."""
    b, c, h, w = x_nchw.shape
    head_dim = c // num_heads
    scale = head_dim ** 0.5
    x = jnp.transpose(x_nchw.reshape(b, c, -1), (0, 2, 1))            # (B, S, C)
    qkv = x @ params["wqkv"].T + params["bqkv"]                       # (B, S, 3C)
    q, k, v = jnp.split(qkv, 3, axis=-1)

    def heads(t):
        return jnp.transpose(t.reshape(b, -1, num_heads, head_dim), (0, 2, 1, 3))

    q, k, v = heads(q), heads(k), heads(v)                            # (B, H, S, hd)
    attn = jnp.einsum("bhqd,bhkd->bhqk", q, k) / scale
    attn = jax.nn.softmax(attn, axis=-1)
    out = jnp.einsum("bhqk,bhkd->bhqd", attn, v)
    out = jnp.transpose(out, (0, 2, 1, 3)).reshape(b, -1, c)
    out = out @ params["wproj"].T + params["bproj"]
    return jnp.transpose(out, (0, 2, 1)).reshape(b, c, h, w)


if __name__ == "__main__":
    # Shapes consistent with the module: batch=2, embed_dim(C)=32, H=W=16.
    B, C, H, W = 2, 32, 16, 16
    NUM_HEADS = 4

    key = jax.random.PRNGKey(0)
    kx, k1, k2, k3, k4 = jax.random.split(key, 5)

    x = jax.random.normal(kx, (B, C, H, W), dtype=jnp.float32)

    # Parameters in PyTorch nn.Linear layout: weight (out, in), bias (out,).
    params = {
        "wqkv": jax.random.normal(k1, (3 * C, C), dtype=jnp.float32) * 0.05,
        "bqkv": jax.random.normal(k2, (3 * C,), dtype=jnp.float32) * 0.05,
        "wproj": jax.random.normal(k3, (C, C), dtype=jnp.float32) * 0.05,
        "bproj": jax.random.normal(k4, (C,), dtype=jnp.float32) * 0.05,
    }

    out = jax.block_until_ready(multi_head_self_attention(x, params, NUM_HEADS))
    ref = jax.block_until_ready(reference_mhsa(x, params, NUM_HEADS))

    assert out.shape == (B, C, H, W), out.shape
    # bf16 MXU operands + approx reciprocal => relaxed tolerance vs f32-exact.
    max_err = float(jnp.max(jnp.abs(out - ref)))
    assert jnp.allclose(out, ref, atol=2e-2, rtol=2e-2), max_err

    print("KERNEL_OK")
</pallas_src>

<mosaic_0001>
module attributes {stable_mosaic.version = 11 : i64} {
  func.func @kernel(%arg0: i32, %arg1: memref<1x32x256xf32, #tpu.memory_space<vmem>>, %arg2: memref<96x32xf32, #tpu.memory_space<vmem>>, %arg3: memref<96x1xf32, #tpu.memory_space<vmem>>, %arg4: memref<32x32xf32, #tpu.memory_space<vmem>>, %arg5: memref<32x1xf32, #tpu.memory_space<vmem>>, %arg6: memref<1x32x256xf32, #tpu.memory_space<vmem>>, %arg7: memref<96x256xf32, #tpu.memory_space<vmem>>) attributes {dimension_semantics = [#tpu.dimension_semantics<parallel>], iteration_bounds = array<i64: 2>, scalar_prefetch = 0 : i64, scratch_operands = 1 : i64, tpu.core_type = #tpu.core_type<tc>, window_params = [{transform_indices = @transform_0, window_bounds = array<i64: 1, 32, 256>}, {pipeline_mode = #tpu.pipeline_mode<synchronous>, transform_indices = @transform_1, window_bounds = array<i64: 96, 32>}, {pipeline_mode = #tpu.pipeline_mode<synchronous>, transform_indices = @transform_2, window_bounds = array<i64: 96, 1>}, {pipeline_mode = #tpu.pipeline_mode<synchronous>, transform_indices = @transform_3, window_bounds = array<i64: 32, 32>}, {pipeline_mode = #tpu.pipeline_mode<synchronous>, transform_indices = @transform_4, window_bounds = array<i64: 32, 1>}, {transform_indices = @transform_5, window_bounds = array<i64: 1, 32, 256>}]} {
    %c0 = arith.constant 0 : index
    %c0_0 = arith.constant 0 : index
    %0 = vector.load %arg2[%c0, %c0_0] : memref<96x32xf32, #tpu.memory_space<vmem>>, vector<96x32xf32>
    %1 = arith.truncf %0 : vector<96x32xf32> to vector<96x32xbf16>
    %c0_1 = arith.constant 0 : index
    %c0_2 = arith.constant 0 : index
    %2 = vector.load %arg3[%c0_1, %c0_2] : memref<96x1xf32, #tpu.memory_space<vmem>>, vector<96x1xf32>
    %c0_3 = arith.constant 0 : index
    %c0_4 = arith.constant 0 : index
    %3 = vector.load %arg5[%c0_3, %c0_4] : memref<32x1xf32, #tpu.memory_space<vmem>>, vector<32x1xf32>
    %4 = vector.shape_cast %3 : vector<32x1xf32> to vector<32x1xf32>
    %5 = vector.broadcast %4 : vector<32x1xf32> to vector<32x256xf32>
    %c0_5 = arith.constant 0 : index
    %c0_6 = arith.constant 0 : index
    %c0_7 = arith.constant 0 : index
    %6 = vector.load %arg1[%c0_5, %c0_6, %c0_7] : memref<1x32x256xf32, #tpu.memory_space<vmem>>, vector<1x32x256xf32>
    %7 = vector.shape_cast %6 : vector<1x32x256xf32> to vector<32x256xf32>
    %8 = arith.truncf %7 : vector<32x256xf32> to vector<32x256xbf16>
    %cst = arith.constant dense<0.000000e+00> : vector<96x256xf32>
    %9 = tpu.matmul %1, %8, %cst {dimension_numbers = #tpu.dot_dimension_numbers<[1], [0], [0], [1], [0, 0, 1, 1], [], []>} : vector<96x32xbf16>, vector<32x256xbf16>, vector<96x256xf32> -> vector<96x256xf32>
    %10 = vector.broadcast %2 : vector<96x1xf32> to vector<96x256xf32>
    %11 = arith.addf %9, %10 : vector<96x256xf32>
    %c0_8 = arith.constant 0 : index
    %c0_9 = arith.constant 0 : index
    %12 = vector.load %arg7[%c0_8, %c0_9] : memref<96x256xf32, #tpu.memory_space<vmem>>, vector<96x256xf32>
    tpu.vector_store %arg7[%c0_8, %c0_9], %11 {strides = array<i32>} : memref<96x256xf32, #tpu.memory_space<vmem>>, vector<96x256xf32>,
    %c0_10 = arith.constant 0 : index
    %c0_11 = arith.constant 0 : index
    %13 = vector.load %arg7[%c0_10, %c0_11] : memref<96x256xf32, #tpu.memory_space<vmem>>, vector<8x256xf32>
    %cst_12 = arith.constant 0.353553385 : f32
    %14 = vector.broadcast %cst_12 : f32 to vector<8x256xf32>
    %15 = arith.mulf %13, %14 : vector<8x256xf32>
    %16 = arith.truncf %15 : vector<8x256xf32> to vector<8x256xbf16>
    %c32 = arith.constant 32 : index
    %c0_13 = arith.constant 0 : index
    %17 = vector.load %arg7[%c32, %c0_13] : memref<96x256xf32, #tpu.memory_space<vmem>>, vector<8x256xf32>
    %18 = arith.truncf %17 : vector<8x256xf32> to vector<8x256xbf16>
    %c64 = arith.constant 64 : index
    %c0_14 = arith.constant 0 : index
    %19 = vector.load %arg7[%c64, %c0_14] : memref<96x256xf32, #tpu.memory_space<vmem>>, vector<8x256xf32>
    %20 = arith.truncf %19 : vector<8x256xf32> to vector<8x256xbf16>
    %21 = vector.extract_strided_slice %16 {offsets = [0, 0], sizes = [8, 128], strides = [1, 1]} : vector<8x256xbf16> to vector<8x128xbf16>
    %cst_15 = arith.constant dense<0.000000e+00> : vector<256x128xf32>
    %22 = tpu.matmul %18, %21, %cst_15 {dimension_numbers = #tpu.dot_dimension_numbers<[0], [0], [1], [1], [0, 1, 1, 1], [], []>} : vector<8x256xbf16>, vector<8x128xbf16>, vector<256x128xf32> -> vector<256x128xf32>
    %cst_16 = arith.constant dense<0xFF800000> : vector<128xf32>
    %23 = vector.multi_reduction <maximumf>, %22, %cst_16 [0] : vector<256x128xf32> to vector<128xf32>
    %24 = vector.shape_cast %23 : vector<128xf32> to vector<1x128xf32>
    %25 = vector.broadcast %24 : vector<1x128xf32> to vector<256x128xf32>
    %26 = arith.subf %22, %25 : vector<256x128xf32>
    %27 = math.exp %26 : vector<256x128xf32>
    %cst_17 = arith.constant dense<0.000000e+00> : vector<128xf32>
    %28 = vector.multi_reduction <add>, %27, %cst_17 [0] : vector<256x128xf32> to vector<128xf32>
    %29 = vector.shape_cast %28 : vector<128xf32> to vector<1x128xf32>
    %30 = arith.truncf %27 : vector<256x128xf32> to vector<256x128xbf16>
    %cst_18 = arith.constant dense<0.000000e+00> : vector<8x128xf32>
    %31 = tpu.matmul %20, %30, %cst_18 {dimension_numbers = #tpu.dot_dimension_numbers<[1], [0], [0], [1], [0, 0, 1, 1], [], []>} : vector<8x256xbf16>, vector<256x128xbf16>, vector<8x128xf32> -> vector<8x128xf32>
    %32 = tpu.reciprocal %29 {approx = true} : vector<1x128xf32> -> vector<1x128xf32>
    %33 = vector.broadcast %32 : vector<1x128xf32> to vector<8x128xf32>
    %34 = arith.mulf %31, %33 : vector<8x128xf32>
    %35 = vector.extract_strided_slice %16 {offsets = [0, 128], sizes = [8, 128], strides = [1, 1]} : vector<8x256xbf16> to vector<8x128xbf16>
    %cst_19 = arith.constant dense<0.000000e+00> : vector<256x128xf32>
    %36 = tpu.matmul %18, %35, %cst_19 {dimension_numbers = #tpu.dot_dimension_numbers<[0], [0], [1], [1], [0, 1, 1, 1], [], []>} : vector<8x256xbf16>, vector<8x128xbf16>, vector<256x128xf32> -> vector<256x128xf32>
    %cst_20 = arith.constant dense<0xFF800000> : vector<128xf32>
    %37 = vector.multi_reduction <maximumf>, %36, %cst_20 [0] : vector<256x128xf32> to vector<128xf32>
    %38 = vector.shape_cast %37 : vector<128xf32> to vector<1x128xf32>
    %39 = vector.broadcast %38 : vector<1x128xf32> to vector<256x128xf32>
    %40 = arith.subf %36, %39 : vector<256x128xf32>
    %41 = math.exp %40 : vector<256x128xf32>
    %cst_21 = arith.constant dense<0.000000e+00> : vector<128xf32>
    %42 = vector.multi_reduction <add>, %41, %cst_21 [0] : vector<256x128xf32> to vector<128xf32>
    %43 = vector.shape_cast %42 : vector<128xf32> to vector<1x128xf32>
    %44 = arith.truncf %41 : vector<256x128xf32> to vector<256x128xbf16>
    %cst_22 = arith.constant dense<0.000000e+00> : vector<8x128xf32>
    %45 = tpu.matmul %20, %44, %cst_22 {dimension_numbers = #tpu.dot_dimension_numbers<[1], [0], [0], [1], [0, 0, 1, 1], [], []>} : vector<8x256xbf16>, vector<256x128xbf16>, vector<8x128xf32> -> vector<8x128xf32>
    %46 = tpu.reciprocal %43 {approx = true} : vector<1x128xf32> -> vector<1x128xf32>
    %47 = vector.broadcast %46 : vector<1x128xf32> to vector<8x128xf32>
    %48 = arith.mulf %45, %47 : vector<8x128xf32>
    %49 = tpu.concatenate %34, %48 in 1 : vector<8x128xf32>, vector<8x128xf32> -> vector<8x256xf32>
    %c0_23 = arith.constant 0 : index
    %c0_24 = arith.constant 0 : index
    %50 = vector.load %arg4[%c0_23, %c0_24] : memref<32x32xf32, #tpu.memory_space<vmem>>, vector<8x32xf32>
    %51 = arith.truncf %50 : vector<8x32xf32> to vector<8x32xbf16>
    %52 = arith.truncf %49 : vector<8x256xf32> to vector<8x256xbf16>
    %cst_25 = arith.constant dense<0.000000e+00> : vector<32x256xf32>
    %53 = tpu.matmul %51, %52, %cst_25 {dimension_numbers = #tpu.dot_dimension_numbers<[0], [0], [1], [1], [0, 1, 1, 1], [], []>} : vector<8x32xbf16>, vector<8x256xbf16>, vector<32x256xf32> -> vector<32x256xf32>
    %54 = arith.addf %5, %53 : vector<32x256xf32>
    %c8 = arith.constant 8 : index
    %c0_26 = arith.constant 0 : index
    %55 = vector.load %arg7[%c8, %c0_26] : memref<96x256xf32, #tpu.memory_space<vmem>>, vector<8x256xf32>
    %cst_27 = arith.constant 0.353553385 : f32
    %56 = vector.broadcast %cst_27 : f32 to vector<8x256xf32>
    %57 = arith.mulf %55, %56 : vector<8x256xf32>
    %58 = arith.truncf %57 : vector<8x256xf32> to vector<8x256xbf16>
    %c40 = arith.constant 40 : index
    %c0_28 = arith.constant 0 : index
    %59 = vector.load %arg7[%c40, %c0_28] : memref<96x256xf32, #tpu.memory_space<vmem>>, vector<8x256xf32>
    %60 = arith.truncf %59 : vector<8x256xf32> to vector<8x256xbf16>
    %c72 = arith.constant 72 : index
    %c0_29 = arith.constant 0 : index
    %61 = vector.load %arg7[%c72, %c0_29] : memref<96x256xf32, #tpu.memory_space<vmem>>, vector<8x256xf32>
    %62 = arith.truncf %61 : vector<8x256xf32> to vector<8x256xbf16>
    %63 = vector.extract_strided_slice %58 {offsets = [0, 0], sizes = [8, 128], strides = [1, 1]} : vector<8x256xbf16> to vector<8x128xbf16>
    %cst_30 = arith.constant dense<0.000000e+00> : vector<256x128xf32>
    %64 = tpu.matmul %60, %63, %cst_30 {dimension_numbers = #tpu.dot_dimension_numbers<[0], [0], [1], [1], [0, 1, 1, 1], [], []>} : vector<8x256xbf16>, vector<8x128xbf16>, vector<256x128xf32> -> vector<256x128xf32>
    %cst_31 = arith.constant dense<0xFF800000> : vector<128xf32>
    %65 = vector.multi_reduction <maximumf>, %64, %cst_31 [0] : vector<256x128xf32> to vector<128xf32>
    %66 = vector.shape_cast %65 : vector<128xf32> to vector<1x128xf32>
    %67 = vector.broadcast %66 : vector<1x128xf32> to vector<256x128xf32>
    %68 = arith.subf %64, %67 : vector<256x128xf32>
    %69 = math.exp %68 : vector<256x128xf32>
    %cst_32 = arith.constant dense<0.000000e+00> : vector<128xf32>
    %70 = vector.multi_reduction <add>, %69, %cst_32 [0] : vector<256x128xf32> to vector<128xf32>
    %71 = vector.shape_cast %70 : vector<128xf32> to vector<1x128xf32>
    %72 = arith.truncf %69 : vector<256x128xf32> to vector<256x128xbf16>
    %cst_33 = arith.constant dense<0.000000e+00> : vector<8x128xf32>
    %73 = tpu.matmul %62, %72, %cst_33 {dimension_numbers = #tpu.dot_dimension_numbers<[1], [0], [0], [1], [0, 0, 1, 1], [], []>} : vector<8x256xbf16>, vector<256x128xbf16>, vector<8x128xf32> -> vector<8x128xf32>
    %74 = tpu.reciprocal %71 {approx = true} : vector<1x128xf32> -> vector<1x128xf32>
    %75 = vector.broadcast %74 : vector<1x128xf32> to vector<8x128xf32>
    %76 = arith.mulf %73, %75 : vector<8x128xf32>
    %77 = vector.extract_strided_slice %58 {offsets = [0, 128], sizes = [8, 128], strides = [1, 1]} : vector<8x256xbf16> to vector<8x128xbf16>
    %cst_34 = arith.constant dense<0.000000e+00> : vector<256x128xf32>
    %78 = tpu.matmul %60, %77, %cst_34 {dimension_numbers = #tpu.dot_dimension_numbers<[0], [0], [1], [1], [0, 1, 1, 1], [], []>} : vector<8x256xbf16>, vector<8x128xbf16>, vector<256x128xf32> -> vector<256x128xf32>
    %cst_35 = arith.constant dense<0xFF800000> : vector<128xf32>
    %79 = vector.multi_reduction <maximumf>, %78, %cst_35 [0] : vector<256x128xf32> to vector<128xf32>
    %80 = vector.shape_cast %79 : vector<128xf32> to vector<1x128xf32>
    %81 = vector.broadcast %80 : vector<1x128xf32> to vector<256x128xf32>
    %82 = arith.subf %78, %81 : vector<256x128xf32>
    %83 = math.exp %82 : vector<256x128xf32>
    %cst_36 = arith.constant dense<0.000000e+00> : vector<128xf32>
    %84 = vector.multi_reduction <add>, %83, %cst_36 [0] : vector<256x128xf32> to vector<128xf32>
    %85 = vector.shape_cast %84 : vector<128xf32> to vector<1x128xf32>
    %86 = arith.truncf %83 : vector<256x128xf32> to vector<256x128xbf16>
    %cst_37 = arith.constant dense<0.000000e+00> : vector<8x128xf32>
    %87 = tpu.matmul %62, %86, %cst_37 {dimension_numbers = #tpu.dot_dimension_numbers<[1], [0], [0], [1], [0, 0, 1, 1], [], []>} : vector<8x256xbf16>, vector<256x128xbf16>, vector<8x128xf32> -> vector<8x128xf32>
    %88 = tpu.reciprocal %85 {approx = true} : vector<1x128xf32> -> vector<1x128xf32>
    %89 = vector.broadcast %88 : vector<1x128xf32> to vector<8x128xf32>
    %90 = arith.mulf %87, %89 : vector<8x128xf32>
    %91 = tpu.concatenate %76, %90 in 1 : vector<8x128xf32>, vector<8x128xf32> -> vector<8x256xf32>
    %c8_38 = arith.constant 8 : index
    %c0_39 = arith.constant 0 : index
    %92 = vector.load %arg4[%c8_38, %c0_39] : memref<32x32xf32, #tpu.memory_space<vmem>>, vector<8x32xf32>
    %93 = arith.truncf %92 : vector<8x32xf32> to vector<8x32xbf16>
    %94 = arith.truncf %91 : vector<8x256xf32> to vector<8x256xbf16>
    %cst_40 = arith.constant dense<0.000000e+00> : vector<32x256xf32>
    %95 = tpu.matmul %93, %94, %cst_40 {dimension_numbers = #tpu.dot_dimension_numbers<[0], [0], [1], [1], [0, 1, 1, 1], [], []>} : vector<8x32xbf16>, vector<8x256xbf16>, vector<32x256xf32> -> vector<32x256xf32>
    %96 = arith.addf %54, %95 : vector<32x256xf32>
    %c16 = arith.constant 16 : index
    %c0_41 = arith.constant 0 : index
    %97 = vector.load %arg7[%c16, %c0_41] : memref<96x256xf32, #tpu.memory_space<vmem>>, vector<8x256xf32>
    %cst_42 = arith.constant 0.353553385 : f32
    %98 = vector.broadcast %cst_42 : f32 to vector<8x256xf32>
    %99 = arith.mulf %97, %98 : vector<8x256xf32>
    %100 = arith.truncf %99 : vector<8x256xf32> to vector<8x256xbf16>
    %c48 = arith.constant 48 : index
    %c0_43 = arith.constant 0 : index
    %101 = vector.load %arg7[%c48, %c0_43] : memref<96x256xf32, #tpu.memory_space<vmem>>, vector<8x256xf32>
    %102 = arith.truncf %101 : vector<8x256xf32> to vector<8x256xbf16>
    %c80 = arith.constant 80 : index
    %c0_44 = arith.constant 0 : index
    %103 = vector.load %arg7[%c80, %c0_44] : memref<96x256xf32, #tpu.memory_space<vmem>>, vector<8x256xf32>
    %104 = arith.truncf %103 : vector<8x256xf32> to vector<8x256xbf16>
    %105 = vector.extract_strided_slice %100 {offsets = [0, 0], sizes = [8, 128], strides = [1, 1]} : vector<8x256xbf16> to vector<8x128xbf16>
    %cst_45 = arith.constant dense<0.000000e+00> : vector<256x128xf32>
    %106 = tpu.matmul %102, %105, %cst_45 {dimension_numbers = #tpu.dot_dimension_numbers<[0], [0], [1], [1], [0, 1, 1, 1], [], []>} : vector<8x256xbf16>, vector<8x128xbf16>, vector<256x128xf32> -> vector<256x128xf32>
    %cst_46 = arith.constant dense<0xFF800000> : vector<128xf32>
    %107 = vector.multi_reduction <maximumf>, %106, %cst_46 [0] : vector<256x128xf32> to vector<128xf32>
    %108 = vector.shape_cast %107 : vector<128xf32> to vector<1x128xf32>
    %109 = vector.broadcast %108 : vector<1x128xf32> to vector<256x128xf32>
    %110 = arith.subf %106, %109 : vector<256x128xf32>
    %111 = math.exp %110 : vector<256x128xf32>
    %cst_47 = arith.constant dense<0.000000e+00> : vector<128xf32>
    %112 = vector.multi_reduction <add>, %111, %cst_47 [0] : vector<256x128xf32> to vector<128xf32>
    %113 = vector.shape_cast %112 : vector<128xf32> to vector<1x128xf32>
    %114 = arith.truncf %111 : vector<256x128xf32> to vector<256x128xbf16>
    %cst_48 = arith.constant dense<0.000000e+00> : vector<8x128xf32>
    %115 = tpu.matmul %104, %114, %cst_48 {dimension_numbers = #tpu.dot_dimension_numbers<[1], [0], [0], [1], [0, 0, 1, 1], [], []>} : vector<8x256xbf16>, vector<256x128xbf16>, vector<8x128xf32> -> vector<8x128xf32>
    %116 = tpu.reciprocal %113 {approx = true} : vector<1x128xf32> -> vector<1x128xf32>
    %117 = vector.broadcast %116 : vector<1x128xf32> to vector<8x128xf32>
    %118 = arith.mulf %115, %117 : vector<8x128xf32>
    %119 = vector.extract_strided_slice %100 {offsets = [0, 128], sizes = [8, 128], strides = [1, 1]} : vector<8x256xbf16> to vector<8x128xbf16>
    %cst_49 = arith.constant dense<0.000000e+00> : vector<256x128xf32>
    %120 = tpu.matmul %102, %119, %cst_49 {dimension_numbers = #tpu.dot_dimension_numbers<[0], [0], [1], [1], [0, 1, 1, 1], [], []>} : vector<8x256xbf16>, vector<8x128xbf16>, vector<256x128xf32> -> vector<256x128xf32>
    %cst_50 = arith.constant dense<0xFF800000> : vector<128xf32>
    %121 = vector.multi_reduction <maximumf>, %120, %cst_50 [0] : vector<256x128xf32> to vector<128xf32>
    %122 = vector.shape_cast %121 : vector<128xf32> to vector<1x128xf32>
    %123 = vector.broadcast %122 : vector<1x128xf32> to vector<256x128xf32>
    %124 = arith.subf %120, %123 : vector<256x128xf32>
    %125 = math.exp %124 : vector<256x128xf32>
    %cst_51 = arith.constant dense<0.000000e+00> : vector<128xf32>
    %126 = vector.multi_reduction <add>, %125, %cst_51 [0] : vector<256x128xf32> to vector<128xf32>
    %127 = vector.shape_cast %126 : vector<128xf32> to vector<1x128xf32>
    %128 = arith.truncf %125 : vector<256x128xf32> to vector<256x128xbf16>
    %cst_52 = arith.constant dense<0.000000e+00> : vector<8x128xf32>
    %129 = tpu.matmul %104, %128, %cst_52 {dimension_numbers = #tpu.dot_dimension_numbers<[1], [0], [0], [1], [0, 0, 1, 1], [], []>} : vector<8x256xbf16>, vector<256x128xbf16>, vector<8x128xf32> -> vector<8x128xf32>
    %130 = tpu.reciprocal %127 {approx = true} : vector<1x128xf32> -> vector<1x128xf32>
    %131 = vector.broadcast %130 : vector<1x128xf32> to vector<8x128xf32>
    %132 = arith.mulf %129, %131 : vector<8x128xf32>
    %133 = tpu.concatenate %118, %132 in 1 : vector<8x128xf32>, vector<8x128xf32> -> vector<8x256xf32>
    %c16_53 = arith.constant 16 : index
    %c0_54 = arith.constant 0 : index
    %134 = vector.load %arg4[%c16_53, %c0_54] : memref<32x32xf32, #tpu.memory_space<vmem>>, vector<8x32xf32>
    %135 = arith.truncf %134 : vector<8x32xf32> to vector<8x32xbf16>
    %136 = arith.truncf %133 : vector<8x256xf32> to vector<8x256xbf16>
    %cst_55 = arith.constant dense<0.000000e+00> : vector<32x256xf32>
    %137 = tpu.matmul %135, %136, %cst_55 {dimension_numbers = #tpu.dot_dimension_numbers<[0], [0], [1], [1], [0, 1, 1, 1], [], []>} : vector<8x32xbf16>, vector<8x256xbf16>, vector<32x256xf32> -> vector<32x256xf32>
    %138 = arith.addf %96, %137 : vector<32x256xf32>
    %c24 = arith.constant 24 : index
    %c0_56 = arith.constant 0 : index
    %139 = vector.load %arg7[%c24, %c0_56] : memref<96x256xf32, #tpu.memory_space<vmem>>, vector<8x256xf32>
    %cst_57 = arith.constant 0.353553385 : f32
    %140 = vector.broadcast %cst_57 : f32 to vector<8x256xf32>
    %141 = arith.mulf %139, %140 : vector<8x256xf32>
    %142 = arith.truncf %141 : vector<8x256xf32> to vector<8x256xbf16>
    %c56 = arith.constant 56 : index
    %c0_58 = arith.constant 0 : index
    %143 = vector.load %arg7[%c56, %c0_58] : memref<96x256xf32, #tpu.memory_space<vmem>>, vector<8x256xf32>
    %144 = arith.truncf %143 : vector<8x256xf32> to vector<8x256xbf16>
    %c88 = arith.constant 88 : index
    %c0_59 = arith.constant 0 : index
    %145 = vector.load %arg7[%c88, %c0_59] : memref<96x256xf32, #tpu.memory_space<vmem>>, vector<8x256xf32>
    %146 = arith.truncf %145 : vector<8x256xf32> to vector<8x256xbf16>
    %147 = vector.extract_strided_slice %142 {offsets = [0, 0], sizes = [8, 128], strides = [1, 1]} : vector<8x256xbf16> to vector<8x128xbf16>
    %cst_60 = arith.constant dense<0.000000e+00> : vector<256x128xf32>
    %148 = tpu.matmul %144, %147, %cst_60 {dimension_numbers = #tpu.dot_dimension_numbers<[0], [0], [1], [1], [0, 1, 1, 1], [], []>} : vector<8x256xbf16>, vector<8x128xbf16>, vector<256x128xf32> -> vector<256x128xf32>
    %cst_61 = arith.constant dense<0xFF800000> : vector<128xf32>
    %149 = vector.multi_reduction <maximumf>, %148, %cst_61 [0] : vector<256x128xf32> to vector<128xf32>
    %150 = vector.shape_cast %149 : vector<128xf32> to vector<1x128xf32>
    %151 = vector.broadcast %150 : vector<1x128xf32> to vector<256x128xf32>
    %152 = arith.subf %148, %151 : vector<256x128xf32>
    %153 = math.exp %152 : vector<256x128xf32>
    %cst_62 = arith.constant dense<0.000000e+00> : vector<128xf32>
    %154 = vector.multi_reduction <add>, %153, %cst_62 [0] : vector<256x128xf32> to vector<128xf32>
    %155 = vector.shape_cast %154 : vector<128xf32> to vector<1x128xf32>
    %156 = arith.truncf %153 : vector<256x128xf32> to vector<256x128xbf16>
    %cst_63 = arith.constant dense<0.000000e+00> : vector<8x128xf32>
    %157 = tpu.matmul %146, %156, %cst_63 {dimension_numbers = #tpu.dot_dimension_numbers<[1], [0], [0], [1], [0, 0, 1, 1], [], []>} : vector<8x256xbf16>, vector<256x128xbf16>, vector<8x128xf32> -> vector<8x128xf32>
    %158 = tpu.reciprocal %155 {approx = true} : vector<1x128xf32> -> vector<1x128xf32>
    %159 = vector.broadcast %158 : vector<1x128xf32> to vector<8x128xf32>
    %160 = arith.mulf %157, %159 : vector<8x128xf32>
    %161 = vector.extract_strided_slice %142 {offsets = [0, 128], sizes = [8, 128], strides = [1, 1]} : vector<8x256xbf16> to vector<8x128xbf16>
    %cst_64 = arith.constant dense<0.000000e+00> : vector<256x128xf32>
    %162 = tpu.matmul %144, %161, %cst_64 {dimension_numbers = #tpu.dot_dimension_numbers<[0], [0], [1], [1], [0, 1, 1, 1], [], []>} : vector<8x256xbf16>, vector<8x128xbf16>, vector<256x128xf32> -> vector<256x128xf32>
    %cst_65 = arith.constant dense<0xFF800000> : vector<128xf32>
    %163 = vector.multi_reduction <maximumf>, %162, %cst_65 [0] : vector<256x128xf32> to vector<128xf32>
    %164 = vector.shape_cast %163 : vector<128xf32> to vector<1x128xf32>
    %165 = vector.broadcast %164 : vector<1x128xf32> to vector<256x128xf32>
    %166 = arith.subf %162, %165 : vector<256x128xf32>
    %167 = math.exp %166 : vector<256x128xf32>
    %cst_66 = arith.constant dense<0.000000e+00> : vector<128xf32>
    %168 = vector.multi_reduction <add>, %167, %cst_66 [0] : vector<256x128xf32> to vector<128xf32>
    %169 = vector.shape_cast %168 : vector<128xf32> to vector<1x128xf32>
    %170 = arith.truncf %167 : vector<256x128xf32> to vector<256x128xbf16>
    %cst_67 = arith.constant dense<0.000000e+00> : vector<8x128xf32>
    %171 = tpu.matmul %146, %170, %cst_67 {dimension_numbers = #tpu.dot_dimension_numbers<[1], [0], [0], [1], [0, 0, 1, 1], [], []>} : vector<8x256xbf16>, vector<256x128xbf16>, vector<8x128xf32> -> vector<8x128xf32>
    %172 = tpu.reciprocal %169 {approx = true} : vector<1x128xf32> -> vector<1x128xf32>
    %173 = vector.broadcast %172 : vector<1x128xf32> to vector<8x128xf32>
    %174 = arith.mulf %171, %173 : vector<8x128xf32>
    %175 = tpu.concatenate %160, %174 in 1 : vector<8x128xf32>, vector<8x128xf32> -> vector<8x256xf32>
    %c24_68 = arith.constant 24 : index
    %c0_69 = arith.constant 0 : index
    %176 = vector.load %arg4[%c24_68, %c0_69] : memref<32x32xf32, #tpu.memory_space<vmem>>, vector<8x32xf32>
    %177 = arith.truncf %176 : vector<8x32xf32> to vector<8x32xbf16>
    %178 = arith.truncf %175 : vector<8x256xf32> to vector<8x256xbf16>
    %cst_70 = arith.constant dense<0.000000e+00> : vector<32x256xf32>
    %179 = tpu.matmul %177, %178, %cst_70 {dimension_numbers = #tpu.dot_dimension_numbers<[0], [0], [1], [1], [0, 1, 1, 1], [], []>} : vector<8x32xbf16>, vector<8x256xbf16>, vector<32x256xf32> -> vector<32x256xf32>
    %180 = arith.addf %138, %179 : vector<32x256xf32>
    %c0_71 = arith.constant 0 : index
    %c0_72 = arith.constant 0 : index
    %c0_73 = arith.constant 0 : index
    %181 = vector.load %arg6[%c0_71, %c0_72, %c0_73] : memref<1x32x256xf32, #tpu.memory_space<vmem>>, vector<1x32x256xf32>
    %182 = vector.shape_cast %181 : vector<1x32x256xf32> to vector<32x256xf32>
    %183 = vector.shape_cast %180 : vector<32x256xf32> to vector<1x32x256xf32>
    tpu.vector_store %arg6[%c0_71, %c0_72, %c0_73], %183 {strides = array<i32>} : memref<1x32x256xf32, #tpu.memory_space<vmem>>, vector<1x32x256xf32>,
    return
  }
  func.func @transform_0(%arg0: i32) -> (i32, i32, i32) {
    %c0_i32 = arith.constant 0 : i32
    %c0_i32_0 = arith.constant 0 : i32
    %c0_i32_1 = arith.constant 0 : i32
    return %arg0, %c0_i32, %c0_i32_0 : i32, i32, i32
  }
  func.func @transform_1(%arg0: i32) -> (i32, i32) {
    %c0_i32 = arith.constant 0 : i32
    %c0_i32_0 = arith.constant 0 : i32
    %c0_i32_1 = arith.constant 0 : i32
    return %c0_i32, %c0_i32_0 : i32, i32
  }
  func.func @transform_2(%arg0: i32) -> (i32, i32) {
    %c0_i32 = arith.constant 0 : i32
    %c0_i32_0 = arith.constant 0 : i32
    %c0_i32_1 = arith.constant 0 : i32
    return %c0_i32, %c0_i32_0 : i32, i32
  }
  func.func @transform_3(%arg0: i32) -> (i32, i32) {
    %c0_i32 = arith.constant 0 : i32
    %c0_i32_0 = arith.constant 0 : i32
    %c0_i32_1 = arith.constant 0 : i32
    return %c0_i32, %c0_i32_0 : i32, i32
  }
  func.func @transform_4(%arg0: i32) -> (i32, i32) {
    %c0_i32 = arith.constant 0 : i32
    %c0_i32_0 = arith.constant 0 : i32
    %c0_i32_1 = arith.constant 0 : i32
    return %c0_i32, %c0_i32_0 : i32, i32
  }
  func.func @transform_5(%arg0: i32) -> (i32, i32, i32) {
    %c0_i32 = arith.constant 0 : i32
    %c0_i32_0 = arith.constant 0 : i32
    %c0_i32_1 = arith.constant 0 : i32
    return %arg0, %c0_i32, %c0_i32_0 : i32, i32, i32
  }
}

</mosaic_0001>

<llo_original>
// kernel: tpu_custom_call.1
$region0: #{tpu_custom_call.1}
  #allocation0 [shape = 'u32[]', space=smem, size = 0x4, offset = 0x4, fixed_abs, tag = 'smem constant byte address 0x4 - core index']
  #allocation1 [shape = 'u32[144,128]{1,0:T(1,128)}', space=vmem, size = 0x12000, scoped, tag = 'internal scratch']
  #allocation2 [shape = 'f32[96,256]{1,0:T(8,128)}', space=vmem, size = 0x18000, scoped, tag = 'scratch operand']
  %s0 = inlined_call_operand.vmem [shape: f32[2,32,256], index: 0, kind: input, shape index: {}]
  %s1 = inlined_call_operand.vmem [shape: f32[96,32], index: 1, kind: input, shape index: {}]
  %s2 = inlined_call_operand.vmem [shape: f32[96,1], index: 2, kind: input, shape index: {}]
  %s3 = inlined_call_operand.vmem [shape: f32[32,32], index: 3, kind: input, shape index: {}]
  %s4 = inlined_call_operand.vmem [shape: f32[32,1], index: 4, kind: input, shape index: {}]
  %s5 = inlined_call_operand.hbm [shape: f32[2,32,256], index: 5, kind: output, shape index: {}]
  %s6 = sld [smem:[#allocation0]]
  $region53: #{tpu_custom_call.1} parent=0
    _
  %s8 = ssub.s32 1, %s6
  %s9 = scalar_select 0, %s8, %s6
  $region1: #{tpu_custom_call.1} parent=0
    #allocation3 [shape = 'u8[65536]{0}', space=vmem, size = 0x10000, scoped, tag = 'output window, operand 0']
    #allocation4 [shape = 's32[2]{0}', space=sflag, size = 0x8, scoped, tag = 'scoped memory for tpu_custom_call.1']
    %10 = vsyncpa [#allocation4], 0
    %s11 = scalar_lea.sflag [#allocation4], 1
    %12 = vsyncpa %s11, 0
    loop: start=0, step=1, limit=4
    $region2: #{tpu_custom_call.1} parent=1 // loop_pre_header
      _
    $region3: #{tpu_custom_call.1} parent=1 // loop_header
      %s14 = sphi 0, %s18
      %p15 = scmp.ge.s32.totalorder %s14, 4
      %s24 = sphi 0, %s26
      %s27 = sphi 0, %s24
      %s28 = sphi 0, %s27
      %s44 = sphi 0, %s28
      %s48 = sphi 0, %s48
      %s50 = sphi 0, %s48
      %s51 = sphi 0, %s50
      %s65 = sphi 0, %s51
      %s69 = sphi 0, %s69
      %s71 = sphi 0, %s69
      %s72 = sphi 0, %s71
      %s86 = sphi 0, %s72
      %s90 = sphi 0, %s90
      %s92 = sphi 0, %s90
      %s93 = sphi 0, %s92
      %s107 = sphi 0, %s93
      %s111 = sphi 0, %s111
      %s113 = sphi 0, %s111
      %s114 = sphi 0, %s113
      %s128 = sphi 0, %s114
      %s134 = sphi 0, %s136
      %s137 = sphi 0, %s134
      %s138 = sphi 0, %s137
      %s154 = sphi 0, %s138
    $region4: #{tpu_custom_call.1} parent=1 // loop_header_branch
      %17 = sbr.rel (%p15) target = $region8
    $region5: #{tpu_custom_call.1} parent=1 // loop_body
      %s19 = ssub.s32 %s14, 1
      %s20 = ssub.s32 %s14, 2
      %s21 = sadd.s32 %s14, 1
      %s22 = ssub.s32 %s14, %s21
      %p23 = scmp.eq.s32.totalorder %s22, 0
      %s25 = sadd.s32 %s24, 1
      %s26 = scalar_select %p23, %s24, %s25
      %p29 = pneg %p23
      %p30 = scmp.eq.s32.totalorder %s14, 1
      %p31 = por %p29, %p30
      %p32 = scmp.ne.s32.totalorder %s24, %s27
      %p33 = scmp.eq.s32.totalorder %s14, 0
      %p34 = por %p32, %p33
      %p35 = scmp.ne.s32.totalorder %s24, %s27
      %p36 = scmp.eq.s32.totalorder %s19, 1
      %p37 = por %p35, %p36
      %p38 = scmp.ne.s32.totalorder %s27, %s28
      %p39 = scmp.eq.s32.totalorder %s19, 0
      %p40 = por %p38, %p39
      %p41 = scmp.ne.s32.totalorder %s27, %s28
      %p42 = scmp.eq.s32.totalorder %s20, 1
      %p43 = por %p41, %p42
      %p45 = scmp.ne.s32.totalorder %s28, %s44
      %p46 = scmp.eq.s32.totalorder %s20, 0
      %p47 = por %p45, %p46
      %s49 = sadd.s32 %s48, 1
      %p52 = scmp.eq.s32.totalorder %s14, 1
      %p53 = scmp.ne.s32.totalorder %s48, %s50
      %p54 = scmp.eq.s32.totalorder %s14, 0
      %p55 = por %p53, %p54
      %p56 = scmp.ne.s32.totalorder %s48, %s50
      %p57 = scmp.eq.s32.totalorder %s19, 1
      %p58 = por %p56, %p57
      %p59 = scmp.ne.s32.totalorder %s50, %s51
      %p60 = scmp.eq.s32.totalorder %s19, 0
      %p61 = por %p59, %p60
      %p62 = scmp.ne.s32.totalorder %s50, %s51
      %p63 = scmp.eq.s32.totalorder %s20, 1
      %p64 = por %p62, %p63
      %p66 = scmp.ne.s32.totalorder %s51, %s65
      %p67 = scmp.eq.s32.totalorder %s20, 0
      %p68 = por %p66, %p67
      %s70 = sadd.s32 %s69, 1
      %p73 = scmp.eq.s32.totalorder %s14, 1
      %p74 = scmp.ne.s32.totalorder %s69, %s71
      %p75 = scmp.eq.s32.totalorder %s14, 0
      %p76 = por %p74, %p75
      %p77 = scmp.ne.s32.totalorder %s69, %s71
      %p78 = scmp.eq.s32.totalorder %s19, 1
      %p79 = por %p77, %p78
      %p80 = scmp.ne.s32.totalorder %s71, %s72
      %p81 = scmp.eq.s32.totalorder %s19, 0
      %p82 = por %p80, %p81
      %p83 = scmp.ne.s32.totalorder %s71, %s72
      %p84 = scmp.eq.s32.totalorder %s20, 1
      %p85 = por %p83, %p84
      %p87 = scmp.ne.s32.totalorder %s72, %s86
      %p88 = scmp.eq.s32.totalorder %s20, 0
      %p89 = por %p87, %p88
      %s91 = sadd.s32 %s90, 1
      %p94 = scmp.eq.s32.totalorder %s14, 1
      %p95 = scmp.ne.s32.totalorder %s90, %s92
      %p96 = scmp.eq.s32.totalorder %s14, 0
      %p97 = por %p95, %p96
      %p98 = scmp.ne.s32.totalorder %s90, %s92
      %p99 = scmp.eq.s32.totalorder %s19, 1
      %p100 = por %p98, %p99
      %p101 = scmp.ne.s32.totalorder %s92, %s93
      %p102 = scmp.eq.s32.totalorder %s19, 0
      %p103 = por %p101, %p102
      %p104 = scmp.ne.s32.totalorder %s92, %s93
      %p105 = scmp.eq.s32.totalorder %s20, 1
      %p106 = por %p104, %p105
      %p108 = scmp.ne.s32.totalorder %s93, %s107
      %p109 = scmp.eq.s32.totalorder %s20, 0
      %p110 = por %p108, %p109
      %s112 = sadd.s32 %s111, 1
      %p115 = scmp.eq.s32.totalorder %s14, 1
      %p116 = scmp.ne.s32.totalorder %s111, %s113
      %p117 = scmp.eq.s32.totalorder %s14, 0
      %p118 = por %p116, %p117
      %p119 = scmp.ne.s32.totalorder %s111, %s113
      %p120 = scmp.eq.s32.totalorder %s19, 1
      %p121 = por %p119, %p120
      %p122 = scmp.ne.s32.totalorder %s113, %s114
      %p123 = scmp.eq.s32.totalorder %s19, 0
      %p124 = por %p122, %p123
      %p125 = scmp.ne.s32.totalorder %s113, %s114
      %p126 = scmp.eq.s32.totalorder %s20, 1
      %p127 = por %p125, %p126
      %p129 = scmp.ne.s32.totalorder %s114, %s128
      %p130 = scmp.eq.s32.totalorder %s20, 0
      %p131 = por %p129, %p130
      %s132 = ssub.s32 %s14, %s21
      %p133 = scmp.eq.s32.totalorder %s132, 0
      %s135 = sadd.s32 %s134, 1
      %s136 = scalar_select %p133, %s134, %s135
      %p139 = pneg %p133
      %p140 = scmp.eq.s32.totalorder %s14, 1
      %p141 = por %p139, %p140
      %p142 = scmp.ne.s32.totalorder %s134, %s137
      %p143 = scmp.eq.s32.totalorder %s14, 0
      %p144 = por %p142, %p143
      %p145 = scmp.ne.s32.totalorder %s134, %s137
      %p146 = scmp.eq.s32.totalorder %s19, 1
      %p147 = por %p145, %p146
      %p148 = scmp.ne.s32.totalorder %s137, %s138
      %p149 = scmp.eq.s32.totalorder %s19, 0
      %p150 = por %p148, %p149
      %p151 = scmp.ne.s32.totalorder %s137, %s138
      %p152 = scmp.eq.s32.totalorder %s20, 1
      %p153 = por %p151, %p152
      %p155 = scmp.ne.s32.totalorder %s138, %s154
      %p156 = scmp.eq.s32.totalorder %s20, 0
      %p157 = por %p155, %p156
      %p158 = scmp.le.s32.totalorder 1, %s14
      %p159 = scmp.lt.s32.totalorder %s14, 3
      %p160 = pnand %p158, %p159
      %p161 = pneg %p160
      // Predicated region
      $region9: #{tpu_custom_call.1} parent=5 // pred_check
        _
      $region10: #{tpu_custom_call.1} parent=5 // pred_check_branch
        %163 = sbr.rel (%p160) target = $region12
      $region11: #{tpu_custom_call.1} parent=5 // pred_region
        %s164 = ssub.s32 %s14, 1
        // Predicated region
        $region13: #{tpu_custom_call.1} parent=11 // pred_check
          %p165 = pneg %p61
        $region14: #{tpu_custom_call.1} parent=11 // pred_check_branch
          %167 = sbr.rel (%p165) target = $region16
        $region15: #{tpu_custom_call.1} parent=11 // pred_region
          _
        $region16: #{tpu_custom_call.1} parent=11 // pred_fallthru
          _
        // Predicated region
        $region17: #{tpu_custom_call.1} parent=11 // pred_check
          %p168 = pneg %p82
        $region18: #{tpu_custom_call.1} parent=11 // pred_check_branch
          %170 = sbr.rel (%p168) target = $region20
        $region19: #{tpu_custom_call.1} parent=11 // pred_region
          _
        $region20: #{tpu_custom_call.1} parent=11 // pred_fallthru
          _
        // Predicated region
        $region21: #{tpu_custom_call.1} parent=11 // pred_check
          %p171 = pneg %p103
        $region22: #{tpu_custom_call.1} parent=11 // pred_check_branch
          %173 = sbr.rel (%p171) target = $region24
        $region23: #{tpu_custom_call.1} parent=11 // pred_region
          _
        $region24: #{tpu_custom_call.1} parent=11 // pred_fallthru
          _
        // Predicated region
        $region25: #{tpu_custom_call.1} parent=11 // pred_check
          %p174 = pneg %p124
        $region26: #{tpu_custom_call.1} parent=11 // pred_check_branch
          %176 = sbr.rel (%p174) target = $region28
        $region27: #{tpu_custom_call.1} parent=11 // pred_region
          _
        $region28: #{tpu_custom_call.1} parent=11 // pred_fallthru
          _
      $region12: #{tpu_custom_call.1} parent=5 // pred_fallthru
        _
      %p177 = scmp.lt.s32.totalorder %s14, 2
      // Predicated region
      $region29: #{tpu_custom_call.1} parent=5 // pred_check
        %p178 = pneg %p177
      $region30: #{tpu_custom_call.1} parent=5 // pred_check_branch
        %180 = sbr.rel (%p178) target = $region32
      $region31: #{tpu_custom_call.1} parent=5 // pred_region
        // Predicated region
        $region33: #{tpu_custom_call.1} parent=31 // pred_check
          %p181 = pneg %p34
        $region34: #{tpu_custom_call.1} parent=31 // pred_check_branch
          %183 = sbr.rel (%p181) target = $region36
        $region35: #{tpu_custom_call.1} parent=31 // pred_region
          %p184 = scmp.lt.s32.totalorder %s14, 1
          %s185 = scalar_select %p184, %s14, 1
          %s186 = smul.addr %s185, 8
          %s187 = smul.addr %s186, 8
          %s188 = scalar_lea.vmem %s0, %s187
        $region36: #{tpu_custom_call.1} parent=31 // pred_fallthru
          _
      $region32: #{tpu_custom_call.1} parent=5 // pred_fallthru
        _
      %p189 = scmp.le.s32.totalorder 1, %s14
      %p190 = scmp.lt.s32.totalorder %s14, 3
      %p191 = pnand %p189, %p190
      %p192 = pneg %p191
      // Predicated region
      $region37: #{tpu_custom_call.1} parent=5 // pred_check
        _
      $region38: #{tpu_custom_call.1} parent=5 // pred_check_branch
        %194 = sbr.rel (%p191) target = $region40
      $region39: #{tpu_custom_call.1} parent=5 // pred_region
        %s195 = ssub.s32 %s14, 1
        %p196 = scmp.lt.s32.totalorder %s19, 1
        %s197 = scalar_select %p196, %s19, 1
        %s198 = smul.addr %s197, 8
        %s199 = smul.addr %s198, 8
        %s200 = scalar_lea.vmem %s0, %s199
        %p201 = pneg %p40
        %p202 = pneg %p37
        %p203 = pneg %p61
        %p204 = pneg %p58
        %p205 = pneg %p82
        %p206 = pneg %p79
        %p207 = pneg %p103
        %p208 = pneg %p100
        %p209 = pneg %p124
        %p210 = pneg %p121
        %p211 = pneg %p150
        %p212 = pneg %p147
        %s213 = sand.u32 %s137, 1
        %s214 = scalar_lea.sflag [#allocation4], %s213
        %s215 = sand.u32 %s137, 1
        %s216 = smul.addr %s215, 64
        %s217 = scalar_lea.vmem [#allocation3], %s216
        %p218 = scmp.lt.s32.totalorder %s19, 1
        %s219 = scalar_select %p218, %s19, 1
        %s220 = smul.addr %s219, 8
        %s221 = smul.addr %s220, 8
        %s222 = scalar_lea.vmem %s0, %s221
        %v224 = vld [vmem:[%s1] sm:$0xff]
        %v225 = vld [vmem:[%s1 + $0x8] sm:$0xff]
        %v226 = vld [vmem:[%s1 + $0x10] sm:$0xff]
        %v227 = vld [vmem:[%s1 + $0x18] sm:$0xff]
        %v228 = vld [vmem:[%s1 + $0x20] sm:$0xff]
        %v229 = vld [vmem:[%s1 + $0x28] sm:$0xff]
        %v230 = vld [vmem:[%s1 + $0x30] sm:$0xff]
        %v231 = vld [vmem:[%s1 + $0x38] sm:$0xff]
        %v232 = vld [vmem:[%s1 + $0x40] sm:$0xff]
        %v233 = vld [vmem:[%s1 + $0x48] sm:$0xff]
        %v234 = vld [vmem:[%s1 + $0x50] sm:$0xff]
        %v235 = vld [vmem:[%s1 + $0x58] sm:$0xff]
        %v236 = vpack.c.bf16 %v225, %v224
        %v237 = vpack.c.bf16 %v227, %v226
        %v238 = vpack.c.bf16 %v229, %v228
        %v239 = vpack.c.bf16 %v231, %v230
        %v240 = vpack.c.bf16 %v233, %v232
        %v241 = vpack.c.bf16 %v235, %v234
        %v242 = vld [vmem:[%s2] sm:$0xff]
        %v243 = vld [vmem:[%s2 + $0x8] sm:$0xff]
        %v244 = vld [vmem:[%s2 + $0x10] sm:$0xff]
        %v245 = vld [vmem:[%s2 + $0x18] sm:$0xff]
        %v246 = vld [vmem:[%s2 + $0x20] sm:$0xff]
        %v247 = vld [vmem:[%s2 + $0x28] sm:$0xff]
        %v248 = vld [vmem:[%s2 + $0x30] sm:$0xff]
        %v249 = vld [vmem:[%s2 + $0x38] sm:$0xff]
        %v250 = vld [vmem:[%s2 + $0x40] sm:$0xff]
        %v251 = vld [vmem:[%s2 + $0x48] sm:$0xff]
        %v252 = vld [vmem:[%s2 + $0x50] sm:$0xff]
        %v253 = vld [vmem:[%s2 + $0x58] sm:$0xff]
        %v254 = vld [vmem:[%s4] sm:$0xff]
        %v255 = vld [vmem:[%s4 + $0x8] sm:$0xff]
        %v256 = vld [vmem:[%s4 + $0x10] sm:$0xff]
        %v257 = vld [vmem:[%s4 + $0x18] sm:$0xff]
        %259 = vset.pattern.permute.xlu0 0
        %260 = vperm.xlu0 %259, %v254
        %v261 = vpop.permute.xlu0 %260
        %264 = vset.pattern.permute.xlu0 0
        %265 = vperm.xlu0 %264, %v255
        %v266 = vpop.permute.xlu0 %265
        %269 = vset.pattern.permute.xlu0 0
        %270 = vperm.xlu0 %269, %v256
        %v271 = vpop.permute.xlu0 %270
        %274 = vset.pattern.permute.xlu0 0
        %275 = vperm.xlu0 %274, %v257
        %v276 = vpop.permute.xlu0 %275
        %v278 = vld [vmem:[%s222] sm:$0xff]
        %v279 = vld [vmem:[%s222 + $0x8] sm:$0xff]
        %v280 = vld [vmem:[%s222 + $0x10] sm:$0xff]
        %v281 = vld [vmem:[%s222 + $0x18] sm:$0xff]
        %v282 = vld [vmem:[%s222 + $0x20] sm:$0xff]
        %v283 = vld [vmem:[%s222 + $0x28] sm:$0xff]
        %v284 = vld [vmem:[%s222 + $0x30] sm:$0xff]
        %v285 = vld [vmem:[%s222 + $0x38] sm:$0xff]
        %v286 = vpack.c.bf16 %v280, %v278
        %v287 = vpack.c.bf16 %v281, %v279
        %v288 = vpack.c.bf16 %v284, %v282
        %v289 = vpack.c.bf16 %v285, %v283
        %291 = vset.pattern.permute.xlu0 0
        %292 = vperm.xlu0 %291, %v242
        %v293 = vpop.permute.xlu0 %292
        %296 = vset.pattern.permute.xlu0 0
        %297 = vperm.xlu0 %296, %v243
        %v298 = vpop.permute.xlu0 %297
        %301 = vset.pattern.permute.xlu0 0
        %302 = vperm.xlu0 %301, %v244
        %v303 = vpop.permute.xlu0 %302
        %306 = vset.pattern.permute.xlu0 0
        %307 = vperm.xlu0 %306, %v245
        %v308 = vpop.permute.xlu0 %307
        %311 = vset.pattern.permute.xlu0 0
        %312 = vperm.xlu0 %311, %v246
        %v313 = vpop.permute.xlu0 %312
        %316 = vset.pattern.permute.xlu0 0
        %317 = vperm.xlu0 %316, %v247
        %v318 = vpop.permute.xlu0 %317
        %321 = vset.pattern.permute.xlu0 0
        %322 = vperm.xlu0 %321, %v248
        %v323 = vpop.permute.xlu0 %322
        %326 = vset.pattern.permute.xlu0 0
        %327 = vperm.xlu0 %326, %v249
        %v328 = vpop.permute.xlu0 %327
        %331 = vset.pattern.permute.xlu0 0
        %332 = vperm.xlu0 %331, %v250
        %v333 = vpop.permute.xlu0 %332
        %336 = vset.pattern.permute.xlu0 0
        %337 = vperm.xlu0 %336, %v251
        %v338 = vpop.permute.xlu0 %337
        %341 = vset.pattern.permute.xlu0 0
        %342 = vperm.xlu0 %341, %v252
        %v343 = vpop.permute.xlu0 %342
        %346 = vset.pattern.permute.xlu0 0
        %347 = vperm.xlu0 %346, %v253
        %v348 = vpop.permute.xlu0 %347
        %vm350 = vcmask 261120
        %v352 = vsel %vm350, %v236, 0
        %v355 = vsel %vm350, %v237, 0
        %v358 = vsel %vm350, %v238, 0
        %v361 = vsel %vm350, %v239, 0
        %v364 = vsel %vm350, %v240, 0
        %v367 = vsel %vm350, %v241, 0
        %369 = vmatprep.subr.bf16.mxu0 %v287
        %370 = vmatpush1.bf16.msra.mxu0 %v286
        %371 = vmatprep.subr.bf16.mxu0 %v289
        %372 = vmatpush1.bf16.msra.mxu0 %v288
        %373 = vmatprep.subr.bf16.mxu0 0
        %374 = vmatpush1.bf16.msra.mxu0 0
        %375 = vmatprep.subr.bf16.mxu0 0
        %376 = vmatpush1.bf16.msra.mxu0 0
        %377 = vmatprep.subr.bf16.mxu0 0
        %378 = vmatpush1.bf16.msra.mxu0 0
        %379 = vmatprep.subr.bf16.mxu0 0
        %380 = vmatpush1.bf16.msra.mxu0 0
        %381 = vmatprep.subr.bf16.mxu0 0
        %382 = vmatpush1.bf16.msra.mxu0 0
        %383 = vmatprep.subr.bf16.mxu0 0
        %384 = vmatpush1.bf16.msra.mxu0 0
        %385 = vmatprep.subr.bf16.mxu0 0
        %386 = vmatpush1.bf16.msra.mxu0 0
        %387 = vmatprep.subr.bf16.mxu0 0
        %388 = vmatpush1.bf16.msra.mxu0 0
        %389 = vmatprep.subr.bf16.mxu0 0
        %390 = vmatpush1.bf16.msra.mxu0 0
        %391 = vmatprep.subr.bf16.mxu0 0
        %392 = vmatpush1.bf16.msra.mxu0 0
        %393 = vmatprep.subr.bf16.mxu0 0
        %394 = vmatpush1.bf16.msra.mxu0 0
        %395 = vmatprep.subr.bf16.mxu0 0
        %396 = vmatpush1.bf16.msra.mxu0 0
        %397 = vmatprep.subr.bf16.mxu0 0
        %398 = vmatpush1.bf16.msra.mxu0 0
        %399 = vmatprep.subr.bf16.mxu0 0
        %400 = vmatpush1.bf16.msra.mxu0 0
        %401 = vmatprep.mubr.bf16.mxu0 0
        %402 = vmatmul.mubr.bf16.gmra.mrb[0].mxu0 %v352
        %v403 = vpop.f32.mrb[0].mxu0
        %v404 = vadd.f32 %v293, %v403
        %v405 = vpop.f32.mrb[0].mxu0
        %v406 = vadd.f32 %v293, %v405
        %v407 = vpop.f32.mrb[0].mxu0
        %v408 = vadd.f32 %v298, %v407
        %v409 = vpop.f32.mrb[0].mxu0
        %v410 = vadd.f32 %v298, %v409
        %411 = vmatprep.mubr.bf16.mxu0 0
        %412 = vmatmul.mubr.bf16.gmra.mrb[0].mxu0 %v355
        %v413 = vpop.f32.mrb[0].mxu0
        %v414 = vadd.f32 %v303, %v413
        %v415 = vpop.f32.mrb[0].mxu0
        %v416 = vadd.f32 %v303, %v415
        %v417 = vpop.f32.mrb[0].mxu0
        %v418 = vadd.f32 %v308, %v417
        %v419 = vpop.f32.mrb[0].mxu0
        %v420 = vadd.f32 %v308, %v419
        %421 = vmatprep.mubr.bf16.mxu0 0
        %422 = vmatmul.mubr.bf16.gmra.mrb[0].mxu0 %v358
        %v423 = vpop.f32.mrb[0].mxu0
        %v424 = vadd.f32 %v313, %v423
        %v425 = vpop.f32.mrb[0].mxu0
        %v426 = vadd.f32 %v313, %v425
        %v427 = vpop.f32.mrb[0].mxu0
        %v428 = vadd.f32 %v318, %v427
        %v429 = vpop.f32.mrb[0].mxu0
        %v430 = vadd.f32 %v318, %v429
        %431 = vmatprep.mubr.bf16.mxu0 0
        %432 = vmatmul.mubr.bf16.gmra.mrb[0].mxu0 %v361
        %v433 = vpop.f32.mrb[0].mxu0
        %v434 = vadd.f32 %v323, %v433
        %v435 = vpop.f32.mrb[0].mxu0
        %v436 = vadd.f32 %v323, %v435
        %v437 = vpop.f32.mrb[0].mxu0
        %v438 = vadd.f32 %v328, %v437
        %v439 = vpop.f32.mrb[0].mxu0
        %v440 = vadd.f32 %v328, %v439
        %441 = vmatprep.mubr.bf16.mxu0 0
        %442 = vmatmul.mubr.bf16.gmra.mrb[0].mxu0 %v364
        %v443 = vpop.f32.mrb[0].mxu0
        %v444 = vadd.f32 %v333, %v443
        %v445 = vpop.f32.mrb[0].mxu0
        %v446 = vadd.f32 %v333, %v445
        %v447 = vpop.f32.mrb[0].mxu0
        %v448 = vadd.f32 %v338, %v447
        %v449 = vpop.f32.mrb[0].mxu0
        %v450 = vadd.f32 %v338, %v449
        %451 = vmatprep.mubr.bf16.mxu0 0
        %452 = vmatmul.mubr.bf16.gmra.mrb[0].mxu0 %v367
        %v453 = vpop.f32.mrb[0].mxu0
        %v454 = vadd.f32 %v343, %v453
        %v455 = vpop.f32.mrb[0].mxu0
        %v456 = vadd.f32 %v343, %v455
        %v457 = vpop.f32.mrb[0].mxu0
        %v458 = vadd.f32 %v348, %v457
        %v459 = vpop.f32.mrb[0].mxu0
        %v460 = vadd.f32 %v348, %v459
        %461 = vdwg.mxu0
        %462 = vst [vmem:[#allocation2] sm:$0xff] %v404
        %463 = vst [vmem:[#allocation2 + $0x8] sm:$0xff] %v406
        %464 = vst [vmem:[#allocation2 + $0x10] sm:$0xff] %v408
        %465 = vst [vmem:[#allocation2 + $0x18] sm:$0xff] %v410
        %466 = vst [vmem:[#allocation2 + $0x20] sm:$0xff] %v414
        %467 = vst [vmem:[#allocation2 + $0x28] sm:$0xff] %v416
        %468 = vst [vmem:[#allocation2 + $0x30] sm:$0xff] %v418
        %469 = vst [vmem:[#allocation2 + $0x38] sm:$0xff] %v420
        %470 = vst [vmem:[#allocation2 + $0x40] sm:$0xff] %v424
        %471 = vst [vmem:[#allocation2 + $0x48] sm:$0xff] %v426
        %472 = vst [vmem:[#allocation2 + $0x50] sm:$0xff] %v428
        %473 = vst [vmem:[#allocation2 + $0x58] sm:$0xff] %v430
        %474 = vst [vmem:[#allocation2 + $0x60] sm:$0xff] %v434
        %475 = vst [vmem:[#allocation2 + $0x68] sm:$0xff] %v436
        %476 = vst [vmem:[#allocation2 + $0x70] sm:$0xff] %v438
        %477 = vst [vmem:[#allocation2 + $0x78] sm:$0xff] %v440
        %478 = vst [vmem:[#allocation2 + $0x80] sm:$0xff] %v444
        %479 = vst [vmem:[#allocation2 + $0x88] sm:$0xff] %v446
        %480 = vst [vmem:[#allocation2 + $0x90] sm:$0xff] %v448
        %481 = vst [vmem:[#allocation2 + $0x98] sm:$0xff] %v450
        %482 = vst [vmem:[#allocation2 + $0xa0] sm:$0xff] %v454
        %483 = vst [vmem:[#allocation2 + $0xa8] sm:$0xff] %v456
        %484 = vst [vmem:[#allocation2 + $0xb0] sm:$0xff] %v458
        %485 = vst [vmem:[#allocation2 + $0xb8] sm:$0xff] %v460
        %v486 = vld [vmem:[#allocation2] sm:$0xff]
        %v487 = vld [vmem:[#allocation2 + $0x8] sm:$0xff]
        %v488 = vmul.f32 %v486, 0.35355338
        %v489 = vmul.f32 %v487, 0.35355338
        %v490 = vpack.c.bf16 %v488, %v488
        %v491 = vpack.c.bf16 %v489, %v489
        %v492 = vld [vmem:[#allocation2 + $0x40] sm:$0xff]
        %v493 = vld [vmem:[#allocation2 + $0x48] sm:$0xff]
        %v494 = vpack.c.bf16 %v492, %v492
        %v495 = vpack.c.bf16 %v493, %v493
        %v496 = vld [vmem:[#allocation2 + $0x80] sm:$0xff]
        %v497 = vld [vmem:[#allocation2 + $0x88] sm:$0xff]
        %v498 = vpack.c.bf16 %v496, %v496
        %v499 = vpack.c.bf16 %v497, %v497
        %500 = vxpose.xlu0.c.b16.start [1/8] %v494, 128
        %501 = vxpose.xlu0.c.b16.cont [2/8] 0, 128
        %502 = vxpose.xlu0.c.b16.cont [3/8] 0, 128
        %503 = vxpose.xlu0.c.b16.cont [4/8] 0, 128
        %504 = vxpose.xlu0.c.b16.cont [5/8] 0, 128
        %505 = vxpose.xlu0.c.b16.cont [6/8] 0, 128
        %506 = vxpose.xlu0.c.b16.cont [7/8] 0, 128
        %507 = vxpose.xlu0.c.b16.end [8/8] 0, 128
        %v508 = vpop.trf.xlu0
        %v509 = vpop.trf.xlu0
        %v510 = vpop.trf.xlu0
        %v511 = vpop.trf.xlu0
        %v512 = vpop.trf.xlu0
        %v513 = vpop.trf.xlu0
        %v514 = vpop.trf.xlu0
        %v515 = vpop.trf.xlu0
        %516 = vxpose.xlu0.c.b16.start [1/8] %v495, 128
        %517 = vxpose.xlu0.c.b16.cont [2/8] 0, 128
        %518 = vxpose.xlu0.c.b16.cont [3/8] 0, 128
        %519 = vxpose.xlu0.c.b16.cont [4/8] 0, 128
        %520 = vxpose.xlu0.c.b16.cont [5/8] 0, 128
        %521 = vxpose.xlu0.c.b16.cont [6/8] 0, 128
        %522 = vxpose.xlu0.c.b16.cont [7/8] 0, 128
        %523 = vxpose.xlu0.c.b16.end [8/8] 0, 128
        %v524 = vpop.trf.xlu0
        %v525 = vpop.trf.xlu0
        %v526 = vpop.trf.xlu0
        %v527 = vpop.trf.xlu0
        %v528 = vpop.trf.xlu0
        %v529 = vpop.trf.xlu0
        %v530 = vpop.trf.xlu0
        %v531 = vpop.trf.xlu0
        %vm532 = vcmask 64512
        %v534 = vsel %vm532, %v508, 0
        %v537 = vsel %vm532, %v509, 0
        %v540 = vsel %vm532, %v510, 0
        %v543 = vsel %vm532, %v511, 0
        %v546 = vsel %vm532, %v512, 0
        %v549 = vsel %vm532, %v513, 0
        %v552 = vsel %vm532, %v514, 0
        %v555 = vsel %vm532, %v515, 0
        %v558 = vsel %vm532, %v524, 0
        %v561 = vsel %vm532, %v525, 0
        %v564 = vsel %vm532, %v526, 0
        %v567 = vsel %vm532, %v527, 0
        %v570 = vsel %vm532, %v528, 0
        %v573 = vsel %vm532, %v529, 0
        %v576 = vsel %vm532, %v530, 0
        %v579 = vsel %vm532, %v531, 0
        %vm581 = vcmask 1043456
        %v583 = vsel %vm581, %v490, 0
        %585 = vmatprep.subr.bf16.mxu0 0
        %586 = vmatpush1.bf16.msra.mxu0 %v583
        %587 = vmatprep.subr.bf16.mxu0 0
        %588 = vmatpush1.bf16.msra.mxu0 0
        %589 = vmatprep.subr.bf16.mxu0 0
        %590 = vmatpush1.bf16.msra.mxu0 0
        %591 = vmatprep.subr.bf16.mxu0 0
        %592 = vmatpush1.bf16.msra.mxu0 0
        %593 = vmatprep.subr.bf16.mxu0 0
        %594 = vmatpush1.bf16.msra.mxu0 0
        %595 = vmatprep.subr.bf16.mxu0 0
        %596 = vmatpush1.bf16.msra.mxu0 0
        %597 = vmatprep.subr.bf16.mxu0 0
        %598 = vmatpush1.bf16.msra.mxu0 0
        %599 = vmatprep.subr.bf16.mxu0 0
        %600 = vmatpush1.bf16.msra.mxu0 0
        %601 = vmatprep.subr.bf16.mxu0 0
        %602 = vmatpush1.bf16.msra.mxu0 0
        %603 = vmatprep.subr.bf16.mxu0 0
        %604 = vmatpush1.bf16.msra.mxu0 0
        %605 = vmatprep.subr.bf16.mxu0 0
        %606 = vmatpush1.bf16.msra.mxu0 0
        %607 = vmatprep.subr.bf16.mxu0 0
        %608 = vmatpush1.bf16.msra.mxu0 0
        %609 = vmatprep.subr.bf16.mxu0 0
        %610 = vmatpush1.bf16.msra.mxu0 0
        %611 = vmatprep.subr.bf16.mxu0 0
        %612 = vmatpush1.bf16.msra.mxu0 0
        %613 = vmatprep.subr.bf16.mxu0 0
        %614 = vmatpush1.bf16.msra.mxu0 0
        %615 = vmatprep.subr.bf16.mxu0 0
        %616 = vmatpush1.bf16.msra.mxu0 0
        %617 = vmatprep.mubr.bf16.mxu0 0
        %618 = vmatmul.mubr.bf16.gmra.mrb[0].mxu0 %v534
        %v619 = vpop.f32.mrb[0].mxu0
        %v620 = vadd.f32 0.0, %v619
        %v621 = vpop.f32.mrb[0].mxu0
        %v622 = vpop.f32.mrb[0].mxu0
        %v623 = vadd.f32 0.0, %v622
        %v624 = vpop.f32.mrb[0].mxu0
        %625 = vmatprep.mubr.bf16.mxu0 0
        %626 = vmatmul.mubr.bf16.gmra.mrb[0].mxu0 %v537
        %v627 = vpop.f32.mrb[0].mxu0
        %v628 = vadd.f32 0.0, %v627
        %v629 = vpop.f32.mrb[0].mxu0
        %v630 = vpop.f32.mrb[0].mxu0
        %v631 = vadd.f32 0.0, %v630
        %v632 = vpop.f32.mrb[0].mxu0
        %633 = vmatprep.mubr.bf16.mxu0 0
        %634 = vmatmul.mubr.bf16.gmra.mrb[0].mxu0 %v540
        %v635 = vpop.f32.mrb[0].mxu0
        %v636 = vadd.f32 0.0, %v635
        %v637 = vpop.f32.mrb[0].mxu0
        %v638 = vpop.f32.mrb[0].mxu0
        %v639 = vadd.f32 0.0, %v638
        %v640 = vpop.f32.mrb[0].mxu0
        %641 = vmatprep.mubr.bf16.mxu0 0
        %642 = vmatmul.mubr.bf16.gmra.mrb[0].mxu0 %v543
        %v643 = vpop.f32.mrb[0].mxu0
        %v644 = vadd.f32 0.0, %v643
        %v645 = vpop.f32.mrb[0].mxu0
        %v646 = vpop.f32.mrb[0].mxu0
        %v647 = vadd.f32 0.0, %v646
        %v648 = vpop.f32.mrb[0].mxu0
        %649 = vmatprep.mubr.bf16.mxu0 0
        %650 = vmatmul.mubr.bf16.gmra.mrb[0].mxu0 %v546
        %v651 = vpop.f32.mrb[0].mxu0
        %v652 = vadd.f32 0.0, %v651
        %v653 = vpop.f32.mrb[0].mxu0
        %v654 = vpop.f32.mrb[0].mxu0
        %v655 = vadd.f32 0.0, %v654
        %v656 = vpop.f32.mrb[0].mxu0
        %657 = vmatprep.mubr.bf16.mxu0 0
        %658 = vmatmul.mubr.bf16.gmra.mrb[0].mxu0 %v549
        %v659 = vpop.f32.mrb[0].mxu0
        %v660 = vadd.f32 0.0, %v659
        %v661 = vpop.f32.mrb[0].mxu0
        %v662 = vpop.f32.mrb[0].mxu0
        %v663 = vadd.f32 0.0, %v662
        %v664 = vpop.f32.mrb[0].mxu0
        %665 = vmatprep.mubr.bf16.mxu0 0
        %666 = vmatmul.mubr.bf16.gmra.mrb[0].mxu0 %v552
        %v667 = vpop.f32.mrb[0].mxu0
        %v668 = vadd.f32 0.0, %v667
        %v669 = vpop.f32.mrb[0].mxu0
        %v670 = vpop.f32.mrb[0].mxu0
        %v671 = vadd.f32 0.0, %v670
        %v672 = vpop.f32.mrb[0].mxu0
        %673 = vmatprep.mubr.bf16.mxu0 0
        %674 = vmatmul.mubr.bf16.gmra.mrb[0].mxu0 %v555
        %v675 = vpop.f32.mrb[0].mxu0
        %v676 = vadd.f32 0.0, %v675
        %v677 = vpop.f32.mrb[0].mxu0
        %v678 = vpop.f32.mrb[0].mxu0
        %v679 = vadd.f32 0.0, %v678
        %v680 = vpop.f32.mrb[0].mxu0
        %681 = vmatprep.mubr.bf16.mxu0 0
        %682 = vmatmul.mubr.bf16.gmra.mrb[0].mxu0 %v558
        %v683 = vpop.f32.mrb[0].mxu0
        %v684 = vadd.f32 0.0, %v683
        %v685 = vpop.f32.mrb[0].mxu0
        %v686 = vpop.f32.mrb[0].mxu0
        %v687 = vadd.f32 0.0, %v686
        %v688 = vpop.f32.mrb[0].mxu0
        %689 = vmatprep.mubr.bf16.mxu0 0
        %690 = vmatmul.mubr.bf16.gmra.mrb[0].mxu0 %v561
        %v691 = vpop.f32.mrb[0].mxu0
        %v692 = vadd.f32 0.0, %v691
        %v693 = vpop.f32.mrb[0].mxu0
        %v694 = vpop.f32.mrb[0].mxu0
        %v695 = vadd.f32 0.0, %v694
        %v696 = vpop.f32.mrb[0].mxu0
        %697 = vmatprep.mubr.bf16.mxu0 0
        %698 = vmatmul.mubr.bf16.gmra.mrb[0].mxu0 %v564
        %v699 = vpop.f32.mrb[0].mxu0
        %v700 = vadd.f32 0.0, %v699
        %v701 = vpop.f32.mrb[0].mxu0
        %v702 = vpop.f32.mrb[0].mxu0
        %v703 = vadd.f32 0.0, %v702
        %v704 = vpop.f32.mrb[0].mxu0
        %705 = vmatprep.mubr.bf16.mxu0 0
        %706 = vmatmul.mubr.bf16.gmra.mrb[0].mxu0 %v567
        %v707 = vpop.f32.mrb[0].mxu0
        %v708 = vadd.f32 0.0, %v707
        %v709 = vpop.f32.mrb[0].mxu0
        %v710 = vpop.f32.mrb[0].mxu0
        %v711 = vadd.f32 0.0, %v710
        %v712 = vpop.f32.mrb[0].mxu0
        %713 = vmatprep.mubr.bf16.mxu0 0
        %714 = vmatmul.mubr.bf16.gmra.mrb[0].mxu0 %v570
        %v715 = vpop.f32.mrb[0].mxu0
        %v716 = vadd.f32 0.0, %v715
        %v717 = vpop.f32.mrb[0].mxu0
        %v718 = vpop.f32.mrb[0].mxu0
        %v719 = vadd.f32 0.0, %v718
        %v720 = vpop.f32.mrb[0].mxu0
        %721 = vmatprep.mubr.bf16.mxu0 0
        %722 = vmatmul.mubr.bf16.gmra.mrb[0].mxu0 %v573
        %v723 = vpop.f32.mrb[0].mxu0
        %v724 = vadd.f32 0.0, %v723
        %v725 = vpop.f32.mrb[0].mxu0
        %v726 = vpop.f32.mrb[0].mxu0
        %v727 = vadd.f32 0.0, %v726
        %v728 = vpop.f32.mrb[0].mxu0
        %729 = vmatprep.mubr.bf16.mxu0 0
        %730 = vmatmul.mubr.bf16.gmra.mrb[0].mxu0 %v576
        %v731 = vpop.f32.mrb[0].mxu0
        %v732 = vadd.f32 0.0, %v731
        %v733 = vpop.f32.mrb[0].mxu0
        %v734 = vpop.f32.mrb[0].mxu0
        %v735 = vadd.f32 0.0, %v734
        %v736 = vpop.f32.mrb[0].mxu0
        %737 = vmatprep.mubr.bf16.mxu0 0
        %738 = vmatmul.mubr.bf16.gmra.mrb[0].mxu0 %v579
        %v739 = vpop.f32.mrb[0].mxu0
        %v740 = vadd.f32 0.0, %v739
        %v741 = vpop.f32.mrb[0].mxu0
        %v742 = vpop.f32.mrb[0].mxu0
        %v743 = vadd.f32 0.0, %v742
        %v744 = vpop.f32.mrb[0].mxu0
        %745 = vdwg.mxu0
        %v746 = vmax.f32 %v620, %v636
        %v747 = vmax.f32 %v623, %v639
        %v748 = vmax.f32 %v628, %v644
        %v749 = vmax.f32 %v631, %v647
        %v750 = vmax.f32 %v746, %v652
        %v751 = vmax.f32 %v747, %v655
        %v752 = vmax.f32 %v748, %v660
        %v753 = vmax.f32 %v749, %v663
        %v754 = vmax.f32 %v750, %v668
        %v755 = vmax.f32 %v751, %v671
        %v756 = vmax.f32 %v752, %v676
        %v757 = vmax.f32 %v753, %v679
        %v758 = vmax.f32 %v754, %v684
        %v759 = vmax.f32 %v755, %v687
        %v760 = vmax.f32 %v756, %v692
        %v761 = vmax.f32 %v757, %v695
        %v762 = vmax.f32 %v758, %v700
        %v763 = vmax.f32 %v759, %v703
        %v764 = vmax.f32 %v760, %v708
        %v765 = vmax.f32 %v761, %v711
        %v766 = vmax.f32 %v762, %v716
        %v767 = vmax.f32 %v763, %v719
        %v768 = vmax.f32 %v764, %v724
        %v769 = vmax.f32 %v765, %v727
        %v770 = vmax.f32 %v766, %v732
        %v771 = vmax.f32 %v767, %v735
        %v772 = vmax.f32 %v768, %v740
        %v773 = vmax.f32 %v769, %v743
        %v774 = vmax.f32 %v770, %v771
        %v775 = vmax.f32 %v772, %v773
        %v776 = vmax.f32 %v774, %v775
        %v777 = vrot.slane %v776, 4
        %v778 = vmax.f32 %v776, %v777
        %v779 = vrot.slane %v778, 2
        %v780 = vmax.f32 %v778, %v779
        %v781 = vrot.slane %v780, 1
        %v782 = vmax.f32 %v780, %v781
        %v783 = vsub.f32 %v620, %v782
        %v784 = vsub.f32 %v623, %v782
        %v785 = vsub.f32 %v628, %v782
        %v786 = vsub.f32 %v631, %v782
        %v787 = vsub.f32 %v636, %v782
        %v788 = vsub.f32 %v639, %v782
        %v789 = vsub.f32 %v644, %v782
        %v790 = vsub.f32 %v647, %v782
        %v791 = vsub.f32 %v652, %v782
        %v792 = vsub.f32 %v655, %v782
        %v793 = vsub.f32 %v660, %v782
        %v794 = vsub.f32 %v663, %v782
        %v795 = vsub.f32 %v668, %v782
        %v796 = vsub.f32 %v671, %v782
        %v797 = vsub.f32 %v676, %v782
        %v798 = vsub.f32 %v679, %v782
        %v799 = vsub.f32 %v684, %v782
        %v800 = vsub.f32 %v687, %v782
        %v801 = vsub.f32 %v692, %v782
        %v802 = vsub.f32 %v695, %v782
        %v803 = vsub.f32 %v700, %v782
        %v804 = vsub.f32 %v703, %v782
        %v805 = vsub.f32 %v708, %v782
        %v806 = vsub.f32 %v711, %v782
        %v807 = vsub.f32 %v716, %v782
        %v808 = vsub.f32 %v719, %v782
        %v809 = vsub.f32 %v724, %v782
        %v810 = vsub.f32 %v727, %v782
        %v811 = vsub.f32 %v732, %v782
        %v812 = vsub.f32 %v735, %v782
        %v813 = vsub.f32 %v740, %v782
        %v814 = vsub.f32 %v743, %v782
        %v815 = vmul.f32 %v783, 1.442695
        %v816 = vpow.pop %v815
        %v817 = vmul.f32 %v784, 1.442695
        %v818 = vpow.pop %v817
        %v819 = vmul.f32 %v785, 1.442695
        %v820 = vpow.pop %v819
        %v821 = vmul.f32 %v786, 1.442695
        %v822 = vpow.pop %v821
        %v823 = vmul.f32 %v787, 1.442695
        %v824 = vpow.pop %v823
        %v825 = vmul.f32 %v788, 1.442695
        %v826 = vpow.pop %v825
        %v827 = vmul.f32 %v789, 1.442695
        %v828 = vpow.pop %v827
        %v829 = vmul.f32 %v790, 1.442695
        %v830 = vpow.pop %v829
        %v831 = vmul.f32 %v791, 1.442695
        %v832 = vpow.pop %v831
        %v833 = vmul.f32 %v792, 1.442695
        %v834 = vpow.pop %v833
        %v835 = vmul.f32 %v793, 1.442695
        %v836 = vpow.pop %v835
        %v837 = vmul.f32 %v794, 1.442695
        %v838 = vpow.pop %v837
        %v839 = vmul.f32 %v795, 1.442695
        %v840 = vpow.pop %v839
        %v841 = vmul.f32 %v796, 1.442695
        %v842 = vpow.pop %v841
        %v843 = vmul.f32 %v797, 1.442695
        %v844 = vpow.pop %v843
        %v845 = vmul.f32 %v798, 1.442695
        %v846 = vpow.pop %v845
        %v847 = vmul.f32 %v799, 1.442695
        %v848 = vpow.pop %v847
        %v849 = vmul.f32 %v800, 1.442695
        %v850 = vpow.pop %v849
        %v851 = vmul.f32 %v801, 1.442695
        %v852 = vpow.pop %v851
        %v853 = vmul.f32 %v802, 1.442695
        %v854 = vpow.pop %v853
        %v855 = vmul.f32 %v803, 1.442695
        %v856 = vpow.pop %v855
        %v857 = vmul.f32 %v804, 1.442695
        %v858 = vpow.pop %v857
        %v859 = vmul.f32 %v805, 1.442695
        %v860 = vpow.pop %v859
        %v861 = vmul.f32 %v806, 1.442695
        %v862 = vpow.pop %v861
        %v863 = vmul.f32 %v807, 1.442695
        %v864 = vpow.pop %v863
        %v865 = vmul.f32 %v808, 1.442695
        %v866 = vpow.pop %v865
        %v867 = vmul.f32 %v809, 1.442695
        %v868 = vpow.pop %v867
        %v869 = vmul.f32 %v810, 1.442695
        %v870 = vpow.pop %v869
        %v871 = vmul.f32 %v811, 1.442695
        %v872 = vpow.pop %v871
        %v873 = vmul.f32 %v812, 1.442695
        %v874 = vpow.pop %v873
        %v875 = vmul.f32 %v813, 1.442695
        %v876 = vpow.pop %v875
        %v877 = vmul.f32 %v814, 1.442695
        %v878 = vpow.pop %v877
        %v879 = vadd.f32 %v816, %v818
        %v880 = vadd.f32 %v879, %v820
        %v881 = vadd.f32 %v880, %v822
        %v882 = vadd.f32 %v881, %v824
        %v883 = vadd.f32 %v882, %v826
        %v884 = vadd.f32 %v883, %v828
        %v885 = vadd.f32 %v884, %v830
        %v886 = vadd.f32 %v885, %v832
        %v887 = vadd.f32 %v886, %v834
        %v888 = vadd.f32 %v887, %v836
        %v889 = vadd.f32 %v888, %v838
        %v890 = vadd.f32 %v889, %v840
        %v891 = vadd.f32 %v890, %v842
        %v892 = vadd.f32 %v891, %v844
        %v893 = vadd.f32 %v892, %v846
        %v894 = vadd.f32 %v893, %v848
        %v895 = vadd.f32 %v894, %v850
        %v896 = vadd.f32 %v895, %v852
        %v897 = vadd.f32 %v896, %v854
        %v898 = vadd.f32 %v897, %v856
        %v899 = vadd.f32 %v898, %v858
        %v900 = vadd.f32 %v899, %v860
        %v901 = vadd.f32 %v900, %v862
        %v902 = vadd.f32 %v901, %v864
        %v903 = vadd.f32 %v902, %v866
        %v904 = vadd.f32 %v903, %v868
        %v905 = vadd.f32 %v904, %v870
        %v906 = vadd.f32 %v905, %v872
        %v907 = vadd.f32 %v906, %v874
        %v908 = vadd.f32 %v907, %v876
        %v909 = vadd.f32 %v908, %v878
        %v910 = vrot.slane %v909, 4
        %v911 = vadd.f32 %v909, %v910
        %v912 = vrot.slane %v911, 2
        %v913 = vadd.f32 %v911, %v912
        %v914 = vrot.slane %v913, 1
        %v915 = vadd.f32 %v913, %v914
        %v916 = vpack.c.bf16 %v818, %v816
        %v917 = vpack.c.bf16 %v822, %v820
        %v918 = vpack.c.bf16 %v826, %v824
        %v919 = vpack.c.bf16 %v830, %v828
        %v920 = vpack.c.bf16 %v834, %v832
        %v921 = vpack.c.bf16 %v838, %v836
        %v922 = vpack.c.bf16 %v842, %v840
        %v923 = vpack.c.bf16 %v846, %v844
        %v924 = vpack.c.bf16 %v850, %v848
        %v925 = vpack.c.bf16 %v854, %v852
        %v926 = vpack.c.bf16 %v858, %v856
        %v927 = vpack.c.bf16 %v862, %v860
        %v928 = vpack.c.bf16 %v866, %v864
        %v929 = vpack.c.bf16 %v870, %v868
        %v930 = vpack.c.bf16 %v874, %v872
        %v931 = vpack.c.bf16 %v878, %v876
        %932 = vmatprep.subr.bf16.mxu0 0
        %933 = vmatpush1.bf16.msra.mxu0 %v916
        %934 = vmatprep.subr.bf16.mxu0 0
        %935 = vmatpush1.bf16.msra.mxu0 %v917
        %936 = vmatprep.subr.bf16.mxu0 0
        %937 = vmatpush1.bf16.msra.mxu0 %v918
        %938 = vmatprep.subr.bf16.mxu0 0
        %939 = vmatpush1.bf16.msra.mxu0 %v919
        %940 = vmatprep.subr.bf16.mxu0 0
        %941 = vmatpush1.bf16.msra.mxu0 %v920
        %942 = vmatprep.subr.bf16.mxu0 0
        %943 = vmatpush1.bf16.msra.mxu0 %v921
        %944 = vmatprep.subr.bf16.mxu0 0
        %945 = vmatpush1.bf16.msra.mxu0 %v922
        %946 = vmatprep.subr.bf16.mxu0 0
        %947 = vmatpush1.bf16.msra.mxu0 %v923
        %948 = vmatprep.subr.bf16.mxu0 0
        %949 = vmatpush1.bf16.msra.mxu0 %v924
        %950 = vmatprep.subr.bf16.mxu0 0
        %951 = vmatpush1.bf16.msra.mxu0 %v925
        %952 = vmatprep.subr.bf16.mxu0 0
        %953 = vmatpush1.bf16.msra.mxu0 %v926
        %954 = vmatprep.subr.bf16.mxu0 0
        %955 = vmatpush1.bf16.msra.mxu0 %v927
        %956 = vmatprep.subr.bf16.mxu0 0
        %957 = vmatpush1.bf16.msra.mxu0 %v928
        %958 = vmatprep.subr.bf16.mxu0 0
        %959 = vmatpush1.bf16.msra.mxu0 %v929
        %960 = vmatprep.subr.bf16.mxu0 0
        %961 = vmatpush1.bf16.msra.mxu0 %v930
        %962 = vmatprep.subr.bf16.mxu0 0
        %963 = vmatpush1.bf16.msra.mxu0 %v931
        %964 = vmatprep.mubr.bf16.mxu0 %v499
        %965 = vmatmul.mubr.bf16.gmra.mrb[0].mxu0 %v498
        %v966 = vpop.f32.mrb[0].mxu0
        %v967 = vadd.f32 0.0, %v966
        %v968 = vpop.f32.mrb[0].mxu0
        %v969 = vpop.f32.mrb[0].mxu0
        %v970 = vpop.f32.mrb[0].mxu0
        %971 = vdwg.mxu0
        %v972 = vrcp.pop %v915
        %v973 = vmul.f32 %v967, %v972
        %v975 = vsel %vm581, %v491, 0
        %977 = vmatprep.subr.bf16.mxu0 0
        %978 = vmatpush1.bf16.msra.mxu0 %v975
        %979 = vmatprep.subr.bf16.mxu0 0
        %980 = vmatpush1.bf16.msra.mxu0 0
        %981 = vmatprep.subr.bf16.mxu0 0
        %982 = vmatpush1.bf16.msra.mxu0 0
        %983 = vmatprep.subr.bf16.mxu0 0
        %984 = vmatpush1.bf16.msra.mxu0 0
        %985 = vmatprep.subr.bf16.mxu0 0
        %986 = vmatpush1.bf16.msra.mxu0 0
        %987 = vmatprep.subr.bf16.mxu0 0
        %988 = vmatpush1.bf16.msra.mxu0 0
        %989 = vmatprep.subr.bf16.mxu0 0
        %990 = vmatpush1.bf16.msra.mxu0 0
        %991 = vmatprep.subr.bf16.mxu0 0
        %992 = vmatpush1.bf16.msra.mxu0 0
        %993 = vmatprep.subr.bf16.mxu0 0
        %994 = vmatpush1.bf16.msra.mxu0 0
        %995 = vmatprep.subr.bf16.mxu0 0
        %996 = vmatpush1.bf16.msra.mxu0 0
        %997 = vmatprep.subr.bf16.mxu0 0
        %998 = vmatpush1.bf16.msra.mxu0 0
        %999 = vmatprep.subr.bf16.mxu0 0
        %1000 = vmatpush1.bf16.msra.mxu0 0
        %1001 = vmatprep.subr.bf16.mxu0 0
        %1002 = vmatpush1.bf16.msra.mxu0 0
        %1003 = vmatprep.subr.bf16.mxu0 0
        %1004 = vmatpush1.bf16.msra.mxu0 0
        %1005 = vmatprep.subr.bf16.mxu0 0
        %1006 = vmatpush1.bf16.msra.mxu0 0
        %1007 = vmatprep.subr.bf16.mxu0 0
        %1008 = vmatpush1.bf16.msra.mxu0 0
        %1009 = vmatprep.mubr.bf16.mxu0 0
        %1010 = vmatmul.mubr.bf16.gmra.mrb[0].mxu0 %v534
        %v1011 = vpop.f32.mrb[0].mxu0
        %v1012 = vadd.f32 0.0, %v1011
        %v1013 = vpop.f32.mrb[0].mxu0
        %v1014 = vpop.f32.mrb[0].mxu0
        %v1015 = vadd.f32 0.0, %v1014
        %v1016 = vpop.f32.mrb[0].mxu0
        %1017 = vmatprep.mubr.bf16.mxu0 0
        %1018 = vmatmul.mubr.bf16.gmra.mrb[0].mxu0 %v537
        %v1019 = vpop.f32.mrb[0].mxu0
        %v1020 = vadd.f32 0.0, %v1019
        %v1021 = vpop.f32.mrb[0].mxu0
        %v1022 = vpop.f32.mrb[0].mxu0
        %v1023 = vadd.f32 0.0, %v1022
        %v1024 = vpop.f32.mrb[0].mxu0
        %1025 = vmatprep.mubr.bf16.mxu0 0
        %1026 = vmatmul.mubr.bf16.gmra.mrb[0].mxu0 %v540
        %v1027 = vpop.f32.mrb[0].mxu0
        %v1028 = vadd.f32 0.0, %v1027
        %v1029 = vpop.f32.mrb[0].mxu0
        %v1030 = vpop.f32.mrb[0].mxu0
        %v1031 = vadd.f32 0.0, %v1030
        %v1032 = vpop.f32.mrb[0].mxu0
        %1033 = vmatprep.mubr.bf16.mxu0 0
        %1034 = vmatmul.mubr.bf16.gmra.mrb[0].mxu0 %v543
        %v1035 = vpop.f32.mrb[0].mxu0
        %v1036 = vadd.f32 0.0, %v1035
        %v1037 = vpop.f32.mrb[0].mxu0
        %v1038 = vpop.f32.mrb[0].mxu0
        %v1039 = vadd.f32 0.0, %v1038
        %v1040 = vpop.f32.mrb[0].mxu0
        %1041 = vmatprep.mubr.bf16.mxu0 0
        %1042 = vmatmul.mubr.bf16.gmra.mrb[0].mxu0 %v546
        %v1043 = vpop.f32.mrb[0].mxu0
        %v1044 = vadd.f32 0.0, %v1043
        %v1045 = vpop.f32.mrb[0].mxu0
        %v1046 = vpop.f32.mrb[0].mxu0
        %v1047 = vadd.f32 0.0, %v1046
        %v1048 = vpop.f32.mrb[0].mxu0
        %1049 = vmatprep.mubr.bf16.mxu0 0
        %1050 = vmatmul.mubr.bf16.gmra.mrb[0].mxu0 %v549
        %v1051 = vpop.f32.mrb[0].mxu0
        %v1052 = vadd.f32 0.0, %v1051
        %v1053 = vpop.f32.mrb[0].mxu0
        %v1054 = vpop.f32.mrb[0].mxu0
        %v1055 = vadd.f32 0.0, %v1054
        %v1056 = vpop.f32.mrb[0].mxu0
        %1057 = vmatprep.mubr.bf16.mxu0 0
        %1058 = vmatmul.mubr.bf16.gmra.mrb[0].mxu0 %v552
        %v1059 = vpop.f32.mrb[0].mxu0
        %v1060 = vadd.f32 0.0, %v1059
        %v1061 = vpop.f32.mrb[0].mxu0
        %v1062 = vpop.f32.mrb[0].mxu0
        %v1063 = vadd.f32 0.0, %v1062
        %v1064 = vpop.f32.mrb[0].mxu0
        %1065 = vmatprep.mubr.bf16.mxu0 0
        %1066 = vmatmul.mubr.bf16.gmra.mrb[0].mxu0 %v555
        %v1067 = vpop.f32.mrb[0].mxu0
        %v1068 = vadd.f32 0.0, %v1067
        %v1069 = vpop.f32.mrb[0].mxu0
        %v1070 = vpop.f32.mrb[0].mxu0
        %v1071 = vadd.f32 0.0, %v1070
        %v1072 = vpop.f32.mrb[0].mxu0
        %1073 = vmatprep.mubr.bf16.mxu0 0
        %1074 = vmatmul.mubr.bf16.gmra.mrb[0].mxu0 %v558
        %v1075 = vpop.f32.mrb[0].mxu0
        %v1076 = vadd.f32 0.0, %v1075
        %v1077 = vpop.f32.mrb[0].mxu0
        %v1078 = vpop.f32.mrb[0].mxu0
        %v1079 = vadd.f32 0.0, %v1078
        %v1080 = vpop.f32.mrb[0].mxu0
        %1081 = vmatprep.mubr.bf16.mxu0 0
        %1082 = vmatmul.mubr.bf16.gmra.mrb[0].mxu0 %v561
        %v1083 = vpop.f32.mrb[0].mxu0
        %v1084 = vadd.f32 0.0, %v1083
        %v1085 = vpop.f32.mrb[0].mxu0
        %v1086 = vpop.f32.mrb[0].mxu0
        %v1087 = vadd.f32 0.0, %v1086
        %v1088 = vpop.f32.mrb[0].mxu0
        %1089 = vmatprep.mubr.bf16.mxu0 0
        %1090 = vmatmul.mubr.bf16.gmra.mrb[0].mxu0 %v564
        %v1091 = vpop.f32.mrb[0].mxu0
        %v1092 = vadd.f32 0.0, %v1091
        %v1093 = vpop.f32.mrb[0].mxu0
        %v1094 = vpop.f32.mrb[0].mxu0
        %v1095 = vadd.f32 0.0, %v1094
        %v1096 = vpop.f32.mrb[0].mxu0
        %1097 = vmatprep.mubr.bf16.mxu0 0
        %1098 = vmatmul.mubr.bf16.gmra.mrb[0].mxu0 %v567
        %v1099 = vpop.f32.mrb[0].mxu0
        %v1100 = vadd.f32 0.0, %v1099
        %v1101 = vpop.f32.mrb[0].mxu0
        %v1102 = vpop.f32.mrb[0].mxu0
        %v1103 = vadd.f32 0.0, %v1102
        %v1104 = vpop.f32.mrb[0].mxu0
        %1105 = vmatprep.mubr.bf16.mxu0 0
        %1106 = vmatmul.mubr.bf16.gmra.mrb[0].mxu0 %v570
        %v1107 = vpop.f32.mrb[0].mxu0
        %v1108 = vadd.f32 0.0, %v1107
        %v1109 = vpop.f32.mrb[0].mxu0
        %v1110 = vpop.f32.mrb[0].mxu0
        %v1111 = vadd.f32 0.0, %v1110
        %v1112 = vpop.f32.mrb[0].mxu0
        %1113 = vmatprep.mubr.bf16.mxu0 0
        %1114 = vmatmul.mubr.bf16.gmra.mrb[0].mxu0 %v573
        %v1115 = vpop.f32.mrb[0].mxu0
        %v1116 = vadd.f32 0.0, %v1115
        %v1117 = vpop.f32.mrb[0].mxu0
        %v1118 = vpop.f32.mrb[0].mxu0
        %v1119 = vadd.f32 0.0, %v1118
        %v1120 = vpop.f32.mrb[0].mxu0
        %1121 = vmatprep.mubr.bf16.mxu0 0
        %1122 = vmatmul.mubr.bf16.gmra.mrb[0].mxu0 %v576
        %v1123 = vpop.f32.mrb[0].mxu0
        %v1124 = vadd.f32 0.0, %v1123
        %v1125 = vpop.f32.mrb[0].mxu0
        %v1126 = vpop.f32.mrb[0].mxu0
        %v1127 = vadd.f32 0.0, %v1126
        %v1128 = vpop.f32.mrb[0].mxu0
        %1129 = vmatprep.mubr.bf16.mxu0 0
        %1130 = vmatmul.mubr.bf16.gmra.mrb[0].mxu0 %v579
        %v1131 = vpop.f32.mrb[0].mxu0
        %v1132 = vadd.f32 0.0, %v1131
        %v1133 = vpop.f32.mrb[0].mxu0
        %v1134 = vpop.f32.mrb[0].mxu0
        %v1135 = vadd.f32 0.0, %v1134
        %v1136 = vpop.f32.mrb[0].mxu0
        %1137 = vdwg.mxu0
        %v1138 = vmax.f32 %v1012, %v1028
        %v1139 = vmax.f32 %v1015, %v1031
        %v1140 = vmax.f32 %v1020, %v1036
        %v1141 = vmax.f32 %v1023, %v1039
        %v1142 = vmax.f32 %v1138, %v1044
        %v1143 = vmax.f32 %v1139, %v1047
        %v1144 = vmax.f32 %v1140, %v1052
        %v1145 = vmax.f32 %v1141, %v1055
        %v1146 = vmax.f32 %v1142, %v1060
        %v1147 = vmax.f32 %v1143, %v1063
        %v1148 = vmax.f32 %v1144, %v1068
        %v1149 = vmax.f32 %v1145, %v1071
        %v1150 = vmax.f32 %v1146, %v1076
        %v1151 = vmax.f32 %v1147, %v1079
        %v1152 = vmax.f32 %v1148, %v1084
        %v1153 = vmax.f32 %v1149, %v1087
        %v1154 = vmax.f32 %v1150, %v1092
        %v1155 = vmax.f32 %v1151, %v1095
        %v1156 = vmax.f32 %v1152, %v1100
        %v1157 = vmax.f32 %v1153, %v1103
        %v1158 = vmax.f32 %v1154, %v1108
        %v1159 = vmax.f32 %v1155, %v1111
        %v1160 = vmax.f32 %v1156, %v1116
        %v1161 = vmax.f32 %v1157, %v1119
        %v1162 = vmax.f32 %v1158, %v1124
        %v1163 = vmax.f32 %v1159, %v1127
        %v1164 = vmax.f32 %v1160, %v1132
        %v1165 = vmax.f32 %v1161, %v1135
        %v1166 = vmax.f32 %v1162, %v1163
        %v1167 = vmax.f32 %v1164, %v1165
        %v1168 = vmax.f32 %v1166, %v1167
        %v1169 = vrot.slane %v1168, 4
        %v1170 = vmax.f32 %v1168, %v1169
        %v1171 = vrot.slane %v1170, 2
        %v1172 = vmax.f32 %v1170, %v1171
        %v1173 = vrot.slane %v1172, 1
        %v1174 = vmax.f32 %v1172, %v1173
        %v1175 = vsub.f32 %v1012, %v1174
        %v1176 = vsub.f32 %v1015, %v1174
        %v1177 = vsub.f32 %v1020, %v1174
        %v1178 = vsub.f32 %v1023, %v1174
        %v1179 = vsub.f32 %v1028, %v1174
        %v1180 = vsub.f32 %v1031, %v1174
        %v1181 = vsub.f32 %v1036, %v1174
        %v1182 = vsub.f32 %v1039, %v1174
        %v1183 = vsub.f32 %v1044, %v1174
        %v1184 = vsub.f32 %v1047, %v1174
        %v1185 = vsub.f32 %v1052, %v1174
        %v1186 = vsub.f32 %v1055, %v1174
        %v1187 = vsub.f32 %v1060, %v1174
        %v1188 = vsub.f32 %v1063, %v1174
        %v1189 = vsub.f32 %v1068, %v1174
        %v1190 = vsub.f32 %v1071, %v1174
        %v1191 = vsub.f32 %v1076, %v1174
        %v1192 = vsub.f32 %v1079, %v1174
        %v1193 = vsub.f32 %v1084, %v1174
        %v1194 = vsub.f32 %v1087, %v1174
        %v1195 = vsub.f32 %v1092, %v1174
        %v1196 = vsub.f32 %v1095, %v1174
        %v1197 = vsub.f32 %v1100, %v1174
        %v1198 = vsub.f32 %v1103, %v1174
        %v1199 = vsub.f32 %v1108, %v1174
        %v1200 = vsub.f32 %v1111, %v1174
        %v1201 = vsub.f32 %v1116, %v1174
        %v1202 = vsub.f32 %v1119, %v1174
        %v1203 = vsub.f32 %v1124, %v1174
        %v1204 = vsub.f32 %v1127, %v1174
        %v1205 = vsub.f32 %v1132, %v1174
        %v1206 = vsub.f32 %v1135, %v1174
        %v1207 = vmul.f32 %v1175, 1.442695
        %v1208 = vpow.pop %v1207
        %v1209 = vmul.f32 %v1176, 1.442695
        %v1210 = vpow.pop %v1209
        %v1211 = vmul.f32 %v1177, 1.442695
        %v1212 = vpow.pop %v1211
        %v1213 = vmul.f32 %v1178, 1.442695
        %v1214 = vpow.pop %v1213
        %v1215 = vmul.f32 %v1179, 1.442695
        %v1216 = vpow.pop %v1215
        %v1217 = vmul.f32 %v1180, 1.442695
        %v1218 = vpow.pop %v1217
        %v1219 = vmul.f32 %v1181, 1.442695
        %v1220 = vpow.pop %v1219
        %v1221 = vmul.f32 %v1182, 1.442695
        %v1222 = vpow.pop %v1221
        %v1223 = vmul.f32 %v1183, 1.442695
        %v1224 = vpow.pop %v1223
        %v1225 = vmul.f32 %v1184, 1.442695
        %v1226 = vpow.pop %v1225
        %v1227 = vmul.f32 %v1185, 1.442695
        %v1228 = vpow.pop %v1227
        %v1229 = vmul.f32 %v1186, 1.442695
        %v1230 = vpow.pop %v1229
        %v1231 = vmul.f32 %v1187, 1.442695
        %v1232 = vpow.pop %v1231
        %v1233 = vmul.f32 %v1188, 1.442695
        %v1234 = vpow.pop %v1233
        %v1235 = vmul.f32 %v1189, 1.442695
        %v1236 = vpow.pop %v1235
        %v1237 = vmul.f32 %v1190, 1.442695
        %v1238 = vpow.pop %v1237
        %v1239 = vmul.f32 %v1191, 1.442695
        %v1240 = vpow.pop %v1239
        %v1241 = vmul.f32 %v1192, 1.442695
        %v1242 = vpow.pop %v1241
        %v1243 = vmul.f32 %v1193, 1.442695
        %v1244 = vpow.pop %v1243
        %v1245 = vmul.f32 %v1194, 1.442695
        %v1246 = vpow.pop %v1245
        %v1247 = vmul.f32 %v1195, 1.442695
        %v1248 = vpow.pop %v1247
        %v1249 = vmul.f32 %v1196, 1.442695
        %v1250 = vpow.pop %v1249
        %v1251 = vmul.f32 %v1197, 1.442695
        %v1252 = vpow.pop %v1251
        %v1253 = vmul.f32 %v1198, 1.442695
        %v1254 = vpow.pop %v1253
        %v1255 = vmul.f32 %v1199, 1.442695
        %v1256 = vpow.pop %v1255
        %v1257 = vmul.f32 %v1200, 1.442695
        %v1258 = vpow.pop %v1257
        %v1259 = vmul.f32 %v1201, 1.442695
        %v1260 = vpow.pop %v1259
        %v1261 = vmul.f32 %v1202, 1.442695
        %v1262 = vpow.pop %v1261
        %v1263 = vmul.f32 %v1203, 1.442695
        %v1264 = vpow.pop %v1263
        %v1265 = vmul.f32 %v1204, 1.442695
        %v1266 = vpow.pop %v1265
        %v1267 = vmul.f32 %v1205, 1.442695
        %v1268 = vpow.pop %v1267
        %v1269 = vmul.f32 %v1206, 1.442695
        %v1270 = vpow.pop %v1269
        %v1271 = vadd.f32 %v1208, %v1210
        %v1272 = vadd.f32 %v1271, %v1212
        %v1273 = vadd.f32 %v1272, %v1214
        %v1274 = vadd.f32 %v1273, %v1216
        %v1275 = vadd.f32 %v1274, %v1218
        %v1276 = vadd.f32 %v1275, %v1220
        %v1277 = vadd.f32 %v1276, %v1222
        %v1278 = vadd.f32 %v1277, %v1224
        %v1279 = vadd.f32 %v1278, %v1226
        %v1280 = vadd.f32 %v1279, %v1228
        %v1281 = vadd.f32 %v1280, %v1230
        %v1282 = vadd.f32 %v1281, %v1232
        %v1283 = vadd.f32 %v1282, %v1234
        %v1284 = vadd.f32 %v1283, %v1236
        %v1285 = vadd.f32 %v1284, %v1238
        %v1286 = vadd.f32 %v1285, %v1240
        %v1287 = vadd.f32 %v1286, %v1242
        %v1288 = vadd.f32 %v1287, %v1244
        %v1289 = vadd.f32 %v1288, %v1246
        %v1290 = vadd.f32 %v1289, %v1248
        %v1291 = vadd.f32 %v1290, %v1250
        %v1292 = vadd.f32 %v1291, %v1252
        %v1293 = vadd.f32 %v1292, %v1254
        %v1294 = vadd.f32 %v1293, %v1256
        %v1295 = vadd.f32 %v1294, %v1258
        %v1296 = vadd.f32 %v1295, %v1260
        %v1297 = vadd.f32 %v1296, %v1262
        %v1298 = vadd.f32 %v1297, %v1264
        %v1299 = vadd.f32 %v1298, %v1266
        %v1300 = vadd.f32 %v1299, %v1268
        %v1301 = vadd.f32 %v1300, %v1270
        %v1302 = vrot.slane %v1301, 4
        %v1303 = vadd.f32 %v1301, %v1302
        %v1304 = vrot.slane %v1303, 2
        %v1305 = vadd.f32 %v1303, %v1304
        %v1306 = vrot.slane %v1305, 1
        %v1307 = vadd.f32 %v1305, %v1306
        %v1308 = vpack.c.bf16 %v1210, %v1208
        %v1309 = vpack.c.bf16 %v1214, %v1212
        %v1310 = vpack.c.bf16 %v1218, %v1216
        %v1311 = vpack.c.bf16 %v1222, %v1220
        %v1312 = vpack.c.bf16 %v1226, %v1224
        %v1313 = vpack.c.bf16 %v1230, %v1228
        %v1314 = vpack.c.bf16 %v1234, %v1232
        %v1315 = vpack.c.bf16 %v1238, %v1236
        %v1316 = vpack.c.bf16 %v1242, %v1240
        %v1317 = vpack.c.bf16 %v1246, %v1244
        %v1318 = vpack.c.bf16 %v1250, %v1248
        %v1319 = vpack.c.bf16 %v1254, %v1252
        %v1320 = vpack.c.bf16 %v1258, %v1256
        %v1321 = vpack.c.bf16 %v1262, %v1260
        %v1322 = vpack.c.bf16 %v1266, %v1264
        %v1323 = vpack.c.bf16 %v1270, %v1268
        %1324 = vmatprep.subr.bf16.mxu0 0
        %1325 = vmatpush1.bf16.msra.mxu0 %v1308
        %1326 = vmatprep.subr.bf16.mxu0 0
        %1327 = vmatpush1.bf16.msra.mxu0 %v1309
        %1328 = vmatprep.subr.bf16.mxu0 0
        %1329 = vmatpush1.bf16.msra.mxu0 %v1310
        %1330 = vmatprep.subr.bf16.mxu0 0
        %1331 = vmatpush1.bf16.msra.mxu0 %v1311
        %1332 = vmatprep.subr.bf16.mxu0 0
        %1333 = vmatpush1.bf16.msra.mxu0 %v1312
        %1334 = vmatprep.subr.bf16.mxu0 0
        %1335 = vmatpush1.bf16.msra.mxu0 %v1313
        %1336 = vmatprep.subr.bf16.mxu0 0
        %1337 = vmatpush1.bf16.msra.mxu0 %v1314
        %1338 = vmatprep.subr.bf16.mxu0 0
        %1339 = vmatpush1.bf16.msra.mxu0 %v1315
        %1340 = vmatprep.subr.bf16.mxu0 0
        %1341 = vmatpush1.bf16.msra.mxu0 %v1316
        %1342 = vmatprep.subr.bf16.mxu0 0
        %1343 = vmatpush1.bf16.msra.mxu0 %v1317
        %1344 = vmatprep.subr.bf16.mxu0 0
        %1345 = vmatpush1.bf16.msra.mxu0 %v1318
        %1346 = vmatprep.subr.bf16.mxu0 0
        %1347 = vmatpush1.bf16.msra.mxu0 %v1319
        %1348 = vmatprep.subr.bf16.mxu0 0
        %1349 = vmatpush1.bf16.msra.mxu0 %v1320
        %1350 = vmatprep.subr.bf16.mxu0 0
        %1351 = vmatpush1.bf16.msra.mxu0 %v1321
        %1352 = vmatprep.subr.bf16.mxu0 0
        %1353 = vmatpush1.bf16.msra.mxu0 %v1322
        %1354 = vmatprep.subr.bf16.mxu0 0
        %1355 = vmatpush1.bf16.msra.mxu0 %v1323
        %1356 = vmatprep.mubr.bf16.mxu0 %v499
        %1357 = vmatmul.mubr.bf16.gmra.mrb[0].mxu0 %v498
        %v1358 = vpop.f32.mrb[0].mxu0
        %v1359 = vadd.f32 0.0, %v1358
        %v1360 = vpop.f32.mrb[0].mxu0
        %v1361 = vpop.f32.mrb[0].mxu0
        %v1362 = vpop.f32.mrb[0].mxu0
        %1363 = vdwg.mxu0
        %v1364 = vrcp.pop %v1307
        %v1365 = vmul.f32 %v1359, %v1364
        %v1366 = vld [vmem:[%s3] sm:$0xff]
        %v1367 = vpack.c.bf16 %v1366, %v1366
        %v1368 = vpack.c.bf16 %v973, %v973
        %v1369 = vpack.c.bf16 %v1365, %v1365
        %1370 = vxpose.xlu0.c.b16.start [1/8] %v1367, 128
        %1371 = vxpose.xlu0.c.b16.cont [2/8] 0, 128
        %1372 = vxpose.xlu0.c.b16.cont [3/8] 0, 128
        %1373 = vxpose.xlu0.c.b16.cont [4/8] 0, 128
        %1374 = vxpose.xlu0.c.b16.cont [5/8] 0, 128
        %1375 = vxpose.xlu0.c.b16.cont [6/8] 0, 128
        %1376 = vxpose.xlu0.c.b16.cont [7/8] 0, 128
        %1377 = vxpose.xlu0.c.b16.end [8/8] 0, 128
        %v1378 = vpop.trf.xlu0
        %v1379 = vpop.trf.xlu0
        %v1380 = vpop.trf.xlu0
        %v1381 = vpop.trf.xlu0
        %v1382 = vpop.trf.xlu0
        %v1383 = vpop.trf.xlu0
        %v1384 = vpop.trf.xlu0
        %v1385 = vpop.trf.xlu0
        %v1387 = vsel %vm532, %v1378, 0
        %v1390 = vsel %vm532, %v1379, 0
        %v1393 = vsel %vm581, %v1368, 0
        %v1396 = vsel %vm581, %v1369, 0
        %1398 = vmatprep.subr.bf16.mxu0 %v1396
        %1399 = vmatpush1.bf16.msra.mxu0 %v1393
        %1400 = vmatprep.subr.bf16.mxu0 0
        %1401 = vmatpush1.bf16.msra.mxu0 0
        %1402 = vmatprep.subr.bf16.mxu0 0
        %1403 = vmatpush1.bf16.msra.mxu0 0
        %1404 = vmatprep.subr.bf16.mxu0 0
        %1405 = vmatpush1.bf16.msra.mxu0 0
        %1406 = vmatprep.subr.bf16.mxu0 0
        %1407 = vmatpush1.bf16.msra.mxu0 0
        %1408 = vmatprep.subr.bf16.mxu0 0
        %1409 = vmatpush1.bf16.msra.mxu0 0
        %1410 = vmatprep.subr.bf16.mxu0 0
        %1411 = vmatpush1.bf16.msra.mxu0 0
        %1412 = vmatprep.subr.bf16.mxu0 0
        %1413 = vmatpush1.bf16.msra.mxu0 0
        %1414 = vmatprep.subr.bf16.mxu0 0
        %1415 = vmatpush1.bf16.msra.mxu0 0
        %1416 = vmatprep.subr.bf16.mxu0 0
        %1417 = vmatpush1.bf16.msra.mxu0 0
        %1418 = vmatprep.subr.bf16.mxu0 0
        %1419 = vmatpush1.bf16.msra.mxu0 0
        %1420 = vmatprep.subr.bf16.mxu0 0
        %1421 = vmatpush1.bf16.msra.mxu0 0
        %1422 = vmatprep.subr.bf16.mxu0 0
        %1423 = vmatpush1.bf16.msra.mxu0 0
        %1424 = vmatprep.subr.bf16.mxu0 0
        %1425 = vmatpush1.bf16.msra.mxu0 0
        %1426 = vmatprep.subr.bf16.mxu0 0
        %1427 = vmatpush1.bf16.msra.mxu0 0
        %1428 = vmatprep.subr.bf16.mxu0 0
        %1429 = vmatpush1.bf16.msra.mxu0 0
        %1430 = vmatprep.mubr.bf16.mxu0 0
        %1431 = vmatmul.mubr.bf16.gmra.mrb[0].mxu0 %v1387
        %v1432 = vpop.f32.mrb[0].mxu0
        %v1433 = vadd.f32 0.0, %v1432
        %v1434 = vpop.f32.mrb[0].mxu0
        %v1435 = vadd.f32 0.0, %v1434
        %v1436 = vpop.f32.mrb[0].mxu0
        %v1437 = vadd.f32 0.0, %v1436
        %v1438 = vpop.f32.mrb[0].mxu0
        %v1439 = vadd.f32 0.0, %v1438
        %1440 = vmatprep.mubr.bf16.mxu0 0
        %1441 = vmatmul.mubr.bf16.gmra.mrb[0].mxu0 %v1390
        %v1442 = vpop.f32.mrb[0].mxu0
        %v1443 = vadd.f32 0.0, %v1442
        %v1444 = vpop.f32.mrb[0].mxu0
        %v1445 = vadd.f32 0.0, %v1444
        %v1446 = vpop.f32.mrb[0].mxu0
        %v1447 = vadd.f32 0.0, %v1446
        %v1448 = vpop.f32.mrb[0].mxu0
        %v1449 = vadd.f32 0.0, %v1448
        %1450 = vdwg.mxu0
        %v1451 = vadd.f32 %v261, %v1433
        %v1452 = vadd.f32 %v261, %v1435
        %v1453 = vadd.f32 %v266, %v1437
        %v1454 = vadd.f32 %v266, %v1439
        %v1455 = vadd.f32 %v271, %v1443
        %v1456 = vadd.f32 %v271, %v1445
        %v1457 = vadd.f32 %v276, %v1447
        %v1458 = vadd.f32 %v276, %v1449
        %v1459 = vld [vmem:[#allocation2 + $0x10] sm:$0xff]
        %v1460 = vld [vmem:[#allocation2 + $0x18] sm:$0xff]
        %v1461 = vmul.f32 %v1459, 0.35355338
        %v1462 = vmul.f32 %v1460, 0.35355338
        %v1463 = vpack.c.bf16 %v1461, %v1461
        %v1464 = vpack.c.bf16 %v1462, %v1462
        %v1465 = vld [vmem:[#allocation2 + $0x50] sm:$0xff]
        %v1466 = vld [vmem:[#allocation2 + $0x58] sm:$0xff]
        %v1467 = vpack.c.bf16 %v1465, %v1465
        %v1468 = vpack.c.bf16 %v1466, %v1466
        %v1469 = vld [vmem:[#allocation2 + $0x90] sm:$0xff]
        %v1470 = vld [vmem:[#allocation2 + $0x98] sm:$0xff]
        %v1471 = vpack.c.bf16 %v1469, %v1469
        %v1472 = vpack.c.bf16 %v1470, %v1470
        %1473 = vxpose.xlu0.c.b16.start [1/8] %v1467, 128
        %1474 = vxpose.xlu0.c.b16.cont [2/8] 0, 128
        %1475 = vxpose.xlu0.c.b16.cont [3/8] 0, 128
        %1476 = vxpose.xlu0.c.b16.cont [4/8] 0, 128
        %1477 = vxpose.xlu0.c.b16.cont [5/8] 0, 128
        %1478 = vxpose.xlu0.c.b16.cont [6/8] 0, 128
        %1479 = vxpose.xlu0.c.b16.cont [7/8] 0, 128
        %1480 = vxpose.xlu0.c.b16.end [8/8] 0, 128
        %v1481 = vpop.trf.xlu0
        %v1482 = vpop.trf.xlu0
        %v1483 = vpop.trf.xlu0
        %v1484 = vpop.trf.xlu0
        %v1485 = vpop.trf.xlu0
        %v1486 = vpop.trf.xlu0
        %v1487 = vpop.trf.xlu0
        %v1488 = vpop.trf.xlu0
        %1489 = vxpose.xlu0.c.b16.start [1/8] %v1468, 128
        %1490 = vxpose.xlu0.c.b16.cont [2/8] 0, 128
        %1491 = vxpose.xlu0.c.b16.cont [3/8] 0, 128
        %1492 = vxpose.xlu0.c.b16.cont [4/8] 0, 128
        %1493 = vxpose.xlu0.c.b16.cont [5/8] 0, 128
        %1494 = vxpose.xlu0.c.b16.cont [6/8] 0, 128
        %1495 = vxpose.xlu0.c.b16.cont [7/8] 0, 128
        %1496 = vxpose.xlu0.c.b16.end [8/8] 0, 128
        %v1497 = vpop.trf.xlu0
        %v1498 = vpop.trf.xlu0
        %v1499 = vpop.trf.xlu0
        %v1500 = vpop.trf.xlu0
        %v1501 = vpop.trf.xlu0
        %v1502 = vpop.trf.xlu0
        %v1503 = vpop.trf.xlu0
        %v1504 = vpop.trf.xlu0
        %v1506 = vsel %vm532, %v1481, 0
        %v1509 = vsel %vm532, %v1482, 0
        %v1512 = vsel %vm532, %v1483, 0
        %v1515 = vsel %vm532, %v1484, 0
        %v1518 = vsel %vm532, %v1485, 0
        %v1521 = vsel %vm532, %v1486, 0
        %v1524 = vsel %vm532, %v1487, 0
        %v1527 = vsel %vm532, %v1488, 0
        %v1530 = vsel %vm532, %v1497, 0
        %v1533 = vsel %vm532, %v1498, 0
        %v1536 = vsel %vm532, %v1499, 0
        %v1539 = vsel %vm532, %v1500, 0
        %v1542 = vsel %vm532, %v1501, 0
        %v1545 = vsel %vm532, %v1502, 0
        %v1548 = vsel %vm532, %v1503, 0
        %v1551 = vsel %vm532, %v1504, 0
        %v1554 = vsel %vm581, %v1463, 0
        %1556 = vmatprep.subr.bf16.mxu0 0
        %1557 = vmatpush1.bf16.msra.mxu0 %v1554
        %1558 = vmatprep.subr.bf16.mxu0 0
        %1559 = vmatpush1.bf16.msra.mxu0 0
        %1560 = vmatprep.subr.bf16.mxu0 0
        %1561 = vmatpush1.bf16.msra.mxu0 0
        %1562 = vmatprep.subr.bf16.mxu0 0
        %1563 = vmatpush1.bf16.msra.mxu0 0
        %1564 = vmatprep.subr.bf16.mxu0 0
        %1565 = vmatpush1.bf16.msra.mxu0 0
        %1566 = vmatprep.subr.bf16.mxu0 0
        %1567 = vmatpush1.bf16.msra.mxu0 0
        %1568 = vmatprep.subr.bf16.mxu0 0
        %1569 = vmatpush1.bf16.msra.mxu0 0
        %1570 = vmatprep.subr.bf16.mxu0 0
        %1571 = vmatpush1.bf16.msra.mxu0 0
        %1572 = vmatprep.subr.bf16.mxu0 0
        %1573 = vmatpush1.bf16.msra.mxu0 0
        %1574 = vmatprep.subr.bf16.mxu0 0
        %1575 = vmatpush1.bf16.msra.mxu0 0
        %1576 = vmatprep.subr.bf16.mxu0 0
        %1577 = vmatpush1.bf16.msra.mxu0 0
        %1578 = vmatprep.subr.bf16.mxu0 0
        %1579 = vmatpush1.bf16.msra.mxu0 0
        %1580 = vmatprep.subr.bf16.mxu0 0
        %1581 = vmatpush1.bf16.msra.mxu0 0
        %1582 = vmatprep.subr.bf16.mxu0 0
        %1583 = vmatpush1.bf16.msra.mxu0 0
        %1584 = vmatprep.subr.bf16.mxu0 0
        %1585 = vmatpush1.bf16.msra.mxu0 0
        %1586 = vmatprep.subr.bf16.mxu0 0
        %1587 = vmatpush1.bf16.msra.mxu0 0
        %1588 = vmatprep.mubr.bf16.mxu0 0
        %1589 = vmatmul.mubr.bf16.gmra.mrb[0].mxu0 %v1506
        %v1590 = vpop.f32.mrb[0].mxu0
        %v1591 = vadd.f32 0.0, %v1590
        %v1592 = vpop.f32.mrb[0].mxu0
        %v1593 = vpop.f32.mrb[0].mxu0
        %v1594 = vadd.f32 0.0, %v1593
        %v1595 = vpop.f32.mrb[0].mxu0
        %1596 = vmatprep.mubr.bf16.mxu0 0
        %1597 = vmatmul.mubr.bf16.gmra.mrb[0].mxu0 %v1509
        %v1598 = vpop.f32.mrb[0].mxu0
        %v1599 = vadd.f32 0.0, %v1598
        %v1600 = vpop.f32.mrb[0].mxu0
        %v1601 = vpop.f32.mrb[0].mxu0
        %v1602 = vadd.f32 0.0, %v1601
        %v1603 = vpop.f32.mrb[0].mxu0
        %1604 = vmatprep.mubr.bf16.mxu0 0
        %1605 = vmatmul.mubr.bf16.gmra.mrb[0].mxu0 %v1512
        %v1606 = vpop.f32.mrb[0].mxu0
        %v1607 = vadd.f32 0.0, %v1606
        %v1608 = vpop.f32.mrb[0].mxu0
        %v1609 = vpop.f32.mrb[0].mxu0
        %v1610 = vadd.f32 0.0, %v1609
        %v1611 = vpop.f32.mrb[0].mxu0
        %1612 = vmatprep.mubr.bf16.mxu0 0
        %1613 = vmatmul.mubr.bf16.gmra.mrb[0].mxu0 %v1515
        %v1614 = vpop.f32.mrb[0].mxu0
        %v1615 = vadd.f32 0.0, %v1614
        %v1616 = vpop.f32.mrb[0].mxu0
        %v1617 = vpop.f32.mrb[0].mxu0
        %v1618 = vadd.f32 0.0, %v1617
        %v1619 = vpop.f32.mrb[0].mxu0
        %1620 = vmatprep.mubr.bf16.mxu0 0
        %1621 = vmatmul.mubr.bf16.gmra.mrb[0].mxu0 %v1518
        %v1622 = vpop.f32.mrb[0].mxu0
        %v1623 = vadd.f32 0.0, %v1622
        %v1624 = vpop.f32.mrb[0].mxu0
        %v1625 = vpop.f32.mrb[0].mxu0
        %v1626 = vadd.f32 0.0, %v1625
        %v1627 = vpop.f32.mrb[0].mxu0
        %1628 = vmatprep.mubr.bf16.mxu0 0
        %1629 = vmatmul.mubr.bf16.gmra.mrb[0].mxu0 %v1521
        %v1630 = vpop.f32.mrb[0].mxu0
        %v1631 = vadd.f32 0.0, %v1630
        %v1632 = vpop.f32.mrb[0].mxu0
        %v1633 = vpop.f32.mrb[0].mxu0
        %v1634 = vadd.f32 0.0, %v1633
        %v1635 = vpop.f32.mrb[0].mxu0
        %1636 = vmatprep.mubr.bf16.mxu0 0
        %1637 = vmatmul.mubr.bf16.gmra.mrb[0].mxu0 %v1524
        %v1638 = vpop.f32.mrb[0].mxu0
        %v1639 = vadd.f32 0.0, %v1638
        %v1640 = vpop.f32.mrb[0].mxu0
        %v1641 = vpop.f32.mrb[0].mxu0
        %v1642 = vadd.f32 0.0, %v1641
        %v1643 = vpop.f32.mrb[0].mxu0
        %1644 = vmatprep.mubr.bf16.mxu0 0
        %1645 = vmatmul.mubr.bf16.gmra.mrb[0].mxu0 %v1527
        %v1646 = vpop.f32.mrb[0].mxu0
        %v1647 = vadd.f32 0.0, %v1646
        %v1648 = vpop.f32.mrb[0].mxu0
        %v1649 = vpop.f32.mrb[0].mxu0
        %v1650 = vadd.f32 0.0, %v1649
        %v1651 = vpop.f32.mrb[0].mxu0
        %1652 = vmatprep.mubr.bf16.mxu0 0
        %1653 = vmatmul.mubr.bf16.gmra.mrb[0].mxu0 %v1530
        %v1654 = vpop.f32.mrb[0].mxu0
        %v1655 = vadd.f32 0.0, %v1654
        %v1656 = vpop.f32.mrb[0].mxu0
        %v1657 = vpop.f32.mrb[0].mxu0
        %v1658 = vadd.f32 0.0, %v1657
        %v1659 = vpop.f32.mrb[0].mxu0
        %1660 = vmatprep.mubr.bf16.mxu0 0
        %1661 = vmatmul.mubr.bf16.gmra.mrb[0].mxu0 %v1533
        %v1662 = vpop.f32.mrb[0].mxu0
        %v1663 = vadd.f32 0.0, %v1662
        %v1664 = vpop.f32.mrb[0].mxu0
        %v1665 = vpop.f32.mrb[0].mxu0
        %v1666 = vadd.f32 0.0, %v1665
        %v1667 = vpop.f32.mrb[0].mxu0
        %1668 = vmatprep.mubr.bf16.mxu0 0
        %1669 = vmatmul.mubr.bf16.gmra.mrb[0].mxu0 %v1536
        %v1670 = vpop.f32.mrb[0].mxu0
        %v1671 = vadd.f32 0.0, %v1670
        %v1672 = vpop.f32.mrb[0].mxu0
        %v1673 = vpop.f32.mrb[0].mxu0
        %v1674 = vadd.f32 0.0, %v1673
        %v1675 = vpop.f32.mrb[0].mxu0
        %1676 = vmatprep.mubr.bf16.mxu0 0
        %1677 = vmatmul.mubr.bf16.gmra.mrb[0].mxu0 %v1539
        %v1678 = vpop.f32.mrb[0].mxu0
        %v1679 = vadd.f32 0.0, %v1678
        %v1680 = vpop.f32.mrb[0].mxu0
        %v1681 = vpop.f32.mrb[0].mxu0
        %v1682 = vadd.f32 0.0, %v1681
        %v1683 = vpop.f32.mrb[0].mxu0
        %1684 = vmatprep.mubr.bf16.mxu0 0
        %1685 = vmatmul.mubr.bf16.gmra.mrb[0].mxu0 %v1542
        %v1686 = vpop.f32.mrb[0].mxu0
        %v1687 = vadd.f32 0.0, %v1686
        %v1688 = vpop.f32.mrb[0].mxu0
        %v1689 = vpop.f32.mrb[0].mxu0
        %v1690 = vadd.f32 0.0, %v1689
        %v1691 = vpop.f32.mrb[0].mxu0
        %1692 = vmatprep.mubr.bf16.mxu0 0
        %1693 = vmatmul.mubr.bf16.gmra.mrb[0].mxu0 %v1545
        %v1694 = vpop.f32.mrb[0].mxu0
        %v1695 = vadd.f32 0.0, %v1694
        %v1696 = vpop.f32.mrb[0].mxu0
        %v1697 = vpop.f32.mrb[0].mxu0
        %v1698 = vadd.f32 0.0, %v1697
        %v1699 = vpop.f32.mrb[0].mxu0
        %1700 = vmatprep.mubr.bf16.mxu0 0
        %1701 = vmatmul.mubr.bf16.gmra.mrb[0].mxu0 %v1548
        %v1702 = vpop.f32.mrb[0].mxu0
        %v1703 = vadd.f32 0.0, %v1702
        %v1704 = vpop.f32.mrb[0].mxu0
        %v1705 = vpop.f32.mrb[0].mxu0
        %v1706 = vadd.f32 0.0, %v1705
        %v1707 = vpop.f32.mrb[0].mxu0
        %1708 = vmatprep.mubr.bf16.mxu0 0
        %1709 = vmatmul.mubr.bf16.gmra.mrb[0].mxu0 %v1551
        %v1710 = vpop.f32.mrb[0].mxu0
        %v1711 = vadd.f32 0.0, %v1710
        %v1712 = vpop.f32.mrb[0].mxu0
        %v1713 = vpop.f32.mrb[0].mxu0
        %v1714 = vadd.f32 0.0, %v1713
        %v1715 = vpop.f32.mrb[0].mxu0
        %1716 = vdwg.mxu0
        %v1717 = vmax.f32 %v1591, %v1607
        %v1718 = vmax.f32 %v1594, %v1610
        %v1719 = vmax.f32 %v1599, %v1615
        %v1720 = vmax.f32 %v1602, %v1618
        %v1721 = vmax.f32 %v1717, %v1623
        %v1722 = vmax.f32 %v1718, %v1626
        %v1723 = vmax.f32 %v1719, %v1631
        %v1724 = vmax.f32 %v1720, %v1634
        %v1725 = vmax.f32 %v1721, %v1639
        %v1726 = vmax.f32 %v1722, %v1642
        %v1727 = vmax.f32 %v1723, %v1647
        %v1728 = vmax.f32 %v1724, %v1650
        %v1729 = vmax.f32 %v1725, %v1655
        %v1730 = vmax.f32 %v1726, %v1658
        %v1731 = vmax.f32 %v1727, %v1663
        %v1732 = vmax.f32 %v1728, %v1666
        %v1733 = vmax.f32 %v1729, %v1671
        %v1734 = vmax.f32 %v1730, %v1674
        %v1735 = vmax.f32 %v1731, %v1679
        %v1736 = vmax.f32 %v1732, %v1682
        %v1737 = vmax.f32 %v1733, %v1687
        %v1738 = vmax.f32 %v1734, %v1690
        %v1739 = vmax.f32 %v1735, %v1695
        %v1740 = vmax.f32 %v1736, %v1698
        %v1741 = vmax.f32 %v1737, %v1703
        %v1742 = vmax.f32 %v1738, %v1706
        %v1743 = vmax.f32 %v1739, %v1711
        %v1744 = vmax.f32 %v1740, %v1714
        %v1745 = vmax.f32 %v1741, %v1742
        %v1746 = vmax.f32 %v1743, %v1744
        %v1747 = vmax.f32 %v1745, %v1746
        %v1748 = vrot.slane %v1747, 4
        %v1749 = vmax.f32 %v1747, %v1748
        %v1750 = vrot.slane %v1749, 2
        %v1751 = vmax.f32 %v1749, %v1750
        %v1752 = vrot.slane %v1751, 1
        %v1753 = vmax.f32 %v1751, %v1752
        %v1754 = vsub.f32 %v1591, %v1753
        %v1755 = vsub.f32 %v1594, %v1753
        %v1756 = vsub.f32 %v1599, %v1753
        %v1757 = vsub.f32 %v1602, %v1753
        %v1758 = vsub.f32 %v1607, %v1753
        %v1759 = vsub.f32 %v1610, %v1753
        %v1760 = vsub.f32 %v1615, %v1753
        %v1761 = vsub.f32 %v1618, %v1753
        %v1762 = vsub.f32 %v1623, %v1753
        %v1763 = vsub.f32 %v1626, %v1753
        %v1764 = vsub.f32 %v1631, %v1753
        %v1765 = vsub.f32 %v1634, %v1753
        %v1766 = vsub.f32 %v1639, %v1753
        %v1767 = vsub.f32 %v1642, %v1753
        %v1768 = vsub.f32 %v1647, %v1753
        %v1769 = vsub.f32 %v1650, %v1753
        %v1770 = vsub.f32 %v1655, %v1753
        %v1771 = vsub.f32 %v1658, %v1753
        %v1772 = vsub.f32 %v1663, %v1753
        %v1773 = vsub.f32 %v1666, %v1753
        %v1774 = vsub.f32 %v1671, %v1753
        %v1775 = vsub.f32 %v1674, %v1753
        %v1776 = vsub.f32 %v1679, %v1753
        %v1777 = vsub.f32 %v1682, %v1753
        %v1778 = vsub.f32 %v1687, %v1753
        %v1779 = vsub.f32 %v1690, %v1753
        %v1780 = vsub.f32 %v1695, %v1753
        %v1781 = vsub.f32 %v1698, %v1753
        %v1782 = vsub.f32 %v1703, %v1753
        %v1783 = vsub.f32 %v1706, %v1753
        %v1784 = vsub.f32 %v1711, %v1753
        %v1785 = vsub.f32 %v1714, %v1753
        %v1786 = vmul.f32 %v1754, 1.442695
        %v1787 = vpow.pop %v1786
        %v1788 = vmul.f32 %v1755, 1.442695
        %v1789 = vpow.pop %v1788
        %v1790 = vmul.f32 %v1756, 1.442695
        %v1791 = vpow.pop %v1790
        %v1792 = vmul.f32 %v1757, 1.442695
        %v1793 = vpow.pop %v1792
        %v1794 = vmul.f32 %v1758, 1.442695
        %v1795 = vpow.pop %v1794
        %v1796 = vmul.f32 %v1759, 1.442695
        %v1797 = vpow.pop %v1796
        %v1798 = vmul.f32 %v1760, 1.442695
        %v1799 = vpow.pop %v1798
        %v1800 = vmul.f32 %v1761, 1.442695
        %v1801 = vpow.pop %v1800
        %v1802 = vmul.f32 %v1762, 1.442695
        %v1803 = vpow.pop %v1802
        %v1804 = vmul.f32 %v1763, 1.442695
        %v1805 = vpow.pop %v1804
        %v1806 = vmul.f32 %v1764, 1.442695
        %v1807 = vpow.pop %v1806
        %v1808 = vmul.f32 %v1765, 1.442695
        %v1809 = vpow.pop %v1808
        %v1810 = vmul.f32 %v1766, 1.442695
        %v1811 = vpow.pop %v1810
        %v1812 = vmul.f32 %v1767, 1.442695
        %v1813 = vpow.pop %v1812
        %v1814 = vmul.f32 %v1768, 1.442695
        %v1815 = vpow.pop %v1814
        %v1816 = vmul.f32 %v1769, 1.442695
        %v1817 = vpow.pop %v1816
        %v1818 = vmul.f32 %v1770, 1.442695
        %v1819 = vpow.pop %v1818
        %v1820 = vmul.f32 %v1771, 1.442695
        %v1821 = vpow.pop %v1820
        %v1822 = vmul.f32 %v1772, 1.442695
        %v1823 = vpow.pop %v1822
        %v1824 = vmul.f32 %v1773, 1.442695
        %v1825 = vpow.pop %v1824
        %v1826 = vmul.f32 %v1774, 1.442695
        %v1827 = vpow.pop %v1826
        %v1828 = vmul.f32 %v1775, 1.442695
        %v1829 = vpow.pop %v1828
        %v1830 = vmul.f32 %v1776, 1.442695
        %v1831 = vpow.pop %v1830
        %v1832 = vmul.f32 %v1777, 1.442695
        %v1833 = vpow.pop %v1832
        %v1834 = vmul.f32 %v1778, 1.442695
        %v1835 = vpow.pop %v1834
        %v1836 = vmul.f32 %v1779, 1.442695
        %v1837 = vpow.pop %v1836
        %v1838 = vmul.f32 %v1780, 1.442695
        %v1839 = vpow.pop %v1838
        %v1840 = vmul.f32 %v1781, 1.442695
        %v1841 = vpow.pop %v1840
        %v1842 = vmul.f32 %v1782, 1.442695
        %v1843 = vpow.pop %v1842
        %v1844 = vmul.f32 %v1783, 1.442695
        %v1845 = vpow.pop %v1844
        %v1846 = vmul.f32 %v1784, 1.442695
        %v1847 = vpow.pop %v1846
        %v1848 = vmul.f32 %v1785, 1.442695
        %v1849 = vpow.pop %v1848
        %v1850 = vadd.f32 %v1787, %v1789
        %v1851 = vadd.f32 %v1850, %v1791
        %v1852 = vadd.f32 %v1851, %v1793
        %v1853 = vadd.f32 %v1852, %v1795
        %v1854 = vadd.f32 %v1853, %v1797
        %v1855 = vadd.f32 %v1854, %v1799
        %v1856 = vadd.f32 %v1855, %v1801
        %v1857 = vadd.f32 %v1856, %v1803
        %v1858 = vadd.f32 %v1857, %v1805
        %v1859 = vadd.f32 %v1858, %v1807
        %v1860 = vadd.f32 %v1859, %v1809
        %v1861 = vadd.f32 %v1860, %v1811
        %v1862 = vadd.f32 %v1861, %v1813
        %v1863 = vadd.f32 %v1862, %v1815
        %v1864 = vadd.f32 %v1863, %v1817
        %v1865 = vadd.f32 %v1864, %v1819
        %v1866 = vadd.f32 %v1865, %v1821
        %v1867 = vadd.f32 %v1866, %v1823
        %v1868 = vadd.f32 %v1867, %v1825
        %v1869 = vadd.f32 %v1868, %v1827
        %v1870 = vadd.f32 %v1869, %v1829
        %v1871 = vadd.f32 %v1870, %v1831
        %v1872 = vadd.f32 %v1871, %v1833
        %v1873 = vadd.f32 %v1872, %v1835
        %v1874 = vadd.f32 %v1873, %v1837
        %v1875 = vadd.f32 %v1874, %v1839
        %v1876 = vadd.f32 %v1875, %v1841
        %v1877 = vadd.f32 %v1876, %v1843
        %v1878 = vadd.f32 %v1877, %v1845
        %v1879 = vadd.f32 %v1878, %v1847
        %v1880 = vadd.f32 %v1879, %v1849
        %v1881 = vrot.slane %v1880, 4
        %v1882 = vadd.f32 %v1880, %v1881
        %v1883 = vrot.slane %v1882, 2
        %v1884 = vadd.f32 %v1882, %v1883
        %v1885 = vrot.slane %v1884, 1
        %v1886 = vadd.f32 %v1884, %v1885
        %v1887 = vpack.c.bf16 %v1789, %v1787
        %v1888 = vpack.c.bf16 %v1793, %v1791
        %v1889 = vpack.c.bf16 %v1797, %v1795
        %v1890 = vpack.c.bf16 %v1801, %v1799
        %v1891 = vpack.c.bf16 %v1805, %v1803
        %v1892 = vpack.c.bf16 %v1809, %v1807
        %v1893 = vpack.c.bf16 %v1813, %v1811
        %v1894 = vpack.c.bf16 %v1817, %v1815
        %v1895 = vpack.c.bf16 %v1821, %v1819
        %v1896 = vpack.c.bf16 %v1825, %v1823
        %v1897 = vpack.c.bf16 %v1829, %v1827
        %v1898 = vpack.c.bf16 %v1833, %v1831
        %v1899 = vpack.c.bf16 %v1837, %v1835
        %v1900 = vpack.c.bf16 %v1841, %v1839
        %v1901 = vpack.c.bf16 %v1845, %v1843
        %v1902 = vpack.c.bf16 %v1849, %v1847
        %1903 = vmatprep.subr.bf16.mxu0 0
        %1904 = vmatpush1.bf16.msra.mxu0 %v1887
        %1905 = vmatprep.subr.bf16.mxu0 0
        %1906 = vmatpush1.bf16.msra.mxu0 %v1888
        %1907 = vmatprep.subr.bf16.mxu0 0
        %1908 = vmatpush1.bf16.msra.mxu0 %v1889
        %1909 = vmatprep.subr.bf16.mxu0 0
        %1910 = vmatpush1.bf16.msra.mxu0 %v1890
        %1911 = vmatprep.subr.bf16.mxu0 0
        %1912 = vmatpush1.bf16.msra.mxu0 %v1891
        %1913 = vmatprep.subr.bf16.mxu0 0
        %1914 = vmatpush1.bf16.msra.mxu0 %v1892
        %1915 = vmatprep.subr.bf16.mxu0 0
        %1916 = vmatpush1.bf16.msra.mxu0 %v1893
        %1917 = vmatprep.subr.bf16.mxu0 0
        %1918 = vmatpush1.bf16.msra.mxu0 %v1894
        %1919 = vmatprep.subr.bf16.mxu0 0
        %1920 = vmatpush1.bf16.msra.mxu0 %v1895
        %1921 = vmatprep.subr.bf16.mxu0 0
        %1922 = vmatpush1.bf16.msra.mxu0 %v1896
        %1923 = vmatprep.subr.bf16.mxu0 0
        %1924 = vmatpush1.bf16.msra.mxu0 %v1897
        %1925 = vmatprep.subr.bf16.mxu0 0
        %1926 = vmatpush1.bf16.msra.mxu0 %v1898
        %1927 = vmatprep.subr.bf16.mxu0 0
        %1928 = vmatpush1.bf16.msra.mxu0 %v1899
        %1929 = vmatprep.subr.bf16.mxu0 0
        %1930 = vmatpush1.bf16.msra.mxu0 %v1900
        %1931 = vmatprep.subr.bf16.mxu0 0
        %1932 = vmatpush1.bf16.msra.mxu0 %v1901
        %1933 = vmatprep.subr.bf16.mxu0 0
        %1934 = vmatpush1.bf16.msra.mxu0 %v1902
        %1935 = vmatprep.mubr.bf16.mxu0 %v1472
        %1936 = vmatmul.mubr.bf16.gmra.mrb[0].mxu0 %v1471
        %v1937 = vpop.f32.mrb[0].mxu0
        %v1938 = vadd.f32 0.0, %v1937
        %v1939 = vpop.f32.mrb[0].mxu0
        %v1940 = vpop.f32.mrb[0].mxu0
        %v1941 = vpop.f32.mrb[0].mxu0
        %1942 = vdwg.mxu0
        %v1943 = vrcp.pop %v1886
        %v1944 = vmul.f32 %v1938, %v1943
        %v1946 = vsel %vm581, %v1464, 0
        %1948 = vmatprep.subr.bf16.mxu0 0
        %1949 = vmatpush1.bf16.msra.mxu0 %v1946
        %1950 = vmatprep.subr.bf16.mxu0 0
        %1951 = vmatpush1.bf16.msra.mxu0 0
        %1952 = vmatprep.subr.bf16.mxu0 0
        %1953 = vmatpush1.bf16.msra.mxu0 0
        %1954 = vmatprep.subr.bf16.mxu0 0
        %1955 = vmatpush1.bf16.msra.mxu0 0
        %1956 = vmatprep.subr.bf16.mxu0 0
        %1957 = vmatpush1.bf16.msra.mxu0 0
        %1958 = vmatprep.subr.bf16.mxu0 0
        %1959 = vmatpush1.bf16.msra.mxu0 0
        %1960 = vmatprep.subr.bf16.mxu0 0
        %1961 = vmatpush1.bf16.msra.mxu0 0
        %1962 = vmatprep.subr.bf16.mxu0 0
        %1963 = vmatpush1.bf16.msra.mxu0 0
        %1964 = vmatprep.subr.bf16.mxu0 0
        %1965 = vmatpush1.bf16.msra.mxu0 0
        %1966 = vmatprep.subr.bf16.mxu0 0
        %1967 = vmatpush1.bf16.msra.mxu0 0
        %1968 = vmatprep.subr.bf16.mxu0 0
        %1969 = vmatpush1.bf16.msra.mxu0 0
        %1970 = vmatprep.subr.bf16.mxu0 0
        %1971 = vmatpush1.bf16.msra.mxu0 0
        %1972 = vmatprep.subr.bf16.mxu0 0
        %1973 = vmatpush1.bf16.msra.mxu0 0
        %1974 = vmatprep.subr.bf16.mxu0 0
        %1975 = vmatpush1.bf16.msra.mxu0 0
        %1976 = vmatprep.subr.bf16.mxu0 0
        %1977 = vmatpush1.bf16.msra.mxu0 0
        %1978 = vmatprep.subr.bf16.mxu0 0
        %1979 = vmatpush1.bf16.msra.mxu0 0
        %1980 = vmatprep.mubr.bf16.mxu0 0
        %1981 = vmatmul.mubr.bf16.gmra.mrb[0].mxu0 %v1506
        %v1982 = vpop.f32.mrb[0].mxu0
        %v1983 = vadd.f32 0.0, %v1982
        %v1984 = vpop.f32.mrb[0].mxu0
        %v1985 = vpop.f32.mrb[0].mxu0
        %v1986 = vadd.f32 0.0, %v1985
        %v1987 = vpop.f32.mrb[0].mxu0
        %1988 = vmatprep.mubr.bf16.mxu0 0
        %1989 = vmatmul.mubr.bf16.gmra.mrb[0].mxu0 %v1509
        %v1990 = vpop.f32.mrb[0].mxu0
        %v1991 = vadd.f32 0.0, %v1990
        %v1992 = vpop.f32.mrb[0].mxu0
        %v1993 = vpop.f32.mrb[0].mxu0
        %v1994 = vadd.f32 0.0, %v1993
        %v1995 = vpop.f32.mrb[0].mxu0
        %1996 = vmatprep.mubr.bf16.mxu0 0
        %1997 = vmatmul.mubr.bf16.gmra.mrb[0].mxu0 %v1512
        %v1998 = vpop.f32.mrb[0].mxu0
        %v1999 = vadd.f32 0.0, %v1998
        %v2000 = vpop.f32.mrb[0].mxu0
        %v2001 = vpop.f32.mrb[0].mxu0
        %v2002 = vadd.f32 0.0, %v2001
        %v2003 = vpop.f32.mrb[0].mxu0
        %2004 = vmatprep.mubr.bf16.mxu0 0
        %2005 = vmatmul.mubr.bf16.gmra.mrb[0].mxu0 %v1515
        %v2006 = vpop.f32.mrb[0].mxu0
        %v2007 = vadd.f32 0.0, %v2006
        %v2008 = vpop.f32.mrb[0].mxu0
        %v2009 = vpop.f32.mrb[0].mxu0
        %v2010 = vadd.f32 0.0, %v2009
        %v2011 = vpop.f32.mrb[0].mxu0
        %2012 = vmatprep.mubr.bf16.mxu0 0
        %2013 = vmatmul.mubr.bf16.gmra.mrb[0].mxu0 %v1518
        %v2014 = vpop.f32.mrb[0].mxu0
        %v2015 = vadd.f32 0.0, %v2014
        %v2016 = vpop.f32.mrb[0].mxu0
        %v2017 = vpop.f32.mrb[0].mxu0
        %v2018 = vadd.f32 0.0, %v2017
        %v2019 = vpop.f32.mrb[0].mxu0
        %2020 = vmatprep.mubr.bf16.mxu0 0
        %2021 = vmatmul.mubr.bf16.gmra.mrb[0].mxu0 %v1521
        %v2022 = vpop.f32.mrb[0].mxu0
        %v2023 = vadd.f32 0.0, %v2022
        %v2024 = vpop.f32.mrb[0].mxu0
        %v2025 = vpop.f32.mrb[0].mxu0
        %v2026 = vadd.f32 0.0, %v2025
        %v2027 = vpop.f32.mrb[0].mxu0
        %2028 = vmatprep.mubr.bf16.mxu0 0
        %2029 = vmatmul.mubr.bf16.gmra.mrb[0].mxu0 %v1524
        %v2030 = vpop.f32.mrb[0].mxu0
        %v2031 = vadd.f32 0.0, %v2030
        %v2032 = vpop.f32.mrb[0].mxu0
        %v2033 = vpop.f32.mrb[0].mxu0
        %v2034 = vadd.f32 0.0, %v2033
        %v2035 = vpop.f32.mrb[0].mxu0
        %2036 = vmatprep.mubr.bf16.mxu0 0
        %2037 = vmatmul.mubr.bf16.gmra.mrb[0].mxu0 %v1527
        %v2038 = vpop.f32.mrb[0].mxu0
        %v2039 = vadd.f32 0.0, %v2038
        %v2040 = vpop.f32.mrb[0].mxu0
        %v2041 = vpop.f32.mrb[0].mxu0
        %v2042 = vadd.f32 0.0, %v2041
        %v2043 = vpop.f32.mrb[0].mxu0
        %2044 = vmatprep.mubr.bf16.mxu0 0
        %2045 = vmatmul.mubr.bf16.gmra.mrb[0].mxu0 %v1530
        %v2046 = vpop.f32.mrb[0].mxu0
        %v2047 = vadd.f32 0.0, %v2046
        %v2048 = vpop.f32.mrb[0].mxu0
        %v2049 = vpop.f32.mrb[0].mxu0
        %v2050 = vadd.f32 0.0, %v2049
        %v2051 = vpop.f32.mrb[0].mxu0
        %2052 = vmatprep.mubr.bf16.mxu0 0
        %2053 = vmatmul.mubr.bf16.gmra.mrb[0].mxu0 %v1533
        %v2054 = vpop.f32.mrb[0].mxu0
        %v2055 = vadd.f32 0.0, %v2054
        %v2056 = vpop.f32.mrb[0].mxu0
        %v2057 = vpop.f32.mrb[0].mxu0
        %v2058 = vadd.f32 0.0, %v2057
        %v2059 = vpop.f32.mrb[0].mxu0
        %2060 = vmatprep.mubr.bf16.mxu0 0
        %2061 = vmatmul.mubr.bf16.gmra.mrb[0].mxu0 %v1536
        %v2062 = vpop.f32.mrb[0].mxu0
        %v2063 = vadd.f32 0.0, %v2062
        %v2064 = vpop.f32.mrb[0].mxu0
        %v2065 = vpop.f32.mrb[0].mxu0
        %v2066 = vadd.f32 0.0, %v2065
        %v2067 = vpop.f32.mrb[0].mxu0
        %2068 = vmatprep.mubr.bf16.mxu0 0
        %2069 = vmatmul.mubr.bf16.gmra.mrb[0].mxu0 %v1539
        %v2070 = vpop.f32.mrb[0].mxu0
        %v2071 = vadd.f32 0.0, %v2070
        %v2072 = vpop.f32.mrb[0].mxu0
        %v2073 = vpop.f32.mrb[0].mxu0
        %v2074 = vadd.f32 0.0, %v2073
        %v2075 = vpop.f32.mrb[0].mxu0
        %2076 = vmatprep.mubr.bf16.mxu0 0
        %2077 = vmatmul.mubr.bf16.gmra.mrb[0].mxu0 %v1542
        %v2078 = vpop.f32.mrb[0].mxu0
        %v2079 = vadd.f32 0.0, %v2078
        %v2080 = vpop.f32.mrb[0].mxu0
        %v2081 = vpop.f32.mrb[0].mxu0
        %v2082 = vadd.f32 0.0, %v2081
        %v2083 = vpop.f32.mrb[0].mxu0
        %2084 = vmatprep.mubr.bf16.mxu0 0
        %2085 = vmatmul.mubr.bf16.gmra.mrb[0].mxu0 %v1545
        %v2086 = vpop.f32.mrb[0].mxu0
        %v2087 = vadd.f32 0.0, %v2086
        %v2088 = vpop.f32.mrb[0].mxu0
        %v2089 = vpop.f32.mrb[0].mxu0
        %v2090 = vadd.f32 0.0, %v2089
        %v2091 = vpop.f32.mrb[0].mxu0
        %2092 = vmatprep.mubr.bf16.mxu0 0
        %2093 = vmatmul.mubr.bf16.gmra.mrb[0].mxu0 %v1548
        %v2094 = vpop.f32.mrb[0].mxu0
        %v2095 = vadd.f32 0.0, %v2094
        %v2096 = vpop.f32.mrb[0].mxu0
        %v2097 = vpop.f32.mrb[0].mxu0
        %v2098 = vadd.f32 0.0, %v2097
        %v2099 = vpop.f32.mrb[0].mxu0
        %2100 = vmatprep.mubr.bf16.mxu0 0
        %2101 = vmatmul.mubr.bf16.gmra.mrb[0].mxu0 %v1551
        %v2102 = vpop.f32.mrb[0].mxu0
        %v2103 = vadd.f32 0.0, %v2102
        %v2104 = vpop.f32.mrb[0].mxu0
        %v2105 = vpop.f32.mrb[0].mxu0
        %v2106 = vadd.f32 0.0, %v2105
        %v2107 = vpop.f32.mrb[0].mxu0
        %2108 = vdwg.mxu0
        %v2109 = vmax.f32 %v1983, %v1999
        %v2110 = vmax.f32 %v1986, %v2002
        %v2111 = vmax.f32 %v1991, %v2007
        %v2112 = vmax.f32 %v1994, %v2010
        %v2113 = vmax.f32 %v2109, %v2015
        %v2114 = vmax.f32 %v2110, %v2018
        %v2115 = vmax.f32 %v2111, %v2023
        %v2116 = vmax.f32 %v2112, %v2026
        %v2117 = vmax.f32 %v2113, %v2031
        %v2118 = vmax.f32 %v2114, %v2034
        %v2119 = vmax.f32 %v2115, %v2039
        %v2120 = vmax.f32 %v2116, %v2042
        %v2121 = vmax.f32 %v2117, %v2047
        %v2122 = vmax.f32 %v2118, %v2050
        %v2123 = vmax.f32 %v2119, %v2055
        %v2124 = vmax.f32 %v2120, %v2058
        %v2125 = vmax.f32 %v2121, %v2063
        %v2126 = vmax.f32 %v2122, %v2066
        %v2127 = vmax.f32 %v2123, %v2071
        %v2128 = vmax.f32 %v2124, %v2074
        %v2129 = vmax.f32 %v2125, %v2079
        %v2130 = vmax.f32 %v2126, %v2082
        %v2131 = vmax.f32 %v2127, %v2087
        %v2132 = vmax.f32 %v2128, %v2090
        %v2133 = vmax.f32 %v2129, %v2095
        %v2134 = vmax.f32 %v2130, %v2098
        %v2135 = vmax.f32 %v2131, %v2103
        %v2136 = vmax.f32 %v2132, %v2106
        %v2137 = vmax.f32 %v2133, %v2134
        %v2138 = vmax.f32 %v2135, %v2136
        %v2139 = vmax.f32 %v2137, %v2138
        %v2140 = vrot.slane %v2139, 4
        %v2141 = vmax.f32 %v2139, %v2140
        %v2142 = vrot.slane %v2141, 2
        %v2143 = vmax.f32 %v2141, %v2142
        %v2144 = vrot.slane %v2143, 1
        %v2145 = vmax.f32 %v2143, %v2144
        %v2146 = vsub.f32 %v1983, %v2145
        %v2147 = vsub.f32 %v1986, %v2145
        %v2148 = vsub.f32 %v1991, %v2145
        %v2149 = vsub.f32 %v1994, %v2145
        %v2150 = vsub.f32 %v1999, %v2145
        %v2151 = vsub.f32 %v2002, %v2145
        %v2152 = vsub.f32 %v2007, %v2145
        %v2153 = vsub.f32 %v2010, %v2145
        %v2154 = vsub.f32 %v2015, %v2145
        %v2155 = vsub.f32 %v2018, %v2145
        %v2156 = vsub.f32 %v2023, %v2145
        %v2157 = vsub.f32 %v2026, %v2145
        %v2158 = vsub.f32 %v2031, %v2145
        %v2159 = vsub.f32 %v2034, %v2145
        %v2160 = vsub.f32 %v2039, %v2145
        %v2161 = vsub.f32 %v2042, %v2145
        %v2162 = vsub.f32 %v2047, %v2145
        %v2163 = vsub.f32 %v2050, %v2145
        %v2164 = vsub.f32 %v2055, %v2145
        %v2165 = vsub.f32 %v2058, %v2145
        %v2166 = vsub.f32 %v2063, %v2145
        %v2167 = vsub.f32 %v2066, %v2145
        %v2168 = vsub.f32 %v2071, %v2145
        %v2169 = vsub.f32 %v2074, %v2145
        %v2170 = vsub.f32 %v2079, %v2145
        %v2171 = vsub.f32 %v2082, %v2145
        %v2172 = vsub.f32 %v2087, %v2145
        %v2173 = vsub.f32 %v2090, %v2145
        %v2174 = vsub.f32 %v2095, %v2145
        %v2175 = vsub.f32 %v2098, %v2145
        %v2176 = vsub.f32 %v2103, %v2145
        %v2177 = vsub.f32 %v2106, %v2145
        %v2178 = vmul.f32 %v2146, 1.442695
        %v2179 = vpow.pop %v2178
        %v2180 = vmul.f32 %v2147, 1.442695
        %v2181 = vpow.pop %v2180
        %v2182 = vmul.f32 %v2148, 1.442695
        %v2183 = vpow.pop %v2182
        %v2184 = vmul.f32 %v2149, 1.442695
        %v2185 = vpow.pop %v2184
        %v2186 = vmul.f32 %v2150, 1.442695
        %v2187 = vpow.pop %v2186
        %v2188 = vmul.f32 %v2151, 1.442695
        %v2189 = vpow.pop %v2188
        %v2190 = vmul.f32 %v2152, 1.442695
        %v2191 = vpow.pop %v2190
        %v2192 = vmul.f32 %v2153, 1.442695
        %v2193 = vpow.pop %v2192
        %v2194 = vmul.f32 %v2154, 1.442695
        %v2195 = vpow.pop %v2194
        %v2196 = vmul.f32 %v2155, 1.442695
        %v2197 = vpow.pop %v2196
        %v2198 = vmul.f32 %v2156, 1.442695
        %v2199 = vpow.pop %v2198
        %v2200 = vmul.f32 %v2157, 1.442695
        %v2201 = vpow.pop %v2200
        %v2202 = vmul.f32 %v2158, 1.442695
        %v2203 = vpow.pop %v2202
        %v2204 = vmul.f32 %v2159, 1.442695
        %v2205 = vpow.pop %v2204
        %v2206 = vmul.f32 %v2160, 1.442695
        %v2207 = vpow.pop %v2206
        %v2208 = vmul.f32 %v2161, 1.442695
        %v2209 = vpow.pop %v2208
        %v2210 = vmul.f32 %v2162, 1.442695
        %v2211 = vpow.pop %v2210
        %v2212 = vmul.f32 %v2163, 1.442695
        %v2213 = vpow.pop %v2212
        %v2214 = vmul.f32 %v2164, 1.442695
        %v2215 = vpow.pop %v2214
        %v2216 = vmul.f32 %v2165, 1.442695
        %v2217 = vpow.pop %v2216
        %v2218 = vmul.f32 %v2166, 1.442695
        %v2219 = vpow.pop %v2218
        %v2220 = vmul.f32 %v2167, 1.442695
        %v2221 = vpow.pop %v2220
        %v2222 = vmul.f32 %v2168, 1.442695
        %v2223 = vpow.pop %v2222
        %v2224 = vmul.f32 %v2169, 1.442695
        %v2225 = vpow.pop %v2224
        %v2226 = vmul.f32 %v2170, 1.442695
        %v2227 = vpow.pop %v2226
        %v2228 = vmul.f32 %v2171, 1.442695
        %v2229 = vpow.pop %v2228
        %v2230 = vmul.f32 %v2172, 1.442695
        %v2231 = vpow.pop %v2230
        %v2232 = vmul.f32 %v2173, 1.442695
        %v2233 = vpow.pop %v2232
        %v2234 = vmul.f32 %v2174, 1.442695
        %v2235 = vpow.pop %v2234
        %v2236 = vmul.f32 %v2175, 1.442695
        %v2237 = vpow.pop %v2236
        %v2238 = vmul.f32 %v2176, 1.442695
        %v2239 = vpow.pop %v2238
        %v2240 = vmul.f32 %v2177, 1.442695
        %v2241 = vpow.pop %v2240
        %v2242 = vadd.f32 %v2179, %v2181
        %v2243 = vadd.f32 %v2242, %v2183
        %v2244 = vadd.f32 %v2243, %v2185
        %v2245 = vadd.f32 %v2244, %v2187
        %v2246 = vadd.f32 %v2245, %v2189
        %v2247 = vadd.f32 %v2246, %v2191
        %v2248 = vadd.f32 %v2247, %v2193
        %v2249 = vadd.f32 %v2248, %v2195
        %v2250 = vadd.f32 %v2249, %v2197
        %v2251 = vadd.f32 %v2250, %v2199
        %v2252 = vadd.f32 %v2251, %v2201
        %v2253 = vadd.f32 %v2252, %v2203
        %v2254 = vadd.f32 %v2253, %v2205
        %v2255 = vadd.f32 %v2254, %v2207
        %v2256 = vadd.f32 %v2255, %v2209
        %v2257 = vadd.f32 %v2256, %v2211
        %v2258 = vadd.f32 %v2257, %v2213
        %v2259 = vadd.f32 %v2258, %v2215
        %v2260 = vadd.f32 %v2259, %v2217
        %v2261 = vadd.f32 %v2260, %v2219
        %v2262 = vadd.f32 %v2261, %v2221
        %v2263 = vadd.f32 %v2262, %v2223
        %v2264 = vadd.f32 %v2263, %v2225
        %v2265 = vadd.f32 %v2264, %v2227
        %v2266 = vadd.f32 %v2265, %v2229
        %v2267 = vadd.f32 %v2266, %v2231
        %v2268 = vadd.f32 %v2267, %v2233
        %v2269 = vadd.f32 %v2268, %v2235
        %v2270 = vadd.f32 %v2269, %v2237
        %v2271 = vadd.f32 %v2270, %v2239
        %v2272 = vadd.f32 %v2271, %v2241
        %v2273 = vrot.slane %v2272, 4
        %v2274 = vadd.f32 %v2272, %v2273
        %v2275 = vrot.slane %v2274, 2
        %v2276 = vadd.f32 %v2274, %v2275
        %v2277 = vrot.slane %v2276, 1
        %v2278 = vadd.f32 %v2276, %v2277
        %v2279 = vpack.c.bf16 %v2181, %v2179
        %v2280 = vpack.c.bf16 %v2185, %v2183
        %v2281 = vpack.c.bf16 %v2189, %v2187
        %v2282 = vpack.c.bf16 %v2193, %v2191
        %v2283 = vpack.c.bf16 %v2197, %v2195
        %v2284 = vpack.c.bf16 %v2201, %v2199
        %v2285 = vpack.c.bf16 %v2205, %v2203
        %v2286 = vpack.c.bf16 %v2209, %v2207
        %v2287 = vpack.c.bf16 %v2213, %v2211
        %v2288 = vpack.c.bf16 %v2217, %v2215
        %v2289 = vpack.c.bf16 %v2221, %v2219
        %v2290 = vpack.c.bf16 %v2225, %v2223
        %v2291 = vpack.c.bf16 %v2229, %v2227
        %v2292 = vpack.c.bf16 %v2233, %v2231
        %v2293 = vpack.c.bf16 %v2237, %v2235
        %v2294 = vpack.c.bf16 %v2241, %v2239
        %2295 = vmatprep.subr.bf16.mxu0 0
        %2296 = vmatpush1.bf16.msra.mxu0 %v2279
        %2297 = vmatprep.subr.bf16.mxu0 0
        %2298 = vmatpush1.bf16.msra.mxu0 %v2280
        %2299 = vmatprep.subr.bf16.mxu0 0
        %2300 = vmatpush1.bf16.msra.mxu0 %v2281
        %2301 = vmatprep.subr.bf16.mxu0 0
        %2302 = vmatpush1.bf16.msra.mxu0 %v2282
        %2303 = vmatprep.subr.bf16.mxu0 0
        %2304 = vmatpush1.bf16.msra.mxu0 %v2283
        %2305 = vmatprep.subr.bf16.mxu0 0
        %2306 = vmatpush1.bf16.msra.mxu0 %v2284
        %2307 = vmatprep.subr.bf16.mxu0 0
        %2308 = vmatpush1.bf16.msra.mxu0 %v2285
        %2309 = vmatprep.subr.bf16.mxu0 0
        %2310 = vmatpush1.bf16.msra.mxu0 %v2286
        %2311 = vmatprep.subr.bf16.mxu0 0
        %2312 = vmatpush1.bf16.msra.mxu0 %v2287
        %2313 = vmatprep.subr.bf16.mxu0 0
        %2314 = vmatpush1.bf16.msra.mxu0 %v2288
        %2315 = vmatprep.subr.bf16.mxu0 0
        %2316 = vmatpush1.bf16.msra.mxu0 %v2289
        %2317 = vmatprep.subr.bf16.mxu0 0
        %2318 = vmatpush1.bf16.msra.mxu0 %v2290
        %2319 = vmatprep.subr.bf16.mxu0 0
        %2320 = vmatpush1.bf16.msra.mxu0 %v2291
        %2321 = vmatprep.subr.bf16.mxu0 0
        %2322 = vmatpush1.bf16.msra.mxu0 %v2292
        %2323 = vmatprep.subr.bf16.mxu0 0
        %2324 = vmatpush1.bf16.msra.mxu0 %v2293
        %2325 = vmatprep.subr.bf16.mxu0 0
        %2326 = vmatpush1.bf16.msra.mxu0 %v2294
        %2327 = vmatprep.mubr.bf16.mxu0 %v1472
        %2328 = vmatmul.mubr.bf16.gmra.mrb[0].mxu0 %v1471
        %v2329 = vpop.f32.mrb[0].mxu0
        %v2330 = vadd.f32 0.0, %v2329
        %v2331 = vpop.f32.mrb[0].mxu0
        %v2332 = vpop.f32.mrb[0].mxu0
        %v2333 = vpop.f32.mrb[0].mxu0
        %2334 = vdwg.mxu0
        %v2335 = vrcp.pop %v2278
        %v2336 = vmul.f32 %v2330, %v2335
        %v2337 = vld [vmem:[%s3 + $0x8] sm:$0xff]
        %v2338 = vpack.c.bf16 %v2337, %v2337
        %v2339 = vpack.c.bf16 %v1944, %v1944
        %v2340 = vpack.c.bf16 %v2336, %v2336
        %2341 = vxpose.xlu0.c.b16.start [1/8] %v2338, 128
        %2342 = vxpose.xlu0.c.b16.cont [2/8] 0, 128
        %2343 = vxpose.xlu0.c.b16.cont [3/8] 0, 128
        %2344 = vxpose.xlu0.c.b16.cont [4/8] 0, 128
        %2345 = vxpose.xlu0.c.b16.cont [5/8] 0, 128
        %2346 = vxpose.xlu0.c.b16.cont [6/8] 0, 128
        %2347 = vxpose.xlu0.c.b16.cont [7/8] 0, 128
        %2348 = vxpose.xlu0.c.b16.end [8/8] 0, 128
        %v2349 = vpop.trf.xlu0
        %v2350 = vpop.trf.xlu0
        %v2351 = vpop.trf.xlu0
        %v2352 = vpop.trf.xlu0
        %v2353 = vpop.trf.xlu0
        %v2354 = vpop.trf.xlu0
        %v2355 = vpop.trf.xlu0
        %v2356 = vpop.trf.xlu0
        %v2358 = vsel %vm532, %v2349, 0
        %v2361 = vsel %vm532, %v2350, 0
        %v2364 = vsel %vm581, %v2339, 0
        %v2367 = vsel %vm581, %v2340, 0
        %2369 = vmatprep.subr.bf16.mxu0 %v2367
        %2370 = vmatpush1.bf16.msra.mxu0 %v2364
        %2371 = vmatprep.subr.bf16.mxu0 0
        %2372 = vmatpush1.bf16.msra.mxu0 0
        %2373 = vmatprep.subr.bf16.mxu0 0
        %2374 = vmatpush1.bf16.msra.mxu0 0
        %2375 = vmatprep.subr.bf16.mxu0 0
        %2376 = vmatpush1.bf16.msra.mxu0 0
        %2377 = vmatprep.subr.bf16.mxu0 0
        %2378 = vmatpush1.bf16.msra.mxu0 0
        %2379 = vmatprep.subr.bf16.mxu0 0
        %2380 = vmatpush1.bf16.msra.mxu0 0
        %2381 = vmatprep.subr.bf16.mxu0 0
        %2382 = vmatpush1.bf16.msra.mxu0 0
        %2383 = vmatprep.subr.bf16.mxu0 0
        %2384 = vmatpush1.bf16.msra.mxu0 0
        %2385 = vmatprep.subr.bf16.mxu0 0
        %2386 = vmatpush1.bf16.msra.mxu0 0
        %2387 = vmatprep.subr.bf16.mxu0 0
        %2388 = vmatpush1.bf16.msra.mxu0 0
        %2389 = vmatprep.subr.bf16.mxu0 0
        %2390 = vmatpush1.bf16.msra.mxu0 0
        %2391 = vmatprep.subr.bf16.mxu0 0
        %2392 = vmatpush1.bf16.msra.mxu0 0
        %2393 = vmatprep.subr.bf16.mxu0 0
        %2394 = vmatpush1.bf16.msra.mxu0 0
        %2395 = vmatprep.subr.bf16.mxu0 0
        %2396 = vmatpush1.bf16.msra.mxu0 0
        %2397 = vmatprep.subr.bf16.mxu0 0
        %2398 = vmatpush1.bf16.msra.mxu0 0
        %2399 = vmatprep.subr.bf16.mxu0 0
        %2400 = vmatpush1.bf16.msra.mxu0 0
        %2401 = vmatprep.mubr.bf16.mxu0 0
        %2402 = vmatmul.mubr.bf16.gmra.mrb[0].mxu0 %v2358
        %v2403 = vpop.f32.mrb[0].mxu0
        %v2404 = vadd.f32 0.0, %v2403
        %v2405 = vpop.f32.mrb[0].mxu0
        %v2406 = vadd.f32 0.0, %v2405
        %v2407 = vpop.f32.mrb[0].mxu0
        %v2408 = vadd.f32 0.0, %v2407
        %v2409 = vpop.f32.mrb[0].mxu0
        %v2410 = vadd.f32 0.0, %v2409
        %2411 = vmatprep.mubr.bf16.mxu0 0
        %2412 = vmatmul.mubr.bf16.gmra.mrb[0].mxu0 %v2361
        %v2413 = vpop.f32.mrb[0].mxu0
        %v2414 = vadd.f32 0.0, %v2413
        %v2415 = vpop.f32.mrb[0].mxu0
        %v2416 = vadd.f32 0.0, %v2415
        %v2417 = vpop.f32.mrb[0].mxu0
        %v2418 = vadd.f32 0.0, %v2417
        %v2419 = vpop.f32.mrb[0].mxu0
        %v2420 = vadd.f32 0.0, %v2419
        %2421 = vdwg.mxu0
        %v2422 = vadd.f32 %v1451, %v2404
        %v2423 = vadd.f32 %v1452, %v2406
        %v2424 = vadd.f32 %v1453, %v2408
        %v2425 = vadd.f32 %v1454, %v2410
        %v2426 = vadd.f32 %v1455, %v2414
        %v2427 = vadd.f32 %v1456, %v2416
        %v2428 = vadd.f32 %v1457, %v2418
        %v2429 = vadd.f32 %v1458, %v2420
        %v2430 = vld [vmem:[#allocation2 + $0x20] sm:$0xff]
        %v2431 = vld [vmem:[#allocation2 + $0x28] sm:$0xff]
        %v2432 = vmul.f32 %v2430, 0.35355338
        %v2433 = vmul.f32 %v2431, 0.35355338
        %v2434 = vpack.c.bf16 %v2432, %v2432
        %v2435 = vpack.c.bf16 %v2433, %v2433
        %v2436 = vld [vmem:[#allocation2 + $0x60] sm:$0xff]
        %v2437 = vld [vmem:[#allocation2 + $0x68] sm:$0xff]
        %v2438 = vpack.c.bf16 %v2436, %v2436
        %v2439 = vpack.c.bf16 %v2437, %v2437
        %v2440 = vld [vmem:[#allocation2 + $0xa0] sm:$0xff]
        %v2441 = vld [vmem:[#allocation2 + $0xa8] sm:$0xff]
        %v2442 = vpack.c.bf16 %v2440, %v2440
        %v2443 = vpack.c.bf16 %v2441, %v2441
        %2444 = vxpose.xlu0.c.b16.start [1/8] %v2438, 128
        %2445 = vxpose.xlu0.c.b16.cont [2/8] 0, 128
        %2446 = vxpose.xlu0.c.b16.cont [3/8] 0, 128
        %2447 = vxpose.xlu0.c.b16.cont [4/8] 0, 128
        %2448 = vxpose.xlu0.c.b16.cont [5/8] 0, 128
        %2449 = vxpose.xlu0.c.b16.cont [6/8] 0, 128
        %2450 = vxpose.xlu0.c.b16.cont [7/8] 0, 128
        %2451 = vxpose.xlu0.c.b16.end [8/8] 0, 128
        %v2452 = vpop.trf.xlu0
        %v2453 = vpop.trf.xlu0
        %v2454 = vpop.trf.xlu0
        %v2455 = vpop.trf.xlu0
        %v2456 = vpop.trf.xlu0
        %v2457 = vpop.trf.xlu0
        %v2458 = vpop.trf.xlu0
        %v2459 = vpop.trf.xlu0
        %2460 = vxpose.xlu0.c.b16.start [1/8] %v2439, 128
        %2461 = vxpose.xlu0.c.b16.cont [2/8] 0, 128
        %2462 = vxpose.xlu0.c.b16.cont [3/8] 0, 128
        %2463 = vxpose.xlu0.c.b16.cont [4/8] 0, 128
        %2464 = vxpose.xlu0.c.b16.cont [5/8] 0, 128
        %2465 = vxpose.xlu0.c.b16.cont [6/8] 0, 128
        %2466 = vxpose.xlu0.c.b16.cont [7/8] 0, 128
        %2467 = vxpose.xlu0.c.b16.end [8/8] 0, 128
        %v2468 = vpop.trf.xlu0
        %v2469 = vpop.trf.xlu0
        %v2470 = vpop.trf.xlu0
        %v2471 = vpop.trf.xlu0
        %v2472 = vpop.trf.xlu0
        %v2473 = vpop.trf.xlu0
        %v2474 = vpop.trf.xlu0
        %v2475 = vpop.trf.xlu0
        %v2477 = vsel %vm532, %v2452, 0
        %v2480 = vsel %vm532, %v2453, 0
        %v2483 = vsel %vm532, %v2454, 0
        %v2486 = vsel %vm532, %v2455, 0
        %v2489 = vsel %vm532, %v2456, 0
        %v2492 = vsel %vm532, %v2457, 0
        %v2495 = vsel %vm532, %v2458, 0
        %v2498 = vsel %vm532, %v2459, 0
        %v2501 = vsel %vm532, %v2468, 0
        %v2504 = vsel %vm532, %v2469, 0
        %v2507 = vsel %vm532, %v2470, 0
        %v2510 = vsel %vm532, %v2471, 0
        %v2513 = vsel %vm532, %v2472, 0
        %v2516 = vsel %vm532, %v2473, 0
        %v2519 = vsel %vm532, %v2474, 0
        %v2522 = vsel %vm532, %v2475, 0
        %v2525 = vsel %vm581, %v2434, 0
        %2527 = vmatprep.subr.bf16.mxu0 0
        %2528 = vmatpush1.bf16.msra.mxu0 %v2525
        %2529 = vmatprep.subr.bf16.mxu0 0
        %2530 = vmatpush1.bf16.msra.mxu0 0
        %2531 = vmatprep.subr.bf16.mxu0 0
        %2532 = vmatpush1.bf16.msra.mxu0 0
        %2533 = vmatprep.subr.bf16.mxu0 0
        %2534 = vmatpush1.bf16.msra.mxu0 0
        %2535 = vmatprep.subr.bf16.mxu0 0
        %2536 = vmatpush1.bf16.msra.mxu0 0
        %2537 = vmatprep.subr.bf16.mxu0 0
        %2538 = vmatpush1.bf16.msra.mxu0 0
        %2539 = vmatprep.subr.bf16.mxu0 0
        %2540 = vmatpush1.bf16.msra.mxu0 0
        %2541 = vmatprep.subr.bf16.mxu0 0
        %2542 = vmatpush1.bf16.msra.mxu0 0
        %2543 = vmatprep.subr.bf16.mxu0 0
        %2544 = vmatpush1.bf16.msra.mxu0 0
        %2545 = vmatprep.subr.bf16.mxu0 0
        %2546 = vmatpush1.bf16.msra.mxu0 0
        %2547 = vmatprep.subr.bf16.mxu0 0
        %2548 = vmatpush1.bf16.msra.mxu0 0
        %2549 = vmatprep.subr.bf16.mxu0 0
        %2550 = vmatpush1.bf16.msra.mxu0 0
        %2551 = vmatprep.subr.bf16.mxu0 0
        %2552 = vmatpush1.bf16.msra.mxu0 0
        %2553 = vmatprep.subr.bf16.mxu0 0
        %2554 = vmatpush1.bf16.msra.mxu0 0
        %2555 = vmatprep.subr.bf16.mxu0 0
        %2556 = vmatpush1.bf16.msra.mxu0 0
        %2557 = vmatprep.subr.bf16.mxu0 0
        %2558 = vmatpush1.bf16.msra.mxu0 0
        %2559 = vmatprep.mubr.bf16.mxu0 0
        %2560 = vmatmul.mubr.bf16.gmra.mrb[0].mxu0 %v2477
        %v2561 = vpop.f32.mrb[0].mxu0
        %v2562 = vadd.f32 0.0, %v2561
        %v2563 = vpop.f32.mrb[0].mxu0
        %v2564 = vpop.f32.mrb[0].mxu0
        %v2565 = vadd.f32 0.0, %v2564
        %v2566 = vpop.f32.mrb[0].mxu0
        %2567 = vmatprep.mubr.bf16.mxu0 0
        %2568 = vmatmul.mubr.bf16.gmra.mrb[0].mxu0 %v2480
        %v2569 = vpop.f32.mrb[0].mxu0
        %v2570 = vadd.f32 0.0, %v2569
        %v2571 = vpop.f32.mrb[0].mxu0
        %v2572 = vpop.f32.mrb[0].mxu0
        %v2573 = vadd.f32 0.0, %v2572
        %v2574 = vpop.f32.mrb[0].mxu0
        %2575 = vmatprep.mubr.bf16.mxu0 0
        %2576 = vmatmul.mubr.bf16.gmra.mrb[0].mxu0 %v2483
        %v2577 = vpop.f32.mrb[0].mxu0
        %v2578 = vadd.f32 0.0, %v2577
        %v2579 = vpop.f32.mrb[0].mxu0
        %v2580 = vpop.f32.mrb[0].mxu0
        %v2581 = vadd.f32 0.0, %v2580
        %v2582 = vpop.f32.mrb[0].mxu0
        %2583 = vmatprep.mubr.bf16.mxu0 0
        %2584 = vmatmul.mubr.bf16.gmra.mrb[0].mxu0 %v2486
        %v2585 = vpop.f32.mrb[0].mxu0
        %v2586 = vadd.f32 0.0, %v2585
        %v2587 = vpop.f32.mrb[0].mxu0
        %v2588 = vpop.f32.mrb[0].mxu0
        %v2589 = vadd.f32 0.0, %v2588
        %v2590 = vpop.f32.mrb[0].mxu0
        %2591 = vmatprep.mubr.bf16.mxu0 0
        %2592 = vmatmul.mubr.bf16.gmra.mrb[0].mxu0 %v2489
        %v2593 = vpop.f32.mrb[0].mxu0
        %v2594 = vadd.f32 0.0, %v2593
        %v2595 = vpop.f32.mrb[0].mxu0
        %v2596 = vpop.f32.mrb[0].mxu0
        %v2597 = vadd.f32 0.0, %v2596
        %v2598 = vpop.f32.mrb[0].mxu0
        %2599 = vmatprep.mubr.bf16.mxu0 0
        %2600 = vmatmul.mubr.bf16.gmra.mrb[0].mxu0 %v2492
        %v2601 = vpop.f32.mrb[0].mxu0
        %v2602 = vadd.f32 0.0, %v2601
        %v2603 = vpop.f32.mrb[0].mxu0
        %v2604 = vpop.f32.mrb[0].mxu0
        %v2605 = vadd.f32 0.0, %v2604
        %v2606 = vpop.f32.mrb[0].mxu0
        %2607 = vmatprep.mubr.bf16.mxu0 0
        %2608 = vmatmul.mubr.bf16.gmra.mrb[0].mxu0 %v2495
        %v2609 = vpop.f32.mrb[0].mxu0
        %v2610 = vadd.f32 0.0, %v2609
        %v2611 = vpop.f32.mrb[0].mxu0
        %v2612 = vpop.f32.mrb[0].mxu0
        %v2613 = vadd.f32 0.0, %v2612
        %v2614 = vpop.f32.mrb[0].mxu0
        %2615 = vmatprep.mubr.bf16.mxu0 0
        %2616 = vmatmul.mubr.bf16.gmra.mrb[0].mxu0 %v2498
        %v2617 = vpop.f32.mrb[0].mxu0
        %v2618 = vadd.f32 0.0, %v2617
        %v2619 = vpop.f32.mrb[0].mxu0
        %v2620 = vpop.f32.mrb[0].mxu0
        %v2621 = vadd.f32 0.0, %v2620
        %v2622 = vpop.f32.mrb[0].mxu0
        %2623 = vmatprep.mubr.bf16.mxu0 0
        %2624 = vmatmul.mubr.bf16.gmra.mrb[0].mxu0 %v2501
        %v2625 = vpop.f32.mrb[0].mxu0
        %v2626 = vadd.f32 0.0, %v2625
        %v2627 = vpop.f32.mrb[0].mxu0
        %v2628 = vpop.f32.mrb[0].mxu0
        %v2629 = vadd.f32 0.0, %v2628
        %v2630 = vpop.f32.mrb[0].mxu0
        %2631 = vmatprep.mubr.bf16.mxu0 0
        %2632 = vmatmul.mubr.bf16.gmra.mrb[0].mxu0 %v2504
        %v2633 = vpop.f32.mrb[0].mxu0
        %v2634 = vadd.f32 0.0, %v2633
        %v2635 = vpop.f32.mrb[0].mxu0
        %v2636 = vpop.f32.mrb[0].mxu0
        %v2637 = vadd.f32 0.0, %v2636
        %v2638 = vpop.f32.mrb[0].mxu0
        %2639 = vmatprep.mubr.bf16.mxu0 0
        %2640 = vmatmul.mubr.bf16.gmra.mrb[0].mxu0 %v2507
        %v2641 = vpop.f32.mrb[0].mxu0
        %v2642 = vadd.f32 0.0, %v2641
        %v2643 = vpop.f32.mrb[0].mxu0
        %v2644 = vpop.f32.mrb[0].mxu0
        %v2645 = vadd.f32 0.0, %v2644
        %v2646 = vpop.f32.mrb[0].mxu0
        %2647 = vmatprep.mubr.bf16.mxu0 0
        %2648 = vmatmul.mubr.bf16.gmra.mrb[0].mxu0 %v2510
        %v2649 = vpop.f32.mrb[0].mxu0
        %v2650 = vadd.f32 0.0, %v2649
        %v2651 = vpop.f32.mrb[0].mxu0
        %v2652 = vpop.f32.mrb[0].mxu0
        %v2653 = vadd.f32 0.0, %v2652
        %v2654 = vpop.f32.mrb[0].mxu0
        %2655 = vmatprep.mubr.bf16.mxu0 0
        %2656 = vmatmul.mubr.bf16.gmra.mrb[0].mxu0 %v2513
        %v2657 = vpop.f32.mrb[0].mxu0
        %v2658 = vadd.f32 0.0, %v2657
        %v2659 = vpop.f32.mrb[0].mxu0
        %v2660 = vpop.f32.mrb[0].mxu0
        %v2661 = vadd.f32 0.0, %v2660
        %v2662 = vpop.f32.mrb[0].mxu0
        %2663 = vmatprep.mubr.bf16.mxu0 0
        %2664 = vmatmul.mubr.bf16.gmra.mrb[0].mxu0 %v2516
        %v2665 = vpop.f32.mrb[0].mxu0
        %v2666 = vadd.f32 0.0, %v2665
        %v2667 = vpop.f32.mrb[0].mxu0
        %v2668 = vpop.f32.mrb[0].mxu0
        %v2669 = vadd.f32 0.0, %v2668
        %v2670 = vpop.f32.mrb[0].mxu0
        %2671 = vmatprep.mubr.bf16.mxu0 0
        %2672 = vmatmul.mubr.bf16.gmra.mrb[0].mxu0 %v2519
        %v2673 = vpop.f32.mrb[0].mxu0
        %v2674 = vadd.f32 0.0, %v2673
        %v2675 = vpop.f32.mrb[0].mxu0
        %v2676 = vpop.f32.mrb[0].mxu0
        %v2677 = vadd.f32 0.0, %v2676
        %v2678 = vpop.f32.mrb[0].mxu0
        %2679 = vmatprep.mubr.bf16.mxu0 0
        %2680 = vmatmul.mubr.bf16.gmra.mrb[0].mxu0 %v2522
        %v2681 = vpop.f32.mrb[0].mxu0
        %v2682 = vadd.f32 0.0, %v2681
        %v2683 = vpop.f32.mrb[0].mxu0
        %v2684 = vpop.f32.mrb[0].mxu0
        %v2685 = vadd.f32 0.0, %v2684
        %v2686 = vpop.f32.mrb[0].mxu0
        %2687 = vdwg.mxu0
        %v2688 = vmax.f32 %v2562, %v2578
        %v2689 = vmax.f32 %v2565, %v2581
        %v2690 = vmax.f32 %v2570, %v2586
        %v2691 = vmax.f32 %v2573, %v2589
        %v2692 = vmax.f32 %v2688, %v2594
        %v2693 = vmax.f32 %v2689, %v2597
        %v2694 = vmax.f32 %v2690, %v2602
        %v2695 = vmax.f32 %v2691, %v2605
        %v2696 = vmax.f32 %v2692, %v2610
        %v2697 = vmax.f32 %v2693, %v2613
        %v2698 = vmax.f32 %v2694, %v2618
        %v2699 = vmax.f32 %v2695, %v2621
        %v2700 = vmax.f32 %v2696, %v2626
        %v2701 = vmax.f32 %v2697, %v2629
        %v2702 = vmax.f32 %v2698, %v2634
        %v2703 = vmax.f32 %v2699, %v2637
        %v2704 = vmax.f32 %v2700, %v2642
        %v2705 = vmax.f32 %v2701, %v2645
        %v2706 = vmax.f32 %v2702, %v2650
        %v2707 = vmax.f32 %v2703, %v2653
        %v2708 = vmax.f32 %v2704, %v2658
        %v2709 = vmax.f32 %v2705, %v2661
        %v2710 = vmax.f32 %v2706, %v2666
        %v2711 = vmax.f32 %v2707, %v2669
        %v2712 = vmax.f32 %v2708, %v2674
        %v2713 = vmax.f32 %v2709, %v2677
        %v2714 = vmax.f32 %v2710, %v2682
        %v2715 = vmax.f32 %v2711, %v2685
        %v2716 = vmax.f32 %v2712, %v2713
        %v2717 = vmax.f32 %v2714, %v2715
        %v2718 = vmax.f32 %v2716, %v2717
        %v2719 = vrot.slane %v2718, 4
        %v2720 = vmax.f32 %v2718, %v2719
        %v2721 = vrot.slane %v2720, 2
        %v2722 = vmax.f32 %v2720, %v2721
        %v2723 = vrot.slane %v2722, 1
        %v2724 = vmax.f32 %v2722, %v2723
        %v2725 = vsub.f32 %v2562, %v2724
        %v2726 = vsub.f32 %v2565, %v2724
        %v2727 = vsub.f32 %v2570, %v2724
        %v2728 = vsub.f32 %v2573, %v2724
        %v2729 = vsub.f32 %v2578, %v2724
        %v2730 = vsub.f32 %v2581, %v2724
        %v2731 = vsub.f32 %v2586, %v2724
        %v2732 = vsub.f32 %v2589, %v2724
        %v2733 = vsub.f32 %v2594, %v2724
        %v2734 = vsub.f32 %v2597, %v2724
        %v2735 = vsub.f32 %v2602, %v2724
        %v2736 = vsub.f32 %v2605, %v2724
        %v2737 = vsub.f32 %v2610, %v2724
        %v2738 = vsub.f32 %v2613, %v2724
        %v2739 = vsub.f32 %v2618, %v2724
        %v2740 = vsub.f32 %v2621, %v2724
        %v2741 = vsub.f32 %v2626, %v2724
        %v2742 = vsub.f32 %v2629, %v2724
        %v2743 = vsub.f32 %v2634, %v2724
        %v2744 = vsub.f32 %v2637, %v2724
        %v2745 = vsub.f32 %v2642, %v2724
        %v2746 = vsub.f32 %v2645, %v2724
        %v2747 = vsub.f32 %v2650, %v2724
        %v2748 = vsub.f32 %v2653, %v2724
        %v2749 = vsub.f32 %v2658, %v2724
        %v2750 = vsub.f32 %v2661, %v2724
        %v2751 = vsub.f32 %v2666, %v2724
        %v2752 = vsub.f32 %v2669, %v2724
        %v2753 = vsub.f32 %v2674, %v2724
        %v2754 = vsub.f32 %v2677, %v2724
        %v2755 = vsub.f32 %v2682, %v2724
        %v2756 = vsub.f32 %v2685, %v2724
        %v2757 = vmul.f32 %v2725, 1.442695
        %v2758 = vpow.pop %v2757
        %v2759 = vmul.f32 %v2726, 1.442695
        %v2760 = vpow.pop %v2759
        %v2761 = vmul.f32 %v2727, 1.442695
        %v2762 = vpow.pop %v2761
        %v2763 = vmul.f32 %v2728, 1.442695
        %v2764 = vpow.pop %v2763
        %v2765 = vmul.f32 %v2729, 1.442695
        %v2766 = vpow.pop %v2765
        %v2767 = vmul.f32 %v2730, 1.442695
        %v2768 = vpow.pop %v2767
        %v2769 = vmul.f32 %v2731, 1.442695
        %v2770 = vpow.pop %v2769
        %v2771 = vmul.f32 %v2732, 1.442695
        %v2772 = vpow.pop %v2771
        %v2773 = vmul.f32 %v2733, 1.442695
        %v2774 = vpow.pop %v2773
        %v2775 = vmul.f32 %v2734, 1.442695
        %v2776 = vpow.pop %v2775
        %v2777 = vmul.f32 %v2735, 1.442695
        %v2778 = vpow.pop %v2777
        %v2779 = vmul.f32 %v2736, 1.442695
        %v2780 = vpow.pop %v2779
        %v2781 = vmul.f32 %v2737, 1.442695
        %v2782 = vpow.pop %v2781
        %v2783 = vmul.f32 %v2738, 1.442695
        %v2784 = vpow.pop %v2783
        %v2785 = vmul.f32 %v2739, 1.442695
        %v2786 = vpow.pop %v2785
        %v2787 = vmul.f32 %v2740, 1.442695
        %v2788 = vpow.pop %v2787
        %v2789 = vmul.f32 %v2741, 1.442695
        %v2790 = vpow.pop %v2789
        %v2791 = vmul.f32 %v2742, 1.442695
        %v2792 = vpow.pop %v2791
        %v2793 = vmul.f32 %v2743, 1.442695
        %v2794 = vpow.pop %v2793
        %v2795 = vmul.f32 %v2744, 1.442695
        %v2796 = vpow.pop %v2795
        %v2797 = vmul.f32 %v2745, 1.442695
        %v2798 = vpow.pop %v2797
        %v2799 = vmul.f32 %v2746, 1.442695
        %v2800 = vpow.pop %v2799
        %v2801 = vmul.f32 %v2747, 1.442695
        %v2802 = vpow.pop %v2801
        %v2803 = vmul.f32 %v2748, 1.442695
        %v2804 = vpow.pop %v2803
        %v2805 = vmul.f32 %v2749, 1.442695
        %v2806 = vpow.pop %v2805
        %v2807 = vmul.f32 %v2750, 1.442695
        %v2808 = vpow.pop %v2807
        %v2809 = vmul.f32 %v2751, 1.442695
        %v2810 = vpow.pop %v2809
        %v2811 = vmul.f32 %v2752, 1.442695
        %v2812 = vpow.pop %v2811
        %v2813 = vmul.f32 %v2753, 1.442695
        %v2814 = vpow.pop %v2813
        %v2815 = vmul.f32 %v2754, 1.442695
        %v2816 = vpow.pop %v2815
        %v2817 = vmul.f32 %v2755, 1.442695
        %v2818 = vpow.pop %v2817
        %v2819 = vmul.f32 %v2756, 1.442695
        %v2820 = vpow.pop %v2819
        %v2821 = vadd.f32 %v2758, %v2760
        %v2822 = vadd.f32 %v2821, %v2762
        %v2823 = vadd.f32 %v2822, %v2764
        %v2824 = vadd.f32 %v2823, %v2766
        %v2825 = vadd.f32 %v2824, %v2768
        %v2826 = vadd.f32 %v2825, %v2770
        %v2827 = vadd.f32 %v2826, %v2772
        %v2828 = vadd.f32 %v2827, %v2774
        %v2829 = vadd.f32 %v2828, %v2776
        %v2830 = vadd.f32 %v2829, %v2778
        %v2831 = vadd.f32 %v2830, %v2780
        %v2832 = vadd.f32 %v2831, %v2782
        %v2833 = vadd.f32 %v2832, %v2784
        %v2834 = vadd.f32 %v2833, %v2786
        %v2835 = vadd.f32 %v2834, %v2788
        %v2836 = vadd.f32 %v2835, %v2790
        %v2837 = vadd.f32 %v2836, %v2792
        %v2838 = vadd.f32 %v2837, %v2794
        %v2839 = vadd.f32 %v2838, %v2796
        %v2840 = vadd.f32 %v2839, %v2798
        %v2841 = vadd.f32 %v2840, %v2800
        %v2842 = vadd.f32 %v2841, %v2802
        %v2843 = vadd.f32 %v2842, %v2804
        %v2844 = vadd.f32 %v2843, %v2806
        %v2845 = vadd.f32 %v2844, %v2808
        %v2846 = vadd.f32 %v2845, %v2810
        %v2847 = vadd.f32 %v2846, %v2812
        %v2848 = vadd.f32 %v2847, %v2814
        %v2849 = vadd.f32 %v2848, %v2816
        %v2850 = vadd.f32 %v2849, %v2818
        %v2851 = vadd.f32 %v2850, %v2820
        %v2852 = vrot.slane %v2851, 4
        %v2853 = vadd.f32 %v2851, %v2852
        %v2854 = vrot.slane %v2853, 2
        %v2855 = vadd.f32 %v2853, %v2854
        %v2856 = vrot.slane %v2855, 1
        %v2857 = vadd.f32 %v2855, %v2856
        %v2858 = vpack.c.bf16 %v2760, %v2758
        %v2859 = vpack.c.bf16 %v2764, %v2762
        %v2860 = vpack.c.bf16 %v2768, %v2766
        %v2861 = vpack.c.bf16 %v2772, %v2770
        %v2862 = vpack.c.bf16 %v2776, %v2774
        %v2863 = vpack.c.bf16 %v2780, %v2778
        %v2864 = vpack.c.bf16 %v2784, %v2782
        %v2865 = vpack.c.bf16 %v2788, %v2786
        %v2866 = vpack.c.bf16 %v2792, %v2790
        %v2867 = vpack.c.bf16 %v2796, %v2794
        %v2868 = vpack.c.bf16 %v2800, %v2798
        %v2869 = vpack.c.bf16 %v2804, %v2802
        %v2870 = vpack.c.bf16 %v2808, %v2806
        %v2871 = vpack.c.bf16 %v2812, %v2810
        %v2872 = vpack.c.bf16 %v2816, %v2814
        %v2873 = vpack.c.bf16 %v2820, %v2818
        %2874 = vmatprep.subr.bf16.mxu0 0
        %2875 = vmatpush1.bf16.msra.mxu0 %v2858
        %2876 = vmatprep.subr.bf16.mxu0 0
        %2877 = vmatpush1.bf16.msra.mxu0 %v2859
        %2878 = vmatprep.subr.bf16.mxu0 0
        %2879 = vmatpush1.bf16.msra.mxu0 %v2860
        %2880 = vmatprep.subr.bf16.mxu0 0
        %2881 = vmatpush1.bf16.msra.mxu0 %v2861
        %2882 = vmatprep.subr.bf16.mxu0 0
        %2883 = vmatpush1.bf16.msra.mxu0 %v2862
        %2884 = vmatprep.subr.bf16.mxu0 0
        %2885 = vmatpush1.bf16.msra.mxu0 %v2863
        %2886 = vmatprep.subr.bf16.mxu0 0
        %2887 = vmatpush1.bf16.msra.mxu0 %v2864
        %2888 = vmatprep.subr.bf16.mxu0 0
        %2889 = vmatpush1.bf16.msra.mxu0 %v2865
        %2890 = vmatprep.subr.bf16.mxu0 0
        %2891 = vmatpush1.bf16.msra.mxu0 %v2866
        %2892 = vmatprep.subr.bf16.mxu0 0
        %2893 = vmatpush1.bf16.msra.mxu0 %v2867
        %2894 = vmatprep.subr.bf16.mxu0 0
        %2895 = vmatpush1.bf16.msra.mxu0 %v2868
        %2896 = vmatprep.subr.bf16.mxu0 0
        %2897 = vmatpush1.bf16.msra.mxu0 %v2869
        %2898 = vmatprep.subr.bf16.mxu0 0
        %2899 = vmatpush1.bf16.msra.mxu0 %v2870
        %2900 = vmatprep.subr.bf16.mxu0 0
        %2901 = vmatpush1.bf16.msra.mxu0 %v2871
        %2902 = vmatprep.subr.bf16.mxu0 0
        %2903 = vmatpush1.bf16.msra.mxu0 %v2872
        %2904 = vmatprep.subr.bf16.mxu0 0
        %2905 = vmatpush1.bf16.msra.mxu0 %v2873
        %2906 = vmatprep.mubr.bf16.mxu0 %v2443
        %2907 = vmatmul.mubr.bf16.gmra.mrb[0].mxu0 %v2442
        %v2908 = vpop.f32.mrb[0].mxu0
        %v2909 = vadd.f32 0.0, %v2908
        %v2910 = vpop.f32.mrb[0].mxu0
        %v2911 = vpop.f32.mrb[0].mxu0
        %v2912 = vpop.f32.mrb[0].mxu0
        %2913 = vdwg.mxu0
        %v2914 = vrcp.pop %v2857
        %v2915 = vmul.f32 %v2909, %v2914
        %v2917 = vsel %vm581, %v2435, 0
        %2919 = vmatprep.subr.bf16.mxu0 0
        %2920 = vmatpush1.bf16.msra.mxu0 %v2917
        %2921 = vmatprep.subr.bf16.mxu0 0
        %2922 = vmatpush1.bf16.msra.mxu0 0
        %2923 = vmatprep.subr.bf16.mxu0 0
        %2924 = vmatpush1.bf16.msra.mxu0 0
        %2925 = vmatprep.subr.bf16.mxu0 0
        %2926 = vmatpush1.bf16.msra.mxu0 0
        %2927 = vmatprep.subr.bf16.mxu0 0
        %2928 = vmatpush1.bf16.msra.mxu0 0
        %2929 = vmatprep.subr.bf16.mxu0 0
        %2930 = vmatpush1.bf16.msra.mxu0 0
        %2931 = vmatprep.subr.bf16.mxu0 0
        %2932 = vmatpush1.bf16.msra.mxu0 0
        %2933 = vmatprep.subr.bf16.mxu0 0
        %2934 = vmatpush1.bf16.msra.mxu0 0
        %2935 = vmatprep.subr.bf16.mxu0 0
        %2936 = vmatpush1.bf16.msra.mxu0 0
        %2937 = vmatprep.subr.bf16.mxu0 0
        %2938 = vmatpush1.bf16.msra.mxu0 0
        %2939 = vmatprep.subr.bf16.mxu0 0
        %2940 = vmatpush1.bf16.msra.mxu0 0
        %2941 = vmatprep.subr.bf16.mxu0 0
        %2942 = vmatpush1.bf16.msra.mxu0 0
        %2943 = vmatprep.subr.bf16.mxu0 0
        %2944 = vmatpush1.bf16.msra.mxu0 0
        %2945 = vmatprep.subr.bf16.mxu0 0
        %2946 = vmatpush1.bf16.msra.mxu0 0
        %2947 = vmatprep.subr.bf16.mxu0 0
        %2948 = vmatpush1.bf16.msra.mxu0 0
        %2949 = vmatprep.subr.bf16.mxu0 0
        %2950 = vmatpush1.bf16.msra.mxu0 0
        %2951 = vmatprep.mubr.bf16.mxu0 0
        %2952 = vmatmul.mubr.bf16.gmra.mrb[0].mxu0 %v2477
        %v2953 = vpop.f32.mrb[0].mxu0
        %v2954 = vadd.f32 0.0, %v2953
        %v2955 = vpop.f32.mrb[0].mxu0
        %v2956 = vpop.f32.mrb[0].mxu0
        %v2957 = vadd.f32 0.0, %v2956
        %v2958 = vpop.f32.mrb[0].mxu0
        %2959 = vmatprep.mubr.bf16.mxu0 0
        %2960 = vmatmul.mubr.bf16.gmra.mrb[0].mxu0 %v2480
        %v2961 = vpop.f32.mrb[0].mxu0
        %v2962 = vadd.f32 0.0, %v2961
        %v2963 = vpop.f32.mrb[0].mxu0
        %v2964 = vpop.f32.mrb[0].mxu0
        %v2965 = vadd.f32 0.0, %v2964
        %v2966 = vpop.f32.mrb[0].mxu0
        %2967 = vmatprep.mubr.bf16.mxu0 0
        %2968 = vmatmul.mubr.bf16.gmra.mrb[0].mxu0 %v2483
        %v2969 = vpop.f32.mrb[0].mxu0
        %v2970 = vadd.f32 0.0, %v2969
        %v2971 = vpop.f32.mrb[0].mxu0
        %v2972 = vpop.f32.mrb[0].mxu0
        %v2973 = vadd.f32 0.0, %v2972
        %v2974 = vpop.f32.mrb[0].mxu0
        %2975 = vmatprep.mubr.bf16.mxu0 0
        %2976 = vmatmul.mubr.bf16.gmra.mrb[0].mxu0 %v2486
        %v2977 = vpop.f32.mrb[0].mxu0
        %v2978 = vadd.f32 0.0, %v2977
        %v2979 = vpop.f32.mrb[0].mxu0
        %v2980 = vpop.f32.mrb[0].mxu0
        %v2981 = vadd.f32 0.0, %v2980
        %v2982 = vpop.f32.mrb[0].mxu0
        %2983 = vmatprep.mubr.bf16.mxu0 0
        %2984 = vmatmul.mubr.bf16.gmra.mrb[0].mxu0 %v2489
        %v2985 = vpop.f32.mrb[0].mxu0
        %v2986 = vadd.f32 0.0, %v2985
        %v2987 = vpop.f32.mrb[0].mxu0
        %v2988 = vpop.f32.mrb[0].mxu0
        %v2989 = vadd.f32 0.0, %v2988
        %v2990 = vpop.f32.mrb[0].mxu0
        %2991 = vmatprep.mubr.bf16.mxu0 0
        %2992 = vmatmul.mubr.bf16.gmra.mrb[0].mxu0 %v2492
        %v2993 = vpop.f32.mrb[0].mxu0
        %v2994 = vadd.f32 0.0, %v2993
        %v2995 = vpop.f32.mrb[0].mxu0
        %v2996 = vpop.f32.mrb[0].mxu0
        %v2997 = vadd.f32 0.0, %v2996
        %v2998 = vpop.f32.mrb[0].mxu0
        %2999 = vmatprep.mubr.bf16.mxu0 0
        %3000 = vmatmul.mubr.bf16.gmra.mrb[0].mxu0 %v2495
        %v3001 = vpop.f32.mrb[0].mxu0
        %v3002 = vadd.f32 0.0, %v3001
        %v3003 = vpop.f32.mrb[0].mxu0
        %v3004 = vpop.f32.mrb[0].mxu0
        %v3005 = vadd.f32 0.0, %v3004
        %v3006 = vpop.f32.mrb[0].mxu0
        %3007 = vmatprep.mubr.bf16.mxu0 0
        %3008 = vmatmul.mubr.bf16.gmra.mrb[0].mxu0 %v2498
        %v3009 = vpop.f32.mrb[0].mxu0
        %v3010 = vadd.f32 0.0, %v3009
        %v3011 = vpop.f32.mrb[0].mxu0
        %v3012 = vpop.f32.mrb[0].mxu0
        %v3013 = vadd.f32 0.0, %v3012
        %v3014 = vpop.f32.mrb[0].mxu0
        %3015 = vmatprep.mubr.bf16.mxu0 0
        %3016 = vmatmul.mubr.bf16.gmra.mrb[0].mxu0 %v2501
        %v3017 = vpop.f32.mrb[0].mxu0
        %v3018 = vadd.f32 0.0, %v3017
        %v3019 = vpop.f32.mrb[0].mxu0
        %v3020 = vpop.f32.mrb[0].mxu0
        %v3021 = vadd.f32 0.0, %v3020
        %v3022 = vpop.f32.mrb[0].mxu0
        %3023 = vmatprep.mubr.bf16.mxu0 0
        %3024 = vmatmul.mubr.bf16.gmra.mrb[0].mxu0 %v2504
        %v3025 = vpop.f32.mrb[0].mxu0
        %v3026 = vadd.f32 0.0, %v3025
        %v3027 = vpop.f32.mrb[0].mxu0
        %v3028 = vpop.f32.mrb[0].mxu0
        %v3029 = vadd.f32 0.0, %v3028
        %v3030 = vpop.f32.mrb[0].mxu0
        %3031 = vmatprep.mubr.bf16.mxu0 0
        %3032 = vmatmul.mubr.bf16.gmra.mrb[0].mxu0 %v2507
        %v3033 = vpop.f32.mrb[0].mxu0
        %v3034 = vadd.f32 0.0, %v3033
        %v3035 = vpop.f32.mrb[0].mxu0
        %v3036 = vpop.f32.mrb[0].mxu0
        %v3037 = vadd.f32 0.0, %v3036
        %v3038 = vpop.f32.mrb[0].mxu0
        %3039 = vmatprep.mubr.bf16.mxu0 0
        %3040 = vmatmul.mubr.bf16.gmra.mrb[0].mxu0 %v2510
        %v3041 = vpop.f32.mrb[0].mxu0
        %v3042 = vadd.f32 0.0, %v3041
        %v3043 = vpop.f32.mrb[0].mxu0
        %v3044 = vpop.f32.mrb[0].mxu0
        %v3045 = vadd.f32 0.0, %v3044
        %v3046 = vpop.f32.mrb[0].mxu0
        %3047 = vmatprep.mubr.bf16.mxu0 0
        %3048 = vmatmul.mubr.bf16.gmra.mrb[0].mxu0 %v2513
        %v3049 = vpop.f32.mrb[0].mxu0
        %v3050 = vadd.f32 0.0, %v3049
        %v3051 = vpop.f32.mrb[0].mxu0
        %v3052 = vpop.f32.mrb[0].mxu0
        %v3053 = vadd.f32 0.0, %v3052
        %v3054 = vpop.f32.mrb[0].mxu0
        %3055 = vmatprep.mubr.bf16.mxu0 0
        %3056 = vmatmul.mubr.bf16.gmra.mrb[0].mxu0 %v2516
        %v3057 = vpop.f32.mrb[0].mxu0
        %v3058 = vadd.f32 0.0, %v3057
        %v3059 = vpop.f32.mrb[0].mxu0
        %v3060 = vpop.f32.mrb[0].mxu0
        %v3061 = vadd.f32 0.0, %v3060
        %v3062 = vpop.f32.mrb[0].mxu0
        %3063 = vmatprep.mubr.bf16.mxu0 0
        %3064 = vmatmul.mubr.bf16.gmra.mrb[0].mxu0 %v2519
        %v3065 = vpop.f32.mrb[0].mxu0
        %v3066 = vadd.f32 0.0, %v3065
        %v3067 = vpop.f32.mrb[0].mxu0
        %v3068 = vpop.f32.mrb[0].mxu0
        %v3069 = vadd.f32 0.0, %v3068
        %v3070 = vpop.f32.mrb[0].mxu0
        %3071 = vmatprep.mubr.bf16.mxu0 0
        %3072 = vmatmul.mubr.bf16.gmra.mrb[0].mxu0 %v2522
        %v3073 = vpop.f32.mrb[0].mxu0
        %v3074 = vadd.f32 0.0, %v3073
        %v3075 = vpop.f32.mrb[0].mxu0
        %v3076 = vpop.f32.mrb[0].mxu0
        %v3077 = vadd.f32 0.0, %v3076
        %v3078 = vpop.f32.mrb[0].mxu0
        %3079 = vdwg.mxu0
        %v3080 = vmax.f32 %v2954, %v2970
        %v3081 = vmax.f32 %v2957, %v2973
        %v3082 = vmax.f32 %v2962, %v2978
        %v3083 = vmax.f32 %v2965, %v2981
        %v3084 = vmax.f32 %v3080, %v2986
        %v3085 = vmax.f32 %v3081, %v2989
        %v3086 = vmax.f32 %v3082, %v2994
        %v3087 = vmax.f32 %v3083, %v2997
        %v3088 = vmax.f32 %v3084, %v3002
        %v3089 = vmax.f32 %v3085, %v3005
        %v3090 = vmax.f32 %v3086, %v3010
        %v3091 = vmax.f32 %v3087, %v3013
        %v3092 = vmax.f32 %v3088, %v3018
        %v3093 = vmax.f32 %v3089, %v3021
        %v3094 = vmax.f32 %v3090, %v3026
        %v3095 = vmax.f32 %v3091, %v3029
        %v3096 = vmax.f32 %v3092, %v3034
        %v3097 = vmax.f32 %v3093, %v3037
        %v3098 = vmax.f32 %v3094, %v3042
        %v3099 = vmax.f32 %v3095, %v3045
        %v3100 = vmax.f32 %v3096, %v3050
        %v3101 = vmax.f32 %v3097, %v3053
        %v3102 = vmax.f32 %v3098, %v3058
        %v3103 = vmax.f32 %v3099, %v3061
        %v3104 = vmax.f32 %v3100, %v3066
        %v3105 = vmax.f32 %v3101, %v3069
        %v3106 = vmax.f32 %v3102, %v3074
        %v3107 = vmax.f32 %v3103, %v3077
        %v3108 = vmax.f32 %v3104, %v3105
        %v3109 = vmax.f32 %v3106, %v3107
        %v3110 = vmax.f32 %v3108, %v3109
        %v3111 = vrot.slane %v3110, 4
        %v3112 = vmax.f32 %v3110, %v3111
        %v3113 = vrot.slane %v3112, 2
        %v3114 = vmax.f32 %v3112, %v3113
        %v3115 = vrot.slane %v3114, 1
        %v3116 = vmax.f32 %v3114, %v3115
        %v3117 = vsub.f32 %v2954, %v3116
        %v3118 = vsub.f32 %v2957, %v3116
        %v3119 = vsub.f32 %v2962, %v3116
        %v3120 = vsub.f32 %v2965, %v3116
        %v3121 = vsub.f32 %v2970, %v3116
        %v3122 = vsub.f32 %v2973, %v3116
        %v3123 = vsub.f32 %v2978, %v3116
        %v3124 = vsub.f32 %v2981, %v3116
        %v3125 = vsub.f32 %v2986, %v3116
        %v3126 = vsub.f32 %v2989, %v3116
        %v3127 = vsub.f32 %v2994, %v3116
        %v3128 = vsub.f32 %v2997, %v3116
        %v3129 = vsub.f32 %v3002, %v3116
        %v3130 = vsub.f32 %v3005, %v3116
        %v3131 = vsub.f32 %v3010, %v3116
        %v3132 = vsub.f32 %v3013, %v3116
        %v3133 = vsub.f32 %v3018, %v3116
        %v3134 = vsub.f32 %v3021, %v3116
        %v3135 = vsub.f32 %v3026, %v3116
        %v3136 = vsub.f32 %v3029, %v3116
        %v3137 = vsub.f32 %v3034, %v3116
        %v3138 = vsub.f32 %v3037, %v3116
        %v3139 = vsub.f32 %v3042, %v3116
        %v3140 = vsub.f32 %v3045, %v3116
        %v3141 = vsub.f32 %v3050, %v3116
        %v3142 = vsub.f32 %v3053, %v3116
        %v3143 = vsub.f32 %v3058, %v3116
        %v3144 = vsub.f32 %v3061, %v3116
        %v3145 = vsub.f32 %v3066, %v3116
        %v3146 = vsub.f32 %v3069, %v3116
        %v3147 = vsub.f32 %v3074, %v3116
        %v3148 = vsub.f32 %v3077, %v3116
        %v3149 = vmul.f32 %v3117, 1.442695
        %v3150 = vpow.pop %v3149
        %v3151 = vmul.f32 %v3118, 1.442695
        %v3152 = vpow.pop %v3151
        %v3153 = vmul.f32 %v3119, 1.442695
        %v3154 = vpow.pop %v3153
        %v3155 = vmul.f32 %v3120, 1.442695
        %v3156 = vpow.pop %v3155
        %v3157 = vmul.f32 %v3121, 1.442695
        %v3158 = vpow.pop %v3157
        %v3159 = vmul.f32 %v3122, 1.442695
        %v3160 = vpow.pop %v3159
        %v3161 = vmul.f32 %v3123, 1.442695
        %v3162 = vpow.pop %v3161
        %v3163 = vmul.f32 %v3124, 1.442695
        %v3164 = vpow.pop %v3163
        %v3165 = vmul.f32 %v3125, 1.442695
        %v3166 = vpow.pop %v3165
        %v3167 = vmul.f32 %v3126, 1.442695
        %v3168 = vpow.pop %v3167
        %v3169 = vmul.f32 %v3127, 1.442695
        %v3170 = vpow.pop %v3169
        %v3171 = vmul.f32 %v3128, 1.442695
        %v3172 = vpow.pop %v3171
        %v3173 = vmul.f32 %v3129, 1.442695
        %v3174 = vpow.pop %v3173
        %v3175 = vmul.f32 %v3130, 1.442695
        %v3176 = vpow.pop %v3175
        %v3177 = vmul.f32 %v3131, 1.442695
        %v3178 = vpow.pop %v3177
        %v3179 = vmul.f32 %v3132, 1.442695
        %v3180 = vpow.pop %v3179
        %v3181 = vmul.f32 %v3133, 1.442695
        %v3182 = vpow.pop %v3181
        %v3183 = vmul.f32 %v3134, 1.442695
        %v3184 = vpow.pop %v3183
        %v3185 = vmul.f32 %v3135, 1.442695
        %v3186 = vpow.pop %v3185
        %v3187 = vmul.f32 %v3136, 1.442695
        %v3188 = vpow.pop %v3187
        %v3189 = vmul.f32 %v3137, 1.442695
        %v3190 = vpow.pop %v3189
        %v3191 = vmul.f32 %v3138, 1.442695
        %v3192 = vpow.pop %v3191
        %v3193 = vmul.f32 %v3139, 1.442695
        %v3194 = vpow.pop %v3193
        %v3195 = vmul.f32 %v3140, 1.442695
        %v3196 = vpow.pop %v3195
        %v3197 = vmul.f32 %v3141, 1.442695
        %v3198 = vpow.pop %v3197
        %v3199 = vmul.f32 %v3142, 1.442695
        %v3200 = vpow.pop %v3199
        %v3201 = vmul.f32 %v3143, 1.442695
        %v3202 = vpow.pop %v3201
        %v3203 = vmul.f32 %v3144, 1.442695
        %v3204 = vpow.pop %v3203
        %v3205 = vmul.f32 %v3145, 1.442695
        %v3206 = vpow.pop %v3205
        %v3207 = vmul.f32 %v3146, 1.442695
        %v3208 = vpow.pop %v3207
        %v3209 = vmul.f32 %v3147, 1.442695
        %v3210 = vpow.pop %v3209
        %v3211 = vmul.f32 %v3148, 1.442695
        %v3212 = vpow.pop %v3211
        %v3213 = vadd.f32 %v3150, %v3152
        %v3214 = vadd.f32 %v3213, %v3154
        %v3215 = vadd.f32 %v3214, %v3156
        %v3216 = vadd.f32 %v3215, %v3158
        %v3217 = vadd.f32 %v3216, %v3160
        %v3218 = vadd.f32 %v3217, %v3162
        %v3219 = vadd.f32 %v3218, %v3164
        %v3220 = vadd.f32 %v3219, %v3166
        %v3221 = vadd.f32 %v3220, %v3168
        %v3222 = vadd.f32 %v3221, %v3170
        %v3223 = vadd.f32 %v3222, %v3172
        %v3224 = vadd.f32 %v3223, %v3174
        %v3225 = vadd.f32 %v3224, %v3176
        %v3226 = vadd.f32 %v3225, %v3178
        %v3227 = vadd.f32 %v3226, %v3180
        %v3228 = vadd.f32 %v3227, %v3182
        %v3229 = vadd.f32 %v3228, %v3184
        %v3230 = vadd.f32 %v3229, %v3186
        %v3231 = vadd.f32 %v3230, %v3188
        %v3232 = vadd.f32 %v3231, %v3190
        %v3233 = vadd.f32 %v3232, %v3192
        %v3234 = vadd.f32 %v3233, %v3194
        %v3235 = vadd.f32 %v3234, %v3196
        %v3236 = vadd.f32 %v3235, %v3198
        %v3237 = vadd.f32 %v3236, %v3200
        %v3238 = vadd.f32 %v3237, %v3202
        %v3239 = vadd.f32 %v3238, %v3204
        %v3240 = vadd.f32 %v3239, %v3206
        %v3241 = vadd.f32 %v3240, %v3208
        %v3242 = vadd.f32 %v3241, %v3210
        %v3243 = vadd.f32 %v3242, %v3212
        %v3244 = vrot.slane %v3243, 4
        %v3245 = vadd.f32 %v3243, %v3244
        %v3246 = vrot.slane %v3245, 2
        %v3247 = vadd.f32 %v3245, %v3246
        %v3248 = vrot.slane %v3247, 1
        %v3249 = vadd.f32 %v3247, %v3248
        %v3250 = vpack.c.bf16 %v3152, %v3150
        %v3251 = vpack.c.bf16 %v3156, %v3154
        %v3252 = vpack.c.bf16 %v3160, %v3158
        %v3253 = vpack.c.bf16 %v3164, %v3162
        %v3254 = vpack.c.bf16 %v3168, %v3166
        %v3255 = vpack.c.bf16 %v3172, %v3170
        %v3256 = vpack.c.bf16 %v3176, %v3174
        %v3257 = vpack.c.bf16 %v3180, %v3178
        %v3258 = vpack.c.bf16 %v3184, %v3182
        %v3259 = vpack.c.bf16 %v3188, %v3186
        %v3260 = vpack.c.bf16 %v3192, %v3190
        %v3261 = vpack.c.bf16 %v3196, %v3194
        %v3262 = vpack.c.bf16 %v3200, %v3198
        %v3263 = vpack.c.bf16 %v3204, %v3202
        %v3264 = vpack.c.bf16 %v3208, %v3206
        %v3265 = vpack.c.bf16 %v3212, %v3210
        %3266 = vmatprep.subr.bf16.mxu0 0
        %3267 = vmatpush1.bf16.msra.mxu0 %v3250
        %3268 = vmatprep.subr.bf16.mxu0 0
        %3269 = vmatpush1.bf16.msra.mxu0 %v3251
        %3270 = vmatprep.subr.bf16.mxu0 0
        %3271 = vmatpush1.bf16.msra.mxu0 %v3252
        %3272 = vmatprep.subr.bf16.mxu0 0
        %3273 = vmatpush1.bf16.msra.mxu0 %v3253
        %3274 = vmatprep.subr.bf16.mxu0 0
        %3275 = vmatpush1.bf16.msra.mxu0 %v3254
        %3276 = vmatprep.subr.bf16.mxu0 0
        %3277 = vmatpush1.bf16.msra.mxu0 %v3255
        %3278 = vmatprep.subr.bf16.mxu0 0
        %3279 = vmatpush1.bf16.msra.mxu0 %v3256
        %3280 = vmatprep.subr.bf16.mxu0 0
        %3281 = vmatpush1.bf16.msra.mxu0 %v3257
        %3282 = vmatprep.subr.bf16.mxu0 0
        %3283 = vmatpush1.bf16.msra.mxu0 %v3258
        %3284 = vmatprep.subr.bf16.mxu0 0
        %3285 = vmatpush1.bf16.msra.mxu0 %v3259
        %3286 = vmatprep.subr.bf16.mxu0 0
        %3287 = vmatpush1.bf16.msra.mxu0 %v3260
        %3288 = vmatprep.subr.bf16.mxu0 0
        %3289 = vmatpush1.bf16.msra.mxu0 %v3261
        %3290 = vmatprep.subr.bf16.mxu0 0
        %3291 = vmatpush1.bf16.msra.mxu0 %v3262
        %3292 = vmatprep.subr.bf16.mxu0 0
        %3293 = vmatpush1.bf16.msra.mxu0 %v3263
        %3294 = vmatprep.subr.bf16.mxu0 0
        %3295 = vmatpush1.bf16.msra.mxu0 %v3264
        %3296 = vmatprep.subr.bf16.mxu0 0
        %3297 = vmatpush1.bf16.msra.mxu0 %v3265
        %3298 = vmatprep.mubr.bf16.mxu0 %v2443
        %3299 = vmatmul.mubr.bf16.gmra.mrb[0].mxu0 %v2442
        %v3300 = vpop.f32.mrb[0].mxu0
        %v3301 = vadd.f32 0.0, %v3300
        %v3302 = vpop.f32.mrb[0].mxu0
        %v3303 = vpop.f32.mrb[0].mxu0
        %v3304 = vpop.f32.mrb[0].mxu0
        %3305 = vdwg.mxu0
        %v3306 = vrcp.pop %v3249
        %v3307 = vmul.f32 %v3301, %v3306
        %v3308 = vld [vmem:[%s3 + $0x10] sm:$0xff]
        %v3309 = vpack.c.bf16 %v3308, %v3308
        %v3310 = vpack.c.bf16 %v2915, %v2915
        %v3311 = vpack.c.bf16 %v3307, %v3307
        %3312 = vxpose.xlu0.c.b16.start [1/8] %v3309, 128
        %3313 = vxpose.xlu0.c.b16.cont [2/8] 0, 128
        %3314 = vxpose.xlu0.c.b16.cont [3/8] 0, 128
        %3315 = vxpose.xlu0.c.b16.cont [4/8] 0, 128
        %3316 = vxpose.xlu0.c.b16.cont [5/8] 0, 128
        %3317 = vxpose.xlu0.c.b16.cont [6/8] 0, 128
        %3318 = vxpose.xlu0.c.b16.cont [7/8] 0, 128
        %3319 = vxpose.xlu0.c.b16.end [8/8] 0, 128
        %v3320 = vpop.trf.xlu0
        %v3321 = vpop.trf.xlu0
        %v3322 = vpop.trf.xlu0
        %v3323 = vpop.trf.xlu0
        %v3324 = vpop.trf.xlu0
        %v3325 = vpop.trf.xlu0
        %v3326 = vpop.trf.xlu0
        %v3327 = vpop.trf.xlu0
        %v3329 = vsel %vm532, %v3320, 0
        %v3332 = vsel %vm532, %v3321, 0
        %v3335 = vsel %vm581, %v3310, 0
        %v3338 = vsel %vm581, %v3311, 0
        %3340 = vmatprep.subr.bf16.mxu0 %v3338
        %3341 = vmatpush1.bf16.msra.mxu0 %v3335
        %3342 = vmatprep.subr.bf16.mxu0 0
        %3343 = vmatpush1.bf16.msra.mxu0 0
        %3344 = vmatprep.subr.bf16.mxu0 0
        %3345 = vmatpush1.bf16.msra.mxu0 0
        %3346 = vmatprep.subr.bf16.mxu0 0
        %3347 = vmatpush1.bf16.msra.mxu0 0
        %3348 = vmatprep.subr.bf16.mxu0 0
        %3349 = vmatpush1.bf16.msra.mxu0 0
        %3350 = vmatprep.subr.bf16.mxu0 0
        %3351 = vmatpush1.bf16.msra.mxu0 0
        %3352 = vmatprep.subr.bf16.mxu0 0
        %3353 = vmatpush1.bf16.msra.mxu0 0
        %3354 = vmatprep.subr.bf16.mxu0 0
        %3355 = vmatpush1.bf16.msra.mxu0 0
        %3356 = vmatprep.subr.bf16.mxu0 0
        %3357 = vmatpush1.bf16.msra.mxu0 0
        %3358 = vmatprep.subr.bf16.mxu0 0
        %3359 = vmatpush1.bf16.msra.mxu0 0
        %3360 = vmatprep.subr.bf16.mxu0 0
        %3361 = vmatpush1.bf16.msra.mxu0 0
        %3362 = vmatprep.subr.bf16.mxu0 0
        %3363 = vmatpush1.bf16.msra.mxu0 0
        %3364 = vmatprep.subr.bf16.mxu0 0
        %3365 = vmatpush1.bf16.msra.mxu0 0
        %3366 = vmatprep.subr.bf16.mxu0 0
        %3367 = vmatpush1.bf16.msra.mxu0 0
        %3368 = vmatprep.subr.bf16.mxu0 0
        %3369 = vmatpush1.bf16.msra.mxu0 0
        %3370 = vmatprep.subr.bf16.mxu0 0
        %3371 = vmatpush1.bf16.msra.mxu0 0
        %3372 = vmatprep.mubr.bf16.mxu0 0
        %3373 = vmatmul.mubr.bf16.gmra.mrb[0].mxu0 %v3329
        %v3374 = vpop.f32.mrb[0].mxu0
        %v3375 = vadd.f32 0.0, %v3374
        %v3376 = vpop.f32.mrb[0].mxu0
        %v3377 = vadd.f32 0.0, %v3376
        %v3378 = vpop.f32.mrb[0].mxu0
        %v3379 = vadd.f32 0.0, %v3378
        %v3380 = vpop.f32.mrb[0].mxu0
        %v3381 = vadd.f32 0.0, %v3380
        %3382 = vmatprep.mubr.bf16.mxu0 0
        %3383 = vmatmul.mubr.bf16.gmra.mrb[0].mxu0 %v3332
        %v3384 = vpop.f32.mrb[0].mxu0
        %v3385 = vadd.f32 0.0, %v3384
        %v3386 = vpop.f32.mrb[0].mxu0
        %v3387 = vadd.f32 0.0, %v3386
        %v3388 = vpop.f32.mrb[0].mxu0
        %v3389 = vadd.f32 0.0, %v3388
        %v3390 = vpop.f32.mrb[0].mxu0
        %v3391 = vadd.f32 0.0, %v3390
        %3392 = vdwg.mxu0
        %v3393 = vadd.f32 %v2422, %v3375
        %v3394 = vadd.f32 %v2423, %v3377
        %v3395 = vadd.f32 %v2424, %v3379
        %v3396 = vadd.f32 %v2425, %v3381
        %v3397 = vadd.f32 %v2426, %v3385
        %v3398 = vadd.f32 %v2427, %v3387
        %v3399 = vadd.f32 %v2428, %v3389
        %v3400 = vadd.f32 %v2429, %v3391
        %v3401 = vld [vmem:[#allocation2 + $0x30] sm:$0xff]
        %v3402 = vld [vmem:[#allocation2 + $0x38] sm:$0xff]
        %v3403 = vmul.f32 %v3401, 0.35355338
        %v3404 = vmul.f32 %v3402, 0.35355338
        %v3405 = vpack.c.bf16 %v3403, %v3403
        %v3406 = vpack.c.bf16 %v3404, %v3404
        %v3407 = vld [vmem:[#allocation2 + $0x70] sm:$0xff]
        %v3408 = vld [vmem:[#allocation2 + $0x78] sm:$0xff]
        %v3409 = vpack.c.bf16 %v3407, %v3407
        %v3410 = vpack.c.bf16 %v3408, %v3408
        %v3411 = vld [vmem:[#allocation2 + $0xb0] sm:$0xff]
        %v3412 = vld [vmem:[#allocation2 + $0xb8] sm:$0xff]
        %v3413 = vpack.c.bf16 %v3411, %v3411
        %v3414 = vpack.c.bf16 %v3412, %v3412
        %3415 = vxpose.xlu0.c.b16.start [1/8] %v3409, 128
        %3416 = vxpose.xlu0.c.b16.cont [2/8] 0, 128
        %3417 = vxpose.xlu0.c.b16.cont [3/8] 0, 128
        %3418 = vxpose.xlu0.c.b16.cont [4/8] 0, 128
        %3419 = vxpose.xlu0.c.b16.cont [5/8] 0, 128
        %3420 = vxpose.xlu0.c.b16.cont [6/8] 0, 128
        %3421 = vxpose.xlu0.c.b16.cont [7/8] 0, 128
        %3422 = vxpose.xlu0.c.b16.end [8/8] 0, 128
        %v3423 = vpop.trf.xlu0
        %v3424 = vpop.trf.xlu0
        %v3425 = vpop.trf.xlu0
        %v3426 = vpop.trf.xlu0
        %v3427 = vpop.trf.xlu0
        %v3428 = vpop.trf.xlu0
        %v3429 = vpop.trf.xlu0
        %v3430 = vpop.trf.xlu0
        %3431 = vxpose.xlu0.c.b16.start [1/8] %v3410, 128
        %3432 = vxpose.xlu0.c.b16.cont [2/8] 0, 128
        %3433 = vxpose.xlu0.c.b16.cont [3/8] 0, 128
        %3434 = vxpose.xlu0.c.b16.cont [4/8] 0, 128
        %3435 = vxpose.xlu0.c.b16.cont [5/8] 0, 128
        %3436 = vxpose.xlu0.c.b16.cont [6/8] 0, 128
        %3437 = vxpose.xlu0.c.b16.cont [7/8] 0, 128
        %3438 = vxpose.xlu0.c.b16.end [8/8] 0, 128
        %v3439 = vpop.trf.xlu0
        %v3440 = vpop.trf.xlu0
        %v3441 = vpop.trf.xlu0
        %v3442 = vpop.trf.xlu0
        %v3443 = vpop.trf.xlu0
        %v3444 = vpop.trf.xlu0
        %v3445 = vpop.trf.xlu0
        %v3446 = vpop.trf.xlu0
        %v3448 = vsel %vm532, %v3423, 0
        %v3451 = vsel %vm532, %v3424, 0
        %v3454 = vsel %vm532, %v3425, 0
        %v3457 = vsel %vm532, %v3426, 0
        %v3460 = vsel %vm532, %v3427, 0
        %v3463 = vsel %vm532, %v3428, 0
        %v3466 = vsel %vm532, %v3429, 0
        %v3469 = vsel %vm532, %v3430, 0
        %v3472 = vsel %vm532, %v3439, 0
        %v3475 = vsel %vm532, %v3440, 0
        %v3478 = vsel %vm532, %v3441, 0
        %v3481 = vsel %vm532, %v3442, 0
        %v3484 = vsel %vm532, %v3443, 0
        %v3487 = vsel %vm532, %v3444, 0
        %v3490 = vsel %vm532, %v3445, 0
        %v3493 = vsel %vm532, %v3446, 0
        %v3496 = vsel %vm581, %v3405, 0
        %3498 = vmatprep.subr.bf16.mxu0 0
        %3499 = vmatpush1.bf16.msra.mxu0 %v3496
        %3500 = vmatprep.subr.bf16.mxu0 0
        %3501 = vmatpush1.bf16.msra.mxu0 0
        %3502 = vmatprep.subr.bf16.mxu0 0
        %3503 = vmatpush1.bf16.msra.mxu0 0
        %3504 = vmatprep.subr.bf16.mxu0 0
        %3505 = vmatpush1.bf16.msra.mxu0 0
        %3506 = vmatprep.subr.bf16.mxu0 0
        %3507 = vmatpush1.bf16.msra.mxu0 0
        %3508 = vmatprep.subr.bf16.mxu0 0
        %3509 = vmatpush1.bf16.msra.mxu0 0
        %3510 = vmatprep.subr.bf16.mxu0 0
        %3511 = vmatpush1.bf16.msra.mxu0 0
        %3512 = vmatprep.subr.bf16.mxu0 0
        %3513 = vmatpush1.bf16.msra.mxu0 0
        %3514 = vmatprep.subr.bf16.mxu0 0
        %3515 = vmatpush1.bf16.msra.mxu0 0
        %3516 = vmatprep.subr.bf16.mxu0 0
        %3517 = vmatpush1.bf16.msra.mxu0 0
        %3518 = vmatprep.subr.bf16.mxu0 0
        %3519 = vmatpush1.bf16.msra.mxu0 0
        %3520 = vmatprep.subr.bf16.mxu0 0
        %3521 = vmatpush1.bf16.msra.mxu0 0
        %3522 = vmatprep.subr.bf16.mxu0 0
        %3523 = vmatpush1.bf16.msra.mxu0 0
        %3524 = vmatprep.subr.bf16.mxu0 0
        %3525 = vmatpush1.bf16.msra.mxu0 0
        %3526 = vmatprep.subr.bf16.mxu0 0
        %3527 = vmatpush1.bf16.msra.mxu0 0
        %3528 = vmatprep.subr.bf16.mxu0 0
        %3529 = vmatpush1.bf16.msra.mxu0 0
        %3530 = vmatprep.mubr.bf16.mxu0 0
        %3531 = vmatmul.mubr.bf16.gmra.mrb[0].mxu0 %v3448
        %v3532 = vpop.f32.mrb[0].mxu0
        %v3533 = vadd.f32 0.0, %v3532
        %v3534 = vpop.f32.mrb[0].mxu0
        %v3535 = vpop.f32.mrb[0].mxu0
        %v3536 = vadd.f32 0.0, %v3535
        %v3537 = vpop.f32.mrb[0].mxu0
        %3538 = vmatprep.mubr.bf16.mxu0 0
        %3539 = vmatmul.mubr.bf16.gmra.mrb[0].mxu0 %v3451
        %v3540 = vpop.f32.mrb[0].mxu0
        %v3541 = vadd.f32 0.0, %v3540
        %v3542 = vpop.f32.mrb[0].mxu0
        %v3543 = vpop.f32.mrb[0].mxu0
        %v3544 = vadd.f32 0.0, %v3543
        %v3545 = vpop.f32.mrb[0].mxu0
        %3546 = vmatprep.mubr.bf16.mxu0 0
        %3547 = vmatmul.mubr.bf16.gmra.mrb[0].mxu0 %v3454
        %v3548 = vpop.f32.mrb[0].mxu0
        %v3549 = vadd.f32 0.0, %v3548
        %v3550 = vpop.f32.mrb[0].mxu0
        %v3551 = vpop.f32.mrb[0].mxu0
        %v3552 = vadd.f32 0.0, %v3551
        %v3553 = vpop.f32.mrb[0].mxu0
        %3554 = vmatprep.mubr.bf16.mxu0 0
        %3555 = vmatmul.mubr.bf16.gmra.mrb[0].mxu0 %v3457
        %v3556 = vpop.f32.mrb[0].mxu0
        %v3557 = vadd.f32 0.0, %v3556
        %v3558 = vpop.f32.mrb[0].mxu0
        %v3559 = vpop.f32.mrb[0].mxu0
        %v3560 = vadd.f32 0.0, %v3559
        %v3561 = vpop.f32.mrb[0].mxu0
        %3562 = vmatprep.mubr.bf16.mxu0 0
        %3563 = vmatmul.mubr.bf16.gmra.mrb[0].mxu0 %v3460
        %v3564 = vpop.f32.mrb[0].mxu0
        %v3565 = vadd.f32 0.0, %v3564
        %v3566 = vpop.f32.mrb[0].mxu0
        %v3567 = vpop.f32.mrb[0].mxu0
        %v3568 = vadd.f32 0.0, %v3567
        %v3569 = vpop.f32.mrb[0].mxu0
        %3570 = vmatprep.mubr.bf16.mxu0 0
        %3571 = vmatmul.mubr.bf16.gmra.mrb[0].mxu0 %v3463
        %v3572 = vpop.f32.mrb[0].mxu0
        %v3573 = vadd.f32 0.0, %v3572
        %v3574 = vpop.f32.mrb[0].mxu0
        %v3575 = vpop.f32.mrb[0].mxu0
        %v3576 = vadd.f32 0.0, %v3575
        %v3577 = vpop.f32.mrb[0].mxu0
        %3578 = vmatprep.mubr.bf16.mxu0 0
        %3579 = vmatmul.mubr.bf16.gmra.mrb[0].mxu0 %v3466
        %v3580 = vpop.f32.mrb[0].mxu0
        %v3581 = vadd.f32 0.0, %v3580
        %v3582 = vpop.f32.mrb[0].mxu0
        %v3583 = vpop.f32.mrb[0].mxu0
        %v3584 = vadd.f32 0.0, %v3583
        %v3585 = vpop.f32.mrb[0].mxu0
        %3586 = vmatprep.mubr.bf16.mxu0 0
        %3587 = vmatmul.mubr.bf16.gmra.mrb[0].mxu0 %v3469
        %v3588 = vpop.f32.mrb[0].mxu0
        %v3589 = vadd.f32 0.0, %v3588
        %v3590 = vpop.f32.mrb[0].mxu0
        %v3591 = vpop.f32.mrb[0].mxu0
        %v3592 = vadd.f32 0.0, %v3591
        %v3593 = vpop.f32.mrb[0].mxu0
        %3594 = vmatprep.mubr.bf16.mxu0 0
        %3595 = vmatmul.mubr.bf16.gmra.mrb[0].mxu0 %v3472
        %v3596 = vpop.f32.mrb[0].mxu0
        %v3597 = vadd.f32 0.0, %v3596
        %v3598 = vpop.f32.mrb[0].mxu0
        %v3599 = vpop.f32.mrb[0].mxu0
        %v3600 = vadd.f32 0.0, %v3599
        %v3601 = vpop.f32.mrb[0].mxu0
        %3602 = vmatprep.mubr.bf16.mxu0 0
        %3603 = vmatmul.mubr.bf16.gmra.mrb[0].mxu0 %v3475
        %v3604 = vpop.f32.mrb[0].mxu0
        %v3605 = vadd.f32 0.0, %v3604
        %v3606 = vpop.f32.mrb[0].mxu0
        %v3607 = vpop.f32.mrb[0].mxu0
        %v3608 = vadd.f32 0.0, %v3607
        %v3609 = vpop.f32.mrb[0].mxu0
        %3610 = vmatprep.mubr.bf16.mxu0 0
        %3611 = vmatmul.mubr.bf16.gmra.mrb[0].mxu0 %v3478
        %v3612 = vpop.f32.mrb[0].mxu0
        %v3613 = vadd.f32 0.0, %v3612
        %v3614 = vpop.f32.mrb[0].mxu0
        %v3615 = vpop.f32.mrb[0].mxu0
        %v3616 = vadd.f32 0.0, %v3615
        %v3617 = vpop.f32.mrb[0].mxu0
        %3618 = vmatprep.mubr.bf16.mxu0 0
        %3619 = vmatmul.mubr.bf16.gmra.mrb[0].mxu0 %v3481
        %v3620 = vpop.f32.mrb[0].mxu0
        %v3621 = vadd.f32 0.0, %v3620
        %v3622 = vpop.f32.mrb[0].mxu0
        %v3623 = vpop.f32.mrb[0].mxu0
        %v3624 = vadd.f32 0.0, %v3623
        %v3625 = vpop.f32.mrb[0].mxu0
        %3626 = vmatprep.mubr.bf16.mxu0 0
        %3627 = vmatmul.mubr.bf16.gmra.mrb[0].mxu0 %v3484
        %v3628 = vpop.f32.mrb[0].mxu0
        %v3629 = vadd.f32 0.0, %v3628
        %v3630 = vpop.f32.mrb[0].mxu0
        %v3631 = vpop.f32.mrb[0].mxu0
        %v3632 = vadd.f32 0.0, %v3631
        %v3633 = vpop.f32.mrb[0].mxu0
        %3634 = vmatprep.mubr.bf16.mxu0 0
        %3635 = vmatmul.mubr.bf16.gmra.mrb[0].mxu0 %v3487
        %v3636 = vpop.f32.mrb[0].mxu0
        %v3637 = vadd.f32 0.0, %v3636
        %v3638 = vpop.f32.mrb[0].mxu0
        %v3639 = vpop.f32.mrb[0].mxu0
        %v3640 = vadd.f32 0.0, %v3639
        %v3641 = vpop.f32.mrb[0].mxu0
        %3642 = vmatprep.mubr.bf16.mxu0 0
        %3643 = vmatmul.mubr.bf16.gmra.mrb[0].mxu0 %v3490
        %v3644 = vpop.f32.mrb[0].mxu0
        %v3645 = vadd.f32 0.0, %v3644
        %v3646 = vpop.f32.mrb[0].mxu0
        %v3647 = vpop.f32.mrb[0].mxu0
        %v3648 = vadd.f32 0.0, %v3647
        %v3649 = vpop.f32.mrb[0].mxu0
        %3650 = vmatprep.mubr.bf16.mxu0 0
        %3651 = vmatmul.mubr.bf16.gmra.mrb[0].mxu0 %v3493
        %v3652 = vpop.f32.mrb[0].mxu0
        %v3653 = vadd.f32 0.0, %v3652
        %v3654 = vpop.f32.mrb[0].mxu0
        %v3655 = vpop.f32.mrb[0].mxu0
        %v3656 = vadd.f32 0.0, %v3655
        %v3657 = vpop.f32.mrb[0].mxu0
        %3658 = vdwg.mxu0
        %v3659 = vmax.f32 %v3533, %v3549
        %v3660 = vmax.f32 %v3536, %v3552
        %v3661 = vmax.f32 %v3541, %v3557
        %v3662 = vmax.f32 %v3544, %v3560
        %v3663 = vmax.f32 %v3659, %v3565
        %v3664 = vmax.f32 %v3660, %v3568
        %v3665 = vmax.f32 %v3661, %v3573
        %v3666 = vmax.f32 %v3662, %v3576
        %v3667 = vmax.f32 %v3663, %v3581
        %v3668 = vmax.f32 %v3664, %v3584
        %v3669 = vmax.f32 %v3665, %v3589
        %v3670 = vmax.f32 %v3666, %v3592
        %v3671 = vmax.f32 %v3667, %v3597
        %v3672 = vmax.f32 %v3668, %v3600
        %v3673 = vmax.f32 %v3669, %v3605
        %v3674 = vmax.f32 %v3670, %v3608
        %v3675 = vmax.f32 %v3671, %v3613
        %v3676 = vmax.f32 %v3672, %v3616
        %v3677 = vmax.f32 %v3673, %v3621
        %v3678 = vmax.f32 %v3674, %v3624
        %v3679 = vmax.f32 %v3675, %v3629
        %v3680 = vmax.f32 %v3676, %v3632
        %v3681 = vmax.f32 %v3677, %v3637
        %v3682 = vmax.f32 %v3678, %v3640
        %v3683 = vmax.f32 %v3679, %v3645
        %v3684 = vmax.f32 %v3680, %v3648
        %v3685 = vmax.f32 %v3681, %v3653
        %v3686 = vmax.f32 %v3682, %v3656
        %v3687 = vmax.f32 %v3683, %v3684
        %v3688 = vmax.f32 %v3685, %v3686
        %v3689 = vmax.f32 %v3687, %v3688
        %v3690 = vrot.slane %v3689, 4
        %v3691 = vmax.f32 %v3689, %v3690
        %v3692 = vrot.slane %v3691, 2
        %v3693 = vmax.f32 %v3691, %v3692
        %v3694 = vrot.slane %v3693, 1
        %v3695 = vmax.f32 %v3693, %v3694
        %v3696 = vsub.f32 %v3533, %v3695
        %v3697 = vsub.f32 %v3536, %v3695
        %v3698 = vsub.f32 %v3541, %v3695
        %v3699 = vsub.f32 %v3544, %v3695
        %v3700 = vsub.f32 %v3549, %v3695
        %v3701 = vsub.f32 %v3552, %v3695
        %v3702 = vsub.f32 %v3557, %v3695
        %v3703 = vsub.f32 %v3560, %v3695
        %v3704 = vsub.f32 %v3565, %v3695
        %v3705 = vsub.f32 %v3568, %v3695
        %v3706 = vsub.f32 %v3573, %v3695
        %v3707 = vsub.f32 %v3576, %v3695
        %v3708 = vsub.f32 %v3581, %v3695
        %v3709 = vsub.f32 %v3584, %v3695
        %v3710 = vsub.f32 %v3589, %v3695
        %v3711 = vsub.f32 %v3592, %v3695
        %v3712 = vsub.f32 %v3597, %v3695
        %v3713 = vsub.f32 %v3600, %v3695
        %v3714 = vsub.f32 %v3605, %v3695
        %v3715 = vsub.f32 %v3608, %v3695
        %v3716 = vsub.f32 %v3613, %v3695
        %v3717 = vsub.f32 %v3616, %v3695
        %v3718 = vsub.f32 %v3621, %v3695
        %v3719 = vsub.f32 %v3624, %v3695
        %v3720 = vsub.f32 %v3629, %v3695
        %v3721 = vsub.f32 %v3632, %v3695
        %v3722 = vsub.f32 %v3637, %v3695
        %v3723 = vsub.f32 %v3640, %v3695
        %v3724 = vsub.f32 %v3645, %v3695
        %v3725 = vsub.f32 %v3648, %v3695
        %v3726 = vsub.f32 %v3653, %v3695
        %v3727 = vsub.f32 %v3656, %v3695
        %v3728 = vmul.f32 %v3696, 1.442695
        %v3729 = vpow.pop %v3728
        %v3730 = vmul.f32 %v3697, 1.442695
        %v3731 = vpow.pop %v3730
        %v3732 = vmul.f32 %v3698, 1.442695
        %v3733 = vpow.pop %v3732
        %v3734 = vmul.f32 %v3699, 1.442695
        %v3735 = vpow.pop %v3734
        %v3736 = vmul.f32 %v3700, 1.442695
        %v3737 = vpow.pop %v3736
        %v3738 = vmul.f32 %v3701, 1.442695
        %v3739 = vpow.pop %v3738
        %v3740 = vmul.f32 %v3702, 1.442695
        %v3741 = vpow.pop %v3740
        %v3742 = vmul.f32 %v3703, 1.442695
        %v3743 = vpow.pop %v3742
        %v3744 = vmul.f32 %v3704, 1.442695
        %v3745 = vpow.pop %v3744
        %v3746 = vmul.f32 %v3705, 1.442695
        %v3747 = vpow.pop %v3746
        %v3748 = vmul.f32 %v3706, 1.442695
        %v3749 = vpow.pop %v3748
        %v3750 = vmul.f32 %v3707, 1.442695
        %v3751 = vpow.pop %v3750
        %v3752 = vmul.f32 %v3708, 1.442695
        %v3753 = vpow.pop %v3752
        %v3754 = vmul.f32 %v3709, 1.442695
        %v3755 = vpow.pop %v3754
        %v3756 = vmul.f32 %v3710, 1.442695
        %v3757 = vpow.pop %v3756
        %v3758 = vmul.f32 %v3711, 1.442695
        %v3759 = vpow.pop %v3758
        %v3760 = vmul.f32 %v3712, 1.442695
        %v3761 = vpow.pop %v3760
        %v3762 = vmul.f32 %v3713, 1.442695
        %v3763 = vpow.pop %v3762
        %v3764 = vmul.f32 %v3714, 1.442695
        %v3765 = vpow.pop %v3764
        %v3766 = vmul.f32 %v3715, 1.442695
        %v3767 = vpow.pop %v3766
        %v3768 = vmul.f32 %v3716, 1.442695
        %v3769 = vpow.pop %v3768
        %v3770 = vmul.f32 %v3717, 1.442695
        %v3771 = vpow.pop %v3770
        %v3772 = vmul.f32 %v3718, 1.442695
        %v3773 = vpow.pop %v3772
        %v3774 = vmul.f32 %v3719, 1.442695
        %v3775 = vpow.pop %v3774
        %v3776 = vmul.f32 %v3720, 1.442695
        %v3777 = vpow.pop %v3776
        %v3778 = vmul.f32 %v3721, 1.442695
        %v3779 = vpow.pop %v3778
        %v3780 = vmul.f32 %v3722, 1.442695
        %v3781 = vpow.pop %v3780
        %v3782 = vmul.f32 %v3723, 1.442695
        %v3783 = vpow.pop %v3782
        %v3784 = vmul.f32 %v3724, 1.442695
        %v3785 = vpow.pop %v3784
        %v3786 = vmul.f32 %v3725, 1.442695
        %v3787 = vpow.pop %v3786
        %v3788 = vmul.f32 %v3726, 1.442695
        %v3789 = vpow.pop %v3788
        %v3790 = vmul.f32 %v3727, 1.442695
        %v3791 = vpow.pop %v3790
        %v3792 = vadd.f32 %v3729, %v3731
        %v3793 = vadd.f32 %v3792, %v3733
        %v3794 = vadd.f32 %v3793, %v3735
        %v3795 = vadd.f32 %v3794, %v3737
        %v3796 = vadd.f32 %v3795, %v3739
        %v3797 = vadd.f32 %v3796, %v3741
        %v3798 = vadd.f32 %v3797, %v3743
        %v3799 = vadd.f32 %v3798, %v3745
        %v3800 = vadd.f32 %v3799, %v3747
        %v3801 = vadd.f32 %v3800, %v3749
        %v3802 = vadd.f32 %v3801, %v3751
        %v3803 = vadd.f32 %v3802, %v3753
        %v3804 = vadd.f32 %v3803, %v3755
        %v3805 = vadd.f32 %v3804, %v3757
        %v3806 = vadd.f32 %v3805, %v3759
        %v3807 = vadd.f32 %v3806, %v3761
        %v3808 = vadd.f32 %v3807, %v3763
        %v3809 = vadd.f32 %v3808, %v3765
        %v3810 = vadd.f32 %v3809, %v3767
        %v3811 = vadd.f32 %v3810, %v3769
        %v3812 = vadd.f32 %v3811, %v3771
        %v3813 = vadd.f32 %v3812, %v3773
        %v3814 = vadd.f32 %v3813, %v3775
        %v3815 = vadd.f32 %v3814, %v3777
        %v3816 = vadd.f32 %v3815, %v3779
        %v3817 = vadd.f32 %v3816, %v3781
        %v3818 = vadd.f32 %v3817, %v3783
        %v3819 = vadd.f32 %v3818, %v3785
        %v3820 = vadd.f32 %v3819, %v3787
        %v3821 = vadd.f32 %v3820, %v3789
        %v3822 = vadd.f32 %v3821, %v3791
        %v3823 = vrot.slane %v3822, 4
        %v3824 = vadd.f32 %v3822, %v3823
        %v3825 = vrot.slane %v3824, 2
        %v3826 = vadd.f32 %v3824, %v3825
        %v3827 = vrot.slane %v3826, 1
        %v3828 = vadd.f32 %v3826, %v3827
        %v3829 = vpack.c.bf16 %v3731, %v3729
        %v3830 = vpack.c.bf16 %v3735, %v3733
        %v3831 = vpack.c.bf16 %v3739, %v3737
        %v3832 = vpack.c.bf16 %v3743, %v3741
        %v3833 = vpack.c.bf16 %v3747, %v3745
        %v3834 = vpack.c.bf16 %v3751, %v3749
        %v3835 = vpack.c.bf16 %v3755, %v3753
        %v3836 = vpack.c.bf16 %v3759, %v3757
        %v3837 = vpack.c.bf16 %v3763, %v3761
        %v3838 = vpack.c.bf16 %v3767, %v3765
        %v3839 = vpack.c.bf16 %v3771, %v3769
        %v3840 = vpack.c.bf16 %v3775, %v3773
        %v3841 = vpack.c.bf16 %v3779, %v3777
        %v3842 = vpack.c.bf16 %v3783, %v3781
        %v3843 = vpack.c.bf16 %v3787, %v3785
        %v3844 = vpack.c.bf16 %v3791, %v3789
        %3845 = vmatprep.subr.bf16.mxu0 0
        %3846 = vmatpush1.bf16.msra.mxu0 %v3829
        %3847 = vmatprep.subr.bf16.mxu0 0
        %3848 = vmatpush1.bf16.msra.mxu0 %v3830
        %3849 = vmatprep.subr.bf16.mxu0 0
        %3850 = vmatpush1.bf16.msra.mxu0 %v3831
        %3851 = vmatprep.subr.bf16.mxu0 0
        %3852 = vmatpush1.bf16.msra.mxu0 %v3832
        %3853 = vmatprep.subr.bf16.mxu0 0
        %3854 = vmatpush1.bf16.msra.mxu0 %v3833
        %3855 = vmatprep.subr.bf16.mxu0 0
        %3856 = vmatpush1.bf16.msra.mxu0 %v3834
        %3857 = vmatprep.subr.bf16.mxu0 0
        %3858 = vmatpush1.bf16.msra.mxu0 %v3835
        %3859 = vmatprep.subr.bf16.mxu0 0
        %3860 = vmatpush1.bf16.msra.mxu0 %v3836
        %3861 = vmatprep.subr.bf16.mxu0 0
        %3862 = vmatpush1.bf16.msra.mxu0 %v3837
        %3863 = vmatprep.subr.bf16.mxu0 0
        %3864 = vmatpush1.bf16.msra.mxu0 %v3838
        %3865 = vmatprep.subr.bf16.mxu0 0
        %3866 = vmatpush1.bf16.msra.mxu0 %v3839
        %3867 = vmatprep.subr.bf16.mxu0 0
        %3868 = vmatpush1.bf16.msra.mxu0 %v3840
        %3869 = vmatprep.subr.bf16.mxu0 0
        %3870 = vmatpush1.bf16.msra.mxu0 %v3841
        %3871 = vmatprep.subr.bf16.mxu0 0
        %3872 = vmatpush1.bf16.msra.mxu0 %v3842
        %3873 = vmatprep.subr.bf16.mxu0 0
        %3874 = vmatpush1.bf16.msra.mxu0 %v3843
        %3875 = vmatprep.subr.bf16.mxu0 0
        %3876 = vmatpush1.bf16.msra.mxu0 %v3844
        %3877 = vmatprep.mubr.bf16.mxu0 %v3414
        %3878 = vmatmul.mubr.bf16.gmra.mrb[0].mxu0 %v3413
        %v3879 = vpop.f32.mrb[0].mxu0
        %v3880 = vadd.f32 0.0, %v3879
        %v3881 = vpop.f32.mrb[0].mxu0
        %v3882 = vpop.f32.mrb[0].mxu0
        %v3883 = vpop.f32.mrb[0].mxu0
        %3884 = vdwg.mxu0
        %v3885 = vrcp.pop %v3828
        %v3886 = vmul.f32 %v3880, %v3885
        %v3888 = vsel %vm581, %v3406, 0
        %3890 = vmatprep.subr.bf16.mxu0 0
        %3891 = vmatpush1.bf16.msra.mxu0 %v3888
        %3892 = vmatprep.subr.bf16.mxu0 0
        %3893 = vmatpush1.bf16.msra.mxu0 0
        %3894 = vmatprep.subr.bf16.mxu0 0
        %3895 = vmatpush1.bf16.msra.mxu0 0
        %3896 = vmatprep.subr.bf16.mxu0 0
        %3897 = vmatpush1.bf16.msra.mxu0 0
        %3898 = vmatprep.subr.bf16.mxu0 0
        %3899 = vmatpush1.bf16.msra.mxu0 0
        %3900 = vmatprep.subr.bf16.mxu0 0
        %3901 = vmatpush1.bf16.msra.mxu0 0
        %3902 = vmatprep.subr.bf16.mxu0 0
        %3903 = vmatpush1.bf16.msra.mxu0 0
        %3904 = vmatprep.subr.bf16.mxu0 0
        %3905 = vmatpush1.bf16.msra.mxu0 0
        %3906 = vmatprep.subr.bf16.mxu0 0
        %3907 = vmatpush1.bf16.msra.mxu0 0
        %3908 = vmatprep.subr.bf16.mxu0 0
        %3909 = vmatpush1.bf16.msra.mxu0 0
        %3910 = vmatprep.subr.bf16.mxu0 0
        %3911 = vmatpush1.bf16.msra.mxu0 0
        %3912 = vmatprep.subr.bf16.mxu0 0
        %3913 = vmatpush1.bf16.msra.mxu0 0
        %3914 = vmatprep.subr.bf16.mxu0 0
        %3915 = vmatpush1.bf16.msra.mxu0 0
        %3916 = vmatprep.subr.bf16.mxu0 0
        %3917 = vmatpush1.bf16.msra.mxu0 0
        %3918 = vmatprep.subr.bf16.mxu0 0
        %3919 = vmatpush1.bf16.msra.mxu0 0
        %3920 = vmatprep.subr.bf16.mxu0 0
        %3921 = vmatpush1.bf16.msra.mxu0 0
        %3922 = vmatprep.mubr.bf16.mxu0 0
        %3923 = vmatmul.mubr.bf16.gmra.mrb[0].mxu0 %v3448
        %v3924 = vpop.f32.mrb[0].mxu0
        %v3925 = vadd.f32 0.0, %v3924
        %v3926 = vpop.f32.mrb[0].mxu0
        %v3927 = vpop.f32.mrb[0].mxu0
        %v3928 = vadd.f32 0.0, %v3927
        %v3929 = vpop.f32.mrb[0].mxu0
        %3930 = vmatprep.mubr.bf16.mxu0 0
        %3931 = vmatmul.mubr.bf16.gmra.mrb[0].mxu0 %v3451
        %v3932 = vpop.f32.mrb[0].mxu0
        %v3933 = vadd.f32 0.0, %v3932
        %v3934 = vpop.f32.mrb[0].mxu0
        %v3935 = vpop.f32.mrb[0].mxu0
        %v3936 = vadd.f32 0.0, %v3935
        %v3937 = vpop.f32.mrb[0].mxu0
        %3938 = vmatprep.mubr.bf16.mxu0 0
        %3939 = vmatmul.mubr.bf16.gmra.mrb[0].mxu0 %v3454
        %v3940 = vpop.f32.mrb[0].mxu0
        %v3941 = vadd.f32 0.0, %v3940
        %v3942 = vpop.f32.mrb[0].mxu0
        %v3943 = vpop.f32.mrb[0].mxu0
        %v3944 = vadd.f32 0.0, %v3943
        %v3945 = vpop.f32.mrb[0].mxu0
        %3946 = vmatprep.mubr.bf16.mxu0 0
        %3947 = vmatmul.mubr.bf16.gmra.mrb[0].mxu0 %v3457
        %v3948 = vpop.f32.mrb[0].mxu0
        %v3949 = vadd.f32 0.0, %v3948
        %v3950 = vpop.f32.mrb[0].mxu0
        %v3951 = vpop.f32.mrb[0].mxu0
        %v3952 = vadd.f32 0.0, %v3951
        %v3953 = vpop.f32.mrb[0].mxu0
        %3954 = vmatprep.mubr.bf16.mxu0 0
        %3955 = vmatmul.mubr.bf16.gmra.mrb[0].mxu0 %v3460
        %v3956 = vpop.f32.mrb[0].mxu0
        %v3957 = vadd.f32 0.0, %v3956
        %v3958 = vpop.f32.mrb[0].mxu0
        %v3959 = vpop.f32.mrb[0].mxu0
        %v3960 = vadd.f32 0.0, %v3959
        %v3961 = vpop.f32.mrb[0].mxu0
        %3962 = vmatprep.mubr.bf16.mxu0 0
        %3963 = vmatmul.mubr.bf16.gmra.mrb[0].mxu0 %v3463
        %v3964 = vpop.f32.mrb[0].mxu0
        %v3965 = vadd.f32 0.0, %v3964
        %v3966 = vpop.f32.mrb[0].mxu0
        %v3967 = vpop.f32.mrb[0].mxu0
        %v3968 = vadd.f32 0.0, %v3967
        %v3969 = vpop.f32.mrb[0].mxu0
        %3970 = vmatprep.mubr.bf16.mxu0 0
        %3971 = vmatmul.mubr.bf16.gmra.mrb[0].mxu0 %v3466
        %v3972 = vpop.f32.mrb[0].mxu0
        %v3973 = vadd.f32 0.0, %v3972
        %v3974 = vpop.f32.mrb[0].mxu0
        %v3975 = vpop.f32.mrb[0].mxu0
        %v3976 = vadd.f32 0.0, %v3975
        %v3977 = vpop.f32.mrb[0].mxu0
        %3978 = vmatprep.mubr.bf16.mxu0 0
        %3979 = vmatmul.mubr.bf16.gmra.mrb[0].mxu0 %v3469
        %v3980 = vpop.f32.mrb[0].mxu0
        %v3981 = vadd.f32 0.0, %v3980
        %v3982 = vpop.f32.mrb[0].mxu0
        %v3983 = vpop.f32.mrb[0].mxu0
        %v3984 = vadd.f32 0.0, %v3983
        %v3985 = vpop.f32.mrb[0].mxu0
        %3986 = vmatprep.mubr.bf16.mxu0 0
        %3987 = vmatmul.mubr.bf16.gmra.mrb[0].mxu0 %v3472
        %v3988 = vpop.f32.mrb[0].mxu0
        %v3989 = vadd.f32 0.0, %v3988
        %v3990 = vpop.f32.mrb[0].mxu0
        %v3991 = vpop.f32.mrb[0].mxu0
        %v3992 = vadd.f32 0.0, %v3991
        %v3993 = vpop.f32.mrb[0].mxu0
        %3994 = vmatprep.mubr.bf16.mxu0 0
        %3995 = vmatmul.mubr.bf16.gmra.mrb[0].mxu0 %v3475
        %v3996 = vpop.f32.mrb[0].mxu0
        %v3997 = vadd.f32 0.0, %v3996
        %v3998 = vpop.f32.mrb[0].mxu0
        %v3999 = vpop.f32.mrb[0].mxu0
        %v4000 = vadd.f32 0.0, %v3999
        %v4001 = vpop.f32.mrb[0].mxu0
        %4002 = vmatprep.mubr.bf16.mxu0 0
        %4003 = vmatmul.mubr.bf16.gmra.mrb[0].mxu0 %v3478
        %v4004 = vpop.f32.mrb[0].mxu0
        %v4005 = vadd.f32 0.0, %v4004
        %v4006 = vpop.f32.mrb[0].mxu0
        %v4007 = vpop.f32.mrb[0].mxu0
        %v4008 = vadd.f32 0.0, %v4007
        %v4009 = vpop.f32.mrb[0].mxu0
        %4010 = vmatprep.mubr.bf16.mxu0 0
        %4011 = vmatmul.mubr.bf16.gmra.mrb[0].mxu0 %v3481
        %v4012 = vpop.f32.mrb[0].mxu0
        %v4013 = vadd.f32 0.0, %v4012
        %v4014 = vpop.f32.mrb[0].mxu0
        %v4015 = vpop.f32.mrb[0].mxu0
        %v4016 = vadd.f32 0.0, %v4015
        %v4017 = vpop.f32.mrb[0].mxu0
        %4018 = vmatprep.mubr.bf16.mxu0 0
        %4019 = vmatmul.mubr.bf16.gmra.mrb[0].mxu0 %v3484
        %v4020 = vpop.f32.mrb[0].mxu0
        %v4021 = vadd.f32 0.0, %v4020
        %v4022 = vpop.f32.mrb[0].mxu0
        %v4023 = vpop.f32.mrb[0].mxu0
        %v4024 = vadd.f32 0.0, %v4023
        %v4025 = vpop.f32.mrb[0].mxu0
        %4026 = vmatprep.mubr.bf16.mxu0 0
        %4027 = vmatmul.mubr.bf16.gmra.mrb[0].mxu0 %v3487
        %v4028 = vpop.f32.mrb[0].mxu0
        %v4029 = vadd.f32 0.0, %v4028
        %v4030 = vpop.f32.mrb[0].mxu0
        %v4031 = vpop.f32.mrb[0].mxu0
        %v4032 = vadd.f32 0.0, %v4031
        %v4033 = vpop.f32.mrb[0].mxu0
        %4034 = vmatprep.mubr.bf16.mxu0 0
        %4035 = vmatmul.mubr.bf16.gmra.mrb[0].mxu0 %v3490
        %v4036 = vpop.f32.mrb[0].mxu0
        %v4037 = vadd.f32 0.0, %v4036
        %v4038 = vpop.f32.mrb[0].mxu0
        %v4039 = vpop.f32.mrb[0].mxu0
        %v4040 = vadd.f32 0.0, %v4039
        %v4041 = vpop.f32.mrb[0].mxu0
        %4042 = vmatprep.mubr.bf16.mxu0 0
        %4043 = vmatmul.mubr.bf16.gmra.mrb[0].mxu0 %v3493
        %v4044 = vpop.f32.mrb[0].mxu0
        %v4045 = vadd.f32 0.0, %v4044
        %v4046 = vpop.f32.mrb[0].mxu0
        %v4047 = vpop.f32.mrb[0].mxu0
        %v4048 = vadd.f32 0.0, %v4047
        %v4049 = vpop.f32.mrb[0].mxu0
        %4050 = vdwg.mxu0
        %v4051 = vmax.f32 %v3925, %v3941
        %v4052 = vmax.f32 %v3928, %v3944
        %v4053 = vmax.f32 %v3933, %v3949
        %v4054 = vmax.f32 %v3936, %v3952
        %v4055 = vmax.f32 %v4051, %v3957
        %v4056 = vmax.f32 %v4052, %v3960
        %v4057 = vmax.f32 %v4053, %v3965
        %v4058 = vmax.f32 %v4054, %v3968
        %v4059 = vmax.f32 %v4055, %v3973
        %v4060 = vmax.f32 %v4056, %v3976
        %v4061 = vmax.f32 %v4057, %v3981
        %v4062 = vmax.f32 %v4058, %v3984
        %v4063 = vmax.f32 %v4059, %v3989
        %v4064 = vmax.f32 %v4060, %v3992
        %v4065 = vmax.f32 %v4061, %v3997
        %v4066 = vmax.f32 %v4062, %v4000
        %v4067 = vmax.f32 %v4063, %v4005
        %v4068 = vmax.f32 %v4064, %v4008
        %v4069 = vmax.f32 %v4065, %v4013
        %v4070 = vmax.f32 %v4066, %v4016
        %v4071 = vmax.f32 %v4067, %v4021
        %v4072 = vmax.f32 %v4068, %v4024
        %v4073 = vmax.f32 %v4069, %v4029
        %v4074 = vmax.f32 %v4070, %v4032
        %v4075 = vmax.f32 %v4071, %v4037
        %v4076 = vmax.f32 %v4072, %v4040
        %v4077 = vmax.f32 %v4073, %v4045
        %v4078 = vmax.f32 %v4074, %v4048
        %v4079 = vmax.f32 %v4075, %v4076
        %v4080 = vmax.f32 %v4077, %v4078
        %v4081 = vmax.f32 %v4079, %v4080
        %v4082 = vrot.slane %v4081, 4
        %v4083 = vmax.f32 %v4081, %v4082
        %v4084 = vrot.slane %v4083, 2
        %v4085 = vmax.f32 %v4083, %v4084
        %v4086 = vrot.slane %v4085, 1
        %v4087 = vmax.f32 %v4085, %v4086
        %v4088 = vsub.f32 %v3925, %v4087
        %v4089 = vsub.f32 %v3928, %v4087
        %v4090 = vsub.f32 %v3933, %v4087
        %v4091 = vsub.f32 %v3936, %v4087
        %v4092 = vsub.f32 %v3941, %v4087
        %v4093 = vsub.f32 %v3944, %v4087
        %v4094 = vsub.f32 %v3949, %v4087
        %v4095 = vsub.f32 %v3952, %v4087
        %v4096 = vsub.f32 %v3957, %v4087
        %v4097 = vsub.f32 %v3960, %v4087
        %v4098 = vsub.f32 %v3965, %v4087
        %v4099 = vsub.f32 %v3968, %v4087
        %v4100 = vsub.f32 %v3973, %v4087
        %v4101 = vsub.f32 %v3976, %v4087
        %v4102 = vsub.f32 %v3981, %v4087
        %v4103 = vsub.f32 %v3984, %v4087
        %v4104 = vsub.f32 %v3989, %v4087
        %v4105 = vsub.f32 %v3992, %v4087
        %v4106 = vsub.f32 %v3997, %v4087
        %v4107 = vsub.f32 %v4000, %v4087
        %v4108 = vsub.f32 %v4005, %v4087
        %v4109 = vsub.f32 %v4008, %v4087
        %v4110 = vsub.f32 %v4013, %v4087
        %v4111 = vsub.f32 %v4016, %v4087
        %v4112 = vsub.f32 %v4021, %v4087
        %v4113 = vsub.f32 %v4024, %v4087
        %v4114 = vsub.f32 %v4029, %v4087
        %v4115 = vsub.f32 %v4032, %v4087
        %v4116 = vsub.f32 %v4037, %v4087
        %v4117 = vsub.f32 %v4040, %v4087
        %v4118 = vsub.f32 %v4045, %v4087
        %v4119 = vsub.f32 %v4048, %v4087
        %v4120 = vmul.f32 %v4088, 1.442695
        %v4121 = vpow.pop %v4120
        %v4122 = vmul.f32 %v4089, 1.442695
        %v4123 = vpow.pop %v4122
        %v4124 = vmul.f32 %v4090, 1.442695
        %v4125 = vpow.pop %v4124
        %v4126 = vmul.f32 %v4091, 1.442695
        %v4127 = vpow.pop %v4126
        %v4128 = vmul.f32 %v4092, 1.442695
        %v4129 = vpow.pop %v4128
        %v4130 = vmul.f32 %v4093, 1.442695
        %v4131 = vpow.pop %v4130
        %v4132 = vmul.f32 %v4094, 1.442695
        %v4133 = vpow.pop %v4132
        %v4134 = vmul.f32 %v4095, 1.442695
        %v4135 = vpow.pop %v4134
        %v4136 = vmul.f32 %v4096, 1.442695
        %v4137 = vpow.pop %v4136
        %v4138 = vmul.f32 %v4097, 1.442695
        %v4139 = vpow.pop %v4138
        %v4140 = vmul.f32 %v4098, 1.442695
        %v4141 = vpow.pop %v4140
        %v4142 = vmul.f32 %v4099, 1.442695
        %v4143 = vpow.pop %v4142
        %v4144 = vmul.f32 %v4100, 1.442695
        %v4145 = vpow.pop %v4144
        %v4146 = vmul.f32 %v4101, 1.442695
        %v4147 = vpow.pop %v4146
        %v4148 = vmul.f32 %v4102, 1.442695
        %v4149 = vpow.pop %v4148
        %v4150 = vmul.f32 %v4103, 1.442695
        %v4151 = vpow.pop %v4150
        %v4152 = vmul.f32 %v4104, 1.442695
        %v4153 = vpow.pop %v4152
        %v4154 = vmul.f32 %v4105, 1.442695
        %v4155 = vpow.pop %v4154
        %v4156 = vmul.f32 %v4106, 1.442695
        %v4157 = vpow.pop %v4156
        %v4158 = vmul.f32 %v4107, 1.442695
        %v4159 = vpow.pop %v4158
        %v4160 = vmul.f32 %v4108, 1.442695
        %v4161 = vpow.pop %v4160
        %v4162 = vmul.f32 %v4109, 1.442695
        %v4163 = vpow.pop %v4162
        %v4164 = vmul.f32 %v4110, 1.442695
        %v4165 = vpow.pop %v4164
        %v4166 = vmul.f32 %v4111, 1.442695
        %v4167 = vpow.pop %v4166
        %v4168 = vmul.f32 %v4112, 1.442695
        %v4169 = vpow.pop %v4168
        %v4170 = vmul.f32 %v4113, 1.442695
        %v4171 = vpow.pop %v4170
        %v4172 = vmul.f32 %v4114, 1.442695
        %v4173 = vpow.pop %v4172
        %v4174 = vmul.f32 %v4115, 1.442695
        %v4175 = vpow.pop %v4174
        %v4176 = vmul.f32 %v4116, 1.442695
        %v4177 = vpow.pop %v4176
        %v4178 = vmul.f32 %v4117, 1.442695
        %v4179 = vpow.pop %v4178
        %v4180 = vmul.f32 %v4118, 1.442695
        %v4181 = vpow.pop %v4180
        %v4182 = vmul.f32 %v4119, 1.442695
        %v4183 = vpow.pop %v4182
        %v4184 = vadd.f32 %v4121, %v4123
        %v4185 = vadd.f32 %v4184, %v4125
        %v4186 = vadd.f32 %v4185, %v4127
        %v4187 = vadd.f32 %v4186, %v4129
        %v4188 = vadd.f32 %v4187, %v4131
        %v4189 = vadd.f32 %v4188, %v4133
        %v4190 = vadd.f32 %v4189, %v4135
        %v4191 = vadd.f32 %v4190, %v4137
        %v4192 = vadd.f32 %v4191, %v4139
        %v4193 = vadd.f32 %v4192, %v4141
        %v4194 = vadd.f32 %v4193, %v4143
        %v4195 = vadd.f32 %v4194, %v4145
        %v4196 = vadd.f32 %v4195, %v4147
        %v4197 = vadd.f32 %v4196, %v4149
        %v4198 = vadd.f32 %v4197, %v4151
        %v4199 = vadd.f32 %v4198, %v4153
        %v4200 = vadd.f32 %v4199, %v4155
        %v4201 = vadd.f32 %v4200, %v4157
        %v4202 = vadd.f32 %v4201, %v4159
        %v4203 = vadd.f32 %v4202, %v4161
        %v4204 = vadd.f32 %v4203, %v4163
        %v4205 = vadd.f32 %v4204, %v4165
        %v4206 = vadd.f32 %v4205, %v4167
        %v4207 = vadd.f32 %v4206, %v4169
        %v4208 = vadd.f32 %v4207, %v4171
        %v4209 = vadd.f32 %v4208, %v4173
        %v4210 = vadd.f32 %v4209, %v4175
        %v4211 = vadd.f32 %v4210, %v4177
        %v4212 = vadd.f32 %v4211, %v4179
        %v4213 = vadd.f32 %v4212, %v4181
        %v4214 = vadd.f32 %v4213, %v4183
        %v4215 = vrot.slane %v4214, 4
        %v4216 = vadd.f32 %v4214, %v4215
        %v4217 = vrot.slane %v4216, 2
        %v4218 = vadd.f32 %v4216, %v4217
        %v4219 = vrot.slane %v4218, 1
        %v4220 = vadd.f32 %v4218, %v4219
        %v4221 = vpack.c.bf16 %v4123, %v4121
        %v4222 = vpack.c.bf16 %v4127, %v4125
        %v4223 = vpack.c.bf16 %v4131, %v4129
        %v4224 = vpack.c.bf16 %v4135, %v4133
        %v4225 = vpack.c.bf16 %v4139, %v4137
        %v4226 = vpack.c.bf16 %v4143, %v4141
        %v4227 = vpack.c.bf16 %v4147, %v4145
        %v4228 = vpack.c.bf16 %v4151, %v4149
        %v4229 = vpack.c.bf16 %v4155, %v4153
        %v4230 = vpack.c.bf16 %v4159, %v4157
        %v4231 = vpack.c.bf16 %v4163, %v4161
        %v4232 = vpack.c.bf16 %v4167, %v4165
        %v4233 = vpack.c.bf16 %v4171, %v4169
        %v4234 = vpack.c.bf16 %v4175, %v4173
        %v4235 = vpack.c.bf16 %v4179, %v4177
        %v4236 = vpack.c.bf16 %v4183, %v4181
        %4237 = vmatprep.subr.bf16.mxu0 0
        %4238 = vmatpush1.bf16.msra.mxu0 %v4221
        %4239 = vmatprep.subr.bf16.mxu0 0
        %4240 = vmatpush1.bf16.msra.mxu0 %v4222
        %4241 = vmatprep.subr.bf16.mxu0 0
        %4242 = vmatpush1.bf16.msra.mxu0 %v4223
        %4243 = vmatprep.subr.bf16.mxu0 0
        %4244 = vmatpush1.bf16.msra.mxu0 %v4224
        %4245 = vmatprep.subr.bf16.mxu0 0
        %4246 = vmatpush1.bf16.msra.mxu0 %v4225
        %4247 = vmatprep.subr.bf16.mxu0 0
        %4248 = vmatpush1.bf16.msra.mxu0 %v4226
        %4249 = vmatprep.subr.bf16.mxu0 0
        %4250 = vmatpush1.bf16.msra.mxu0 %v4227
        %4251 = vmatprep.subr.bf16.mxu0 0
        %4252 = vmatpush1.bf16.msra.mxu0 %v4228
        %4253 = vmatprep.subr.bf16.mxu0 0
        %4254 = vmatpush1.bf16.msra.mxu0 %v4229
        %4255 = vmatprep.subr.bf16.mxu0 0
        %4256 = vmatpush1.bf16.msra.mxu0 %v4230
        %4257 = vmatprep.subr.bf16.mxu0 0
        %4258 = vmatpush1.bf16.msra.mxu0 %v4231
        %4259 = vmatprep.subr.bf16.mxu0 0
        %4260 = vmatpush1.bf16.msra.mxu0 %v4232
        %4261 = vmatprep.subr.bf16.mxu0 0
        %4262 = vmatpush1.bf16.msra.mxu0 %v4233
        %4263 = vmatprep.subr.bf16.mxu0 0
        %4264 = vmatpush1.bf16.msra.mxu0 %v4234
        %4265 = vmatprep.subr.bf16.mxu0 0
        %4266 = vmatpush1.bf16.msra.mxu0 %v4235
        %4267 = vmatprep.subr.bf16.mxu0 0
        %4268 = vmatpush1.bf16.msra.mxu0 %v4236
        %4269 = vmatprep.mubr.bf16.mxu0 %v3414
        %4270 = vmatmul.mubr.bf16.gmra.mrb[0].mxu0 %v3413
        %v4271 = vpop.f32.mrb[0].mxu0
        %v4272 = vadd.f32 0.0, %v4271
        %v4273 = vpop.f32.mrb[0].mxu0
        %v4274 = vpop.f32.mrb[0].mxu0
        %v4275 = vpop.f32.mrb[0].mxu0
        %4276 = vdwg.mxu0
        %v4277 = vrcp.pop %v4220
        %v4278 = vmul.f32 %v4272, %v4277
        %v4279 = vld [vmem:[%s3 + $0x18] sm:$0xff]
        %v4280 = vpack.c.bf16 %v4279, %v4279
        %v4281 = vpack.c.bf16 %v3886, %v3886
        %v4282 = vpack.c.bf16 %v4278, %v4278
        %4283 = vxpose.xlu0.c.b16.start [1/8] %v4280, 128
        %4284 = vxpose.xlu0.c.b16.cont [2/8] 0, 128
        %4285 = vxpose.xlu0.c.b16.cont [3/8] 0, 128
        %4286 = vxpose.xlu0.c.b16.cont [4/8] 0, 128
        %4287 = vxpose.xlu0.c.b16.cont [5/8] 0, 128
        %4288 = vxpose.xlu0.c.b16.cont [6/8] 0, 128
        %4289 = vxpose.xlu0.c.b16.cont [7/8] 0, 128
        %4290 = vxpose.xlu0.c.b16.end [8/8] 0, 128
        %v4291 = vpop.trf.xlu0
        %v4292 = vpop.trf.xlu0
        %v4293 = vpop.trf.xlu0
        %v4294 = vpop.trf.xlu0
        %v4295 = vpop.trf.xlu0
        %v4296 = vpop.trf.xlu0
        %v4297 = vpop.trf.xlu0
        %v4298 = vpop.trf.xlu0
        %v4300 = vsel %vm532, %v4291, 0
        %v4303 = vsel %vm532, %v4292, 0
        %v4306 = vsel %vm581, %v4281, 0
        %v4309 = vsel %vm581, %v4282, 0
        %4311 = vmatprep.subr.bf16.mxu0 %v4309
        %4312 = vmatpush1.bf16.msra.mxu0 %v4306
        %4313 = vmatprep.subr.bf16.mxu0 0
        %4314 = vmatpush1.bf16.msra.mxu0 0
        %4315 = vmatprep.subr.bf16.mxu0 0
        %4316 = vmatpush1.bf16.msra.mxu0 0
        %4317 = vmatprep.subr.bf16.mxu0 0
        %4318 = vmatpush1.bf16.msra.mxu0 0
        %4319 = vmatprep.subr.bf16.mxu0 0
        %4320 = vmatpush1.bf16.msra.mxu0 0
        %4321 = vmatprep.subr.bf16.mxu0 0
        %4322 = vmatpush1.bf16.msra.mxu0 0
        %4323 = vmatprep.subr.bf16.mxu0 0
        %4324 = vmatpush1.bf16.msra.mxu0 0
        %4325 = vmatprep.subr.bf16.mxu0 0
        %4326 = vmatpush1.bf16.msra.mxu0 0
        %4327 = vmatprep.subr.bf16.mxu0 0
        %4328 = vmatpush1.bf16.msra.mxu0 0
        %4329 = vmatprep.subr.bf16.mxu0 0
        %4330 = vmatpush1.bf16.msra.mxu0 0
        %4331 = vmatprep.subr.bf16.mxu0 0
        %4332 = vmatpush1.bf16.msra.mxu0 0
        %4333 = vmatprep.subr.bf16.mxu0 0
        %4334 = vmatpush1.bf16.msra.mxu0 0
        %4335 = vmatprep.subr.bf16.mxu0 0
        %4336 = vmatpush1.bf16.msra.mxu0 0
        %4337 = vmatprep.subr.bf16.mxu0 0
        %4338 = vmatpush1.bf16.msra.mxu0 0
        %4339 = vmatprep.subr.bf16.mxu0 0
        %4340 = vmatpush1.bf16.msra.mxu0 0
        %4341 = vmatprep.subr.bf16.mxu0 0
        %4342 = vmatpush1.bf16.msra.mxu0 0
        %4343 = vmatprep.mubr.bf16.mxu0 0
        %4344 = vmatmul.mubr.bf16.gmra.mrb[0].mxu0 %v4300
        %v4345 = vpop.f32.mrb[0].mxu0
        %v4346 = vadd.f32 0.0, %v4345
        %v4347 = vpop.f32.mrb[0].mxu0
        %v4348 = vadd.f32 0.0, %v4347
        %v4349 = vpop.f32.mrb[0].mxu0
        %v4350 = vadd.f32 0.0, %v4349
        %v4351 = vpop.f32.mrb[0].mxu0
        %v4352 = vadd.f32 0.0, %v4351
        %4353 = vmatprep.mubr.bf16.mxu0 0
        %4354 = vmatmul.mubr.bf16.gmra.mrb[0].mxu0 %v4303
        %v4355 = vpop.f32.mrb[0].mxu0
        %v4356 = vadd.f32 0.0, %v4355
        %v4357 = vpop.f32.mrb[0].mxu0
        %v4358 = vadd.f32 0.0, %v4357
        %v4359 = vpop.f32.mrb[0].mxu0
        %v4360 = vadd.f32 0.0, %v4359
        %v4361 = vpop.f32.mrb[0].mxu0
        %v4362 = vadd.f32 0.0, %v4361
        %4363 = vdwg.mxu0
        %v4364 = vadd.f32 %v3393, %v4346
        %v4365 = vadd.f32 %v3394, %v4348
        %v4366 = vadd.f32 %v3395, %v4350
        %v4367 = vadd.f32 %v3396, %v4352
        %v4368 = vadd.f32 %v3397, %v4356
        %v4369 = vadd.f32 %v3398, %v4358
        %v4370 = vadd.f32 %v3399, %v4360
        %v4371 = vadd.f32 %v3400, %v4362
        %4372 = vst [vmem:[%s217] sm:$0xff] %v4364
        %4373 = vst [vmem:[%s217 + $0x8] sm:$0xff] %v4365
        %4374 = vst [vmem:[%s217 + $0x10] sm:$0xff] %v4366
        %4375 = vst [vmem:[%s217 + $0x18] sm:$0xff] %v4367
        %4376 = vst [vmem:[%s217 + $0x20] sm:$0xff] %v4368
        %4377 = vst [vmem:[%s217 + $0x28] sm:$0xff] %v4369
        %4378 = vst [vmem:[%s217 + $0x30] sm:$0xff] %v4370
        %4379 = vst [vmem:[%s217 + $0x38] sm:$0xff] %v4371
        %s4380 = sand.u32 %s137, 1
        %s4381 = scalar_lea.sflag [#allocation4], %s4380
        %s4382 = sand.u32 %s137, 1
        %s4383 = smul.addr %s4382, 64
        %s4384 = scalar_lea.vmem [#allocation3], %s4383
        // Predicated region
        $region41: #{tpu_custom_call.1} parent=39 // pred_check
          %p4385 = pneg %p147
        $region42: #{tpu_custom_call.1} parent=39 // pred_check_branch
          %4387 = sbr.rel (%p4385) target = $region44
        $region43: #{tpu_custom_call.1} parent=39 // pred_region
          %s4389 = ssub.s32 1024, 1024
          %4390 = vsyncadd %s4381, %s4389
          %s4391 = smul.addr %s19, 8
          %s4392 = smul.addr %s4391, 128
          %s4393 = scalar_lea.hbm %s5, %s4392
          %s4394 = sshll.u32 %s4384, 4
          %s4395 = int_to_ptr.vmem [resolvable:$true] %s4394
          %4400 = dma.vmem_to_hbm [thread:$0]  %s4395, 1024, %s4393, %s4381, 256, 256, 16
        $region44: #{tpu_custom_call.1} parent=39 // pred_fallthru
          _
      $region40: #{tpu_custom_call.1} parent=5 // pred_fallthru
        _
      %p4401 = scmp.le.s32.totalorder 2, %s14
      // Predicated region
      $region45: #{tpu_custom_call.1} parent=5 // pred_check
        %p4402 = pneg %p4401
      $region46: #{tpu_custom_call.1} parent=5 // pred_check_branch
        %4404 = sbr.rel (%p4402) target = $region48
      $region47: #{tpu_custom_call.1} parent=5 // pred_region
        %s4405 = ssub.s32 %s14, 2
        // Predicated region
        $region49: #{tpu_custom_call.1} parent=47 // pred_check
          %p4406 = pneg %p153
        $region50: #{tpu_custom_call.1} parent=47 // pred_check_branch
          %4408 = sbr.rel (%p4406) target = $region52
        $region51: #{tpu_custom_call.1} parent=47 // pred_region
          %s4409 = sand.u32 %s138, 1
          %s4410 = scalar_lea.sflag [#allocation4], %s4409
          %s4411 = sand.u32 %s138, 1
          %s4412 = smul.addr %s4411, 64
          %s4413 = scalar_lea.vmem [#allocation3], %s4412
          %4414 = dma.done %s4410, 1024
        $region52: #{tpu_custom_call.1} parent=47 // pred_fallthru
          _
      $region48: #{tpu_custom_call.1} parent=5 // pred_fallthru
        _
    $region6: #{tpu_custom_call.1} parent=1 // loop_footer
      %s18 = sadd.s32 1, %s14
    $region7: #{tpu_custom_call.1} parent=1 // loop_footer_branch
      %13 = sbr.rel target = $region3
    $region8: #{tpu_custom_call.1} parent=1 // loop_exit
      _
    %4415 = vsyncpa [#allocation4], 1
    %s4416 = scalar_lea.sflag [#allocation4], 1
    %4417 = vsyncpa %s4416, 1

</llo_original>
